<compile_context>
chip_gen: v7x
topology: tpu7x:2x2x1
jax: 0.10.0
libtpu: 0.0.40
codegen_flags: <defaults>
</compile_context>

<pallas_src>
import jax
import jax.numpy as jnp
from jax.experimental import pallas as pl
from jax.experimental.pallas import tpu as pltpu

NUM_CLASSES = 10

# Fixed InceptionAux geometry.
H = W = 17            # aux-head input spatial size
POOL = 5              # avg_pool2d kernel
STRIDE = 3            # avg_pool2d stride -> 5x5 pooled map
TAPS = POOL * POOL    # 25 spatial taps of the 5x5 conv1
C0 = 128              # conv0 output channels
C1 = 768              # conv1 output channels
K1 = TAPS * C0        # 3200 = flattened conv1 contraction dim
NC_PAD = 128          # lane-dense padded num_classes
NP = 2                # conv1-cout halves; one per v7x TensorCore ("parallel" axis)
TN = C1 // NP         # 384 conv1 output channels per grid step


def stage1_kernel(x_ref, w0_ref, b0_ref, h0_ref):
    """avg_pool2d(5,3) + conv0(1x1) + folded-BN + ReLU, computed once.

    x_ref  : (Np, 17, 17, Cin) f32   NHWC input, Np = batch padded to multiple of 8
    w0_ref : (Cin, 128)        f32   conv0 1x1 weight, BN folded
    b0_ref : (1, 128)          f32   conv0 folded bias
    h0_ref : (Np, 3200)        bf16  conv0 activations, column = tap*128 + c0 (tap-major)
    """
    n = x_ref.shape[0]
    x = x_ref[...]

    # Separable 5x5/3 pooling, window sums built in registers (no VMEM scratch).
    parts = []
    for i in range(POOL):
        rsum = x[:, STRIDE * i:STRIDE * i + POOL, :, :].sum(axis=1)        # (Np,17,Cin)
        for j in range(POOL):
            parts.append(rsum[:, STRIDE * j:STRIDE * j + POOL, :].sum(axis=1))  # (Np,Cin)
    pooled = jnp.concatenate(parts, axis=0) * (1.0 / TAPS)                  # (25*Np, Cin)

    # One MXU dot for all 25 taps at once, then bias + ReLU.
    h0 = jnp.dot(pooled, w0_ref[...], preferred_element_type=jnp.float32) + b0_ref[...]
    h0 = jnp.maximum(h0, 0.0)                                               # (25*Np, 128)

    # Tap-major relayout: rows [t*Np, (t+1)*Np) -> lanes [t*128, (t+1)*128).
    # Np is a multiple of 8, so every source slice is sublane-aligned (plain copies).
    h0_ref[...] = jnp.concatenate(
        [h0[t * n:(t + 1) * n, :] for t in range(TAPS)], axis=1).astype(h0_ref.dtype)


def stage2_kernel(h0_ref, w1_ref, b1_ref, wfc_ref, out_ref):
    """conv1(5x5 VALID on 5x5) + folded-BN + ReLU + fc, for one 384-wide cout tile.

    h0_ref  : (Np, 3200)  bf16  conv0 activations (same block every step)
    w1_ref  : (3200, 384) bf16  conv1 weight block, rows = (i, j, cin) tap-major
    b1_ref  : (1, 384)    f32   conv1 folded bias block
    wfc_ref : (384, 128)  bf16  fc weight block (num_classes zero-padded to 128)
    out_ref : (1, Np, 128) f32  this tile's partial logits (wrapper sums + adds bias)
    """
    acc = jnp.dot(h0_ref[...], w1_ref[...],
                  preferred_element_type=jnp.float32)                       # (Np, 384)
    h1 = jnp.maximum(acc + b1_ref[...], 0.0)
    part = jnp.dot(h1.astype(wfc_ref.dtype), wfc_ref[...],
                   preferred_element_type=jnp.float32)                      # (Np, 128)
    out_ref[...] = part[None, :, :].astype(out_ref.dtype)


def inception_aux_forward(x_nchw, params):
    w0, b0, w1, b1, wfc, bfc = params
    n, cin, h, w = x_nchw.shape
    assert (h, w) == (H, W), "InceptionAux expects 17x17 feature maps"
    nc = bfc.shape[-1]

    # Pad batch to the 8-row f32 sublane granule (padded rows are sliced off at the end).
    n_pad = max(8, pl.cdiv(n, 8) * 8)
    x = jnp.transpose(x_nchw, (0, 2, 3, 1)).astype(jnp.float32)             # NCHW -> NHWC
    if n_pad != n:
        x = jnp.pad(x, ((0, n_pad - n), (0, 0), (0, 0), (0, 0)))

    # ---- stage 1: avg-pool + conv0, one Pallas invocation -------------------------------
    h0 = pl.pallas_call(
        stage1_kernel,
        out_shape=jax.ShapeDtypeStruct((n_pad, K1), jnp.bfloat16),
        grid=(1,),
        in_specs=[
            pl.BlockSpec((n_pad, H, W, cin), lambda i: (0, 0, 0, 0)),       # x
            pl.BlockSpec((cin, C0), lambda i: (0, 0)),                      # w0
            pl.BlockSpec((1, C0), lambda i: (0, 0)),                        # b0
        ],
        out_specs=pl.BlockSpec((n_pad, K1), lambda i: (0, 0)),
        compiler_params=pltpu.CompilerParams(
            dimension_semantics=("arbitrary",)),
        cost_estimate=pl.CostEstimate(
            flops=int(2 * TAPS * n_pad * cin * C0),
            transcendentals=0,
            bytes_accessed=int(x.size * 4 + w0.size * 4 + b0.size * 4 + n_pad * K1 * 2)),
    )(x, w0, b0)

    # ---- stage 2: conv1 + fc, w1 streamed in NP bf16 blocks ("parallel" over cores) -----
    partials = pl.pallas_call(
        stage2_kernel,
        out_shape=jax.ShapeDtypeStruct((NP, n_pad, NC_PAD), jnp.float32),
        grid=(NP,),
        in_specs=[
            pl.BlockSpec((n_pad, K1), lambda p: (0, 0)),                    # h0 (fetched once)
            pl.BlockSpec((K1, TN), lambda p: (0, p)),                       # w1 block, bf16
            pl.BlockSpec((1, TN), lambda p: (0, p)),                        # b1 block
            pl.BlockSpec((TN, NC_PAD), lambda p: (p, 0)),                   # fc weight block
        ],
        out_specs=pl.BlockSpec((1, n_pad, NC_PAD), lambda p: (p, 0, 0)),
        compiler_params=pltpu.CompilerParams(
            dimension_semantics=("parallel",),
            vmem_limit_bytes=32 * 1024 * 1024),
        cost_estimate=pl.CostEstimate(
            flops=int(2 * n_pad * (K1 * C1 + C1 * NC_PAD)),
            transcendentals=0,
            bytes_accessed=int(n_pad * K1 * 2 + w1.size * 2 + b1.size * 4
                               + wfc.size * 2 + NP * n_pad * NC_PAD * 4)),
    )(h0, w1, b1, wfc)

    # Sum the NP partial-logit tiles, drop batch/lane padding, add the fc bias.
    return partials.sum(axis=0)[:n, :nc] + bfc[None, :]


def init_params(key, in_channels, num_classes):
    """Deterministic synthetic parameters; BN(eps=1e-3) folded into conv weight/bias."""
    assert num_classes <= NC_PAD
    ks = jax.random.split(key, 12)
    f32 = jnp.float32
    eps = 1e-3

    # conv0: 1x1, in_channels -> 128
    w0 = jax.random.normal(ks[0], (in_channels, C0), f32) * 0.1
    g0 = jax.random.uniform(ks[1], (C0,), f32, minval=0.5, maxval=1.5)
    be0 = jax.random.normal(ks[2], (C0,), f32) * 0.1
    mu0 = jax.random.normal(ks[3], (C0,), f32) * 0.1
    v0 = jax.random.uniform(ks[4], (C0,), f32, minval=0.5, maxval=1.5)
    s0 = g0 / jnp.sqrt(v0 + eps)
    w0_eff = w0 * s0[None, :]
    b0_eff = (be0 - mu0 * s0)[None, :]

    # conv1: 5x5, 128 -> 768 (module hint: stddev = 0.01); stored bf16, tap-major rows
    w1 = jax.random.normal(ks[5], (POOL, POOL, C0, C1), f32) * 0.01
    g1 = jax.random.uniform(ks[6], (C1,), f32, minval=0.5, maxval=1.5)
    be1 = jax.random.normal(ks[7], (C1,), f32) * 0.1
    mu1 = jax.random.normal(ks[8], (C1,), f32) * 0.1
    v1 = jax.random.uniform(ks[9], (C1,), f32, minval=0.5, maxval=1.5)
    s1 = g1 / jnp.sqrt(v1 + eps)
    w1_eff = (w1 * s1).reshape(K1, C1).astype(jnp.bfloat16)
    b1_eff = (be1 - mu1 * s1)[None, :]

    # fc: 768 -> num_classes (module hint: stddev = 0.001); zero-padded to 128 lanes, bf16
    wfc = jax.random.normal(ks[10], (C1, num_classes), f32) * 0.001
    wfc_pad = jnp.zeros((C1, NC_PAD), f32).at[:, :num_classes].set(wfc).astype(jnp.bfloat16)
    bfc = jax.random.normal(ks[11], (num_classes,), f32) * 0.01

    return (w0_eff, b0_eff, w1_eff, b1_eff, wfc_pad, bfc)


def ref_forward(x_nchw, params):
    """Pure-JAX reference with identical folded-BN + bf16-weight semantics."""
    w0, b0, w1, b1, wfc, bfc = params
    x = jnp.transpose(x_nchw, (0, 2, 3, 1)).astype(jnp.float32)
    n = x.shape[0]
    pooled = jnp.stack(
        [jnp.stack([jnp.mean(x[:, 3 * i:3 * i + POOL, 3 * j:3 * j + POOL, :], axis=(1, 2))
                    for j in range(POOL)], axis=1)
         for i in range(POOL)], axis=1)                                  # (N,5,5,Cin)
    h0 = jnp.maximum(jnp.einsum('nijc,cd->nijd', pooled, w0) + b0, 0.0)  # (N,5,5,128)
    h0 = h0.reshape(n, K1).astype(jnp.bfloat16)                          # same quantization
    h1 = jnp.maximum(jnp.dot(h0, w1, preferred_element_type=jnp.float32) + b1, 0.0)
    h1 = h1.astype(jnp.bfloat16)
    return jnp.dot(h1, wfc, preferred_element_type=jnp.float32)[:, :bfc.shape[-1]] + bfc


if __name__ == "__main__":
    key = jax.random.PRNGKey(0)
    kx, kp = jax.random.split(key)

    batch, in_channels = 2, 16
    x = jax.random.normal(kx, (batch, in_channels, H, W), jnp.float32)   # NCHW like PyTorch
    params = init_params(kp, in_channels, NUM_CLASSES)

    out = inception_aux_forward(x, params)
    out = jax.block_until_ready(out)

    ref = ref_forward(x, params)
    assert out.shape == (batch, NUM_CLASSES), out.shape
    assert jnp.allclose(out, ref, rtol=1e-2, atol=1e-3), \
        "kernel output mismatch vs JAX reference"

    print("KERNEL_OK")
</pallas_src>

<mosaic_0001>
module attributes {stable_mosaic.version = 11 : i64} {
  func.func @stage1_kernel(%arg0: i32, %arg1: memref<8x17x17x16xf32, #tpu.memory_space<vmem>>, %arg2: memref<16x128xf32, #tpu.memory_space<vmem>>, %arg3: memref<1x128xf32, #tpu.memory_space<vmem>>, %arg4: memref<8x3200xbf16, #tpu.memory_space<vmem>>) attributes {dimension_semantics = [#tpu.dimension_semantics<arbitrary>], iteration_bounds = array<i64: 1>, scalar_prefetch = 0 : i64, scratch_operands = 0 : i64, tpu.core_type = #tpu.core_type<tc>, window_params = [{pipeline_mode = #tpu.pipeline_mode<synchronous>, transform_indices = @transform_0, window_bounds = array<i64: 8, 17, 17, 16>}, {pipeline_mode = #tpu.pipeline_mode<synchronous>, transform_indices = @transform_1, window_bounds = array<i64: 16, 128>}, {pipeline_mode = #tpu.pipeline_mode<synchronous>, transform_indices = @transform_2, window_bounds = array<i64: 1, 128>}, {pipeline_mode = #tpu.pipeline_mode<synchronous>, transform_indices = @transform_3, window_bounds = array<i64: 8, 3200>}]} {
    %c0 = arith.constant 0 : index
    %c0_0 = arith.constant 0 : index
    %c0_1 = arith.constant 0 : index
    %c0_2 = arith.constant 0 : index
    %0 = vector.load %arg1[%c0, %c0_0, %c0_1, %c0_2] : memref<8x17x17x16xf32, #tpu.memory_space<vmem>>, vector<8x17x17x16xf32>
    %1 = vector.extract_strided_slice %0 {offsets = [0, 0, 0, 0], sizes = [8, 5, 17, 16], strides = [1, 1, 1, 1]} : vector<8x17x17x16xf32> to vector<8x5x17x16xf32>
    %cst = arith.constant dense<0.000000e+00> : vector<8x17x16xf32>
    %2 = vector.multi_reduction <add>, %1, %cst [1] : vector<8x5x17x16xf32> to vector<8x17x16xf32>
    %3 = vector.extract_strided_slice %2 {offsets = [0, 0, 0], sizes = [8, 5, 16], strides = [1, 1, 1]} : vector<8x17x16xf32> to vector<8x5x16xf32>
    %cst_3 = arith.constant dense<0.000000e+00> : vector<8x16xf32>
    %4 = vector.multi_reduction <add>, %3, %cst_3 [1] : vector<8x5x16xf32> to vector<8x16xf32>
    %5 = vector.extract_strided_slice %2 {offsets = [0, 3, 0], sizes = [8, 5, 16], strides = [1, 1, 1]} : vector<8x17x16xf32> to vector<8x5x16xf32>
    %cst_4 = arith.constant dense<0.000000e+00> : vector<8x16xf32>
    %6 = vector.multi_reduction <add>, %5, %cst_4 [1] : vector<8x5x16xf32> to vector<8x16xf32>
    %7 = vector.extract_strided_slice %2 {offsets = [0, 6, 0], sizes = [8, 5, 16], strides = [1, 1, 1]} : vector<8x17x16xf32> to vector<8x5x16xf32>
    %cst_5 = arith.constant dense<0.000000e+00> : vector<8x16xf32>
    %8 = vector.multi_reduction <add>, %7, %cst_5 [1] : vector<8x5x16xf32> to vector<8x16xf32>
    %9 = vector.extract_strided_slice %2 {offsets = [0, 9, 0], sizes = [8, 5, 16], strides = [1, 1, 1]} : vector<8x17x16xf32> to vector<8x5x16xf32>
    %cst_6 = arith.constant dense<0.000000e+00> : vector<8x16xf32>
    %10 = vector.multi_reduction <add>, %9, %cst_6 [1] : vector<8x5x16xf32> to vector<8x16xf32>
    %11 = vector.extract_strided_slice %2 {offsets = [0, 12, 0], sizes = [8, 5, 16], strides = [1, 1, 1]} : vector<8x17x16xf32> to vector<8x5x16xf32>
    %cst_7 = arith.constant dense<0.000000e+00> : vector<8x16xf32>
    %12 = vector.multi_reduction <add>, %11, %cst_7 [1] : vector<8x5x16xf32> to vector<8x16xf32>
    %13 = vector.extract_strided_slice %0 {offsets = [0, 3, 0, 0], sizes = [8, 5, 17, 16], strides = [1, 1, 1, 1]} : vector<8x17x17x16xf32> to vector<8x5x17x16xf32>
    %cst_8 = arith.constant dense<0.000000e+00> : vector<8x17x16xf32>
    %14 = vector.multi_reduction <add>, %13, %cst_8 [1] : vector<8x5x17x16xf32> to vector<8x17x16xf32>
    %15 = vector.extract_strided_slice %14 {offsets = [0, 0, 0], sizes = [8, 5, 16], strides = [1, 1, 1]} : vector<8x17x16xf32> to vector<8x5x16xf32>
    %cst_9 = arith.constant dense<0.000000e+00> : vector<8x16xf32>
    %16 = vector.multi_reduction <add>, %15, %cst_9 [1] : vector<8x5x16xf32> to vector<8x16xf32>
    %17 = vector.extract_strided_slice %14 {offsets = [0, 3, 0], sizes = [8, 5, 16], strides = [1, 1, 1]} : vector<8x17x16xf32> to vector<8x5x16xf32>
    %cst_10 = arith.constant dense<0.000000e+00> : vector<8x16xf32>
    %18 = vector.multi_reduction <add>, %17, %cst_10 [1] : vector<8x5x16xf32> to vector<8x16xf32>
    %19 = vector.extract_strided_slice %14 {offsets = [0, 6, 0], sizes = [8, 5, 16], strides = [1, 1, 1]} : vector<8x17x16xf32> to vector<8x5x16xf32>
    %cst_11 = arith.constant dense<0.000000e+00> : vector<8x16xf32>
    %20 = vector.multi_reduction <add>, %19, %cst_11 [1] : vector<8x5x16xf32> to vector<8x16xf32>
    %21 = vector.extract_strided_slice %14 {offsets = [0, 9, 0], sizes = [8, 5, 16], strides = [1, 1, 1]} : vector<8x17x16xf32> to vector<8x5x16xf32>
    %cst_12 = arith.constant dense<0.000000e+00> : vector<8x16xf32>
    %22 = vector.multi_reduction <add>, %21, %cst_12 [1] : vector<8x5x16xf32> to vector<8x16xf32>
    %23 = vector.extract_strided_slice %14 {offsets = [0, 12, 0], sizes = [8, 5, 16], strides = [1, 1, 1]} : vector<8x17x16xf32> to vector<8x5x16xf32>
    %cst_13 = arith.constant dense<0.000000e+00> : vector<8x16xf32>
    %24 = vector.multi_reduction <add>, %23, %cst_13 [1] : vector<8x5x16xf32> to vector<8x16xf32>
    %25 = vector.extract_strided_slice %0 {offsets = [0, 6, 0, 0], sizes = [8, 5, 17, 16], strides = [1, 1, 1, 1]} : vector<8x17x17x16xf32> to vector<8x5x17x16xf32>
    %cst_14 = arith.constant dense<0.000000e+00> : vector<8x17x16xf32>
    %26 = vector.multi_reduction <add>, %25, %cst_14 [1] : vector<8x5x17x16xf32> to vector<8x17x16xf32>
    %27 = vector.extract_strided_slice %26 {offsets = [0, 0, 0], sizes = [8, 5, 16], strides = [1, 1, 1]} : vector<8x17x16xf32> to vector<8x5x16xf32>
    %cst_15 = arith.constant dense<0.000000e+00> : vector<8x16xf32>
    %28 = vector.multi_reduction <add>, %27, %cst_15 [1] : vector<8x5x16xf32> to vector<8x16xf32>
    %29 = vector.extract_strided_slice %26 {offsets = [0, 3, 0], sizes = [8, 5, 16], strides = [1, 1, 1]} : vector<8x17x16xf32> to vector<8x5x16xf32>
    %cst_16 = arith.constant dense<0.000000e+00> : vector<8x16xf32>
    %30 = vector.multi_reduction <add>, %29, %cst_16 [1] : vector<8x5x16xf32> to vector<8x16xf32>
    %31 = vector.extract_strided_slice %26 {offsets = [0, 6, 0], sizes = [8, 5, 16], strides = [1, 1, 1]} : vector<8x17x16xf32> to vector<8x5x16xf32>
    %cst_17 = arith.constant dense<0.000000e+00> : vector<8x16xf32>
    %32 = vector.multi_reduction <add>, %31, %cst_17 [1] : vector<8x5x16xf32> to vector<8x16xf32>
    %33 = vector.extract_strided_slice %26 {offsets = [0, 9, 0], sizes = [8, 5, 16], strides = [1, 1, 1]} : vector<8x17x16xf32> to vector<8x5x16xf32>
    %cst_18 = arith.constant dense<0.000000e+00> : vector<8x16xf32>
    %34 = vector.multi_reduction <add>, %33, %cst_18 [1] : vector<8x5x16xf32> to vector<8x16xf32>
    %35 = vector.extract_strided_slice %26 {offsets = [0, 12, 0], sizes = [8, 5, 16], strides = [1, 1, 1]} : vector<8x17x16xf32> to vector<8x5x16xf32>
    %cst_19 = arith.constant dense<0.000000e+00> : vector<8x16xf32>
    %36 = vector.multi_reduction <add>, %35, %cst_19 [1] : vector<8x5x16xf32> to vector<8x16xf32>
    %37 = vector.extract_strided_slice %0 {offsets = [0, 9, 0, 0], sizes = [8, 5, 17, 16], strides = [1, 1, 1, 1]} : vector<8x17x17x16xf32> to vector<8x5x17x16xf32>
    %cst_20 = arith.constant dense<0.000000e+00> : vector<8x17x16xf32>
    %38 = vector.multi_reduction <add>, %37, %cst_20 [1] : vector<8x5x17x16xf32> to vector<8x17x16xf32>
    %39 = vector.extract_strided_slice %38 {offsets = [0, 0, 0], sizes = [8, 5, 16], strides = [1, 1, 1]} : vector<8x17x16xf32> to vector<8x5x16xf32>
    %cst_21 = arith.constant dense<0.000000e+00> : vector<8x16xf32>
    %40 = vector.multi_reduction <add>, %39, %cst_21 [1] : vector<8x5x16xf32> to vector<8x16xf32>
    %41 = vector.extract_strided_slice %38 {offsets = [0, 3, 0], sizes = [8, 5, 16], strides = [1, 1, 1]} : vector<8x17x16xf32> to vector<8x5x16xf32>
    %cst_22 = arith.constant dense<0.000000e+00> : vector<8x16xf32>
    %42 = vector.multi_reduction <add>, %41, %cst_22 [1] : vector<8x5x16xf32> to vector<8x16xf32>
    %43 = vector.extract_strided_slice %38 {offsets = [0, 6, 0], sizes = [8, 5, 16], strides = [1, 1, 1]} : vector<8x17x16xf32> to vector<8x5x16xf32>
    %cst_23 = arith.constant dense<0.000000e+00> : vector<8x16xf32>
    %44 = vector.multi_reduction <add>, %43, %cst_23 [1] : vector<8x5x16xf32> to vector<8x16xf32>
    %45 = vector.extract_strided_slice %38 {offsets = [0, 9, 0], sizes = [8, 5, 16], strides = [1, 1, 1]} : vector<8x17x16xf32> to vector<8x5x16xf32>
    %cst_24 = arith.constant dense<0.000000e+00> : vector<8x16xf32>
    %46 = vector.multi_reduction <add>, %45, %cst_24 [1] : vector<8x5x16xf32> to vector<8x16xf32>
    %47 = vector.extract_strided_slice %38 {offsets = [0, 12, 0], sizes = [8, 5, 16], strides = [1, 1, 1]} : vector<8x17x16xf32> to vector<8x5x16xf32>
    %cst_25 = arith.constant dense<0.000000e+00> : vector<8x16xf32>
    %48 = vector.multi_reduction <add>, %47, %cst_25 [1] : vector<8x5x16xf32> to vector<8x16xf32>
    %49 = vector.extract_strided_slice %0 {offsets = [0, 12, 0, 0], sizes = [8, 5, 17, 16], strides = [1, 1, 1, 1]} : vector<8x17x17x16xf32> to vector<8x5x17x16xf32>
    %cst_26 = arith.constant dense<0.000000e+00> : vector<8x17x16xf32>
    %50 = vector.multi_reduction <add>, %49, %cst_26 [1] : vector<8x5x17x16xf32> to vector<8x17x16xf32>
    %51 = vector.extract_strided_slice %50 {offsets = [0, 0, 0], sizes = [8, 5, 16], strides = [1, 1, 1]} : vector<8x17x16xf32> to vector<8x5x16xf32>
    %cst_27 = arith.constant dense<0.000000e+00> : vector<8x16xf32>
    %52 = vector.multi_reduction <add>, %51, %cst_27 [1] : vector<8x5x16xf32> to vector<8x16xf32>
    %53 = vector.extract_strided_slice %50 {offsets = [0, 3, 0], sizes = [8, 5, 16], strides = [1, 1, 1]} : vector<8x17x16xf32> to vector<8x5x16xf32>
    %cst_28 = arith.constant dense<0.000000e+00> : vector<8x16xf32>
    %54 = vector.multi_reduction <add>, %53, %cst_28 [1] : vector<8x5x16xf32> to vector<8x16xf32>
    %55 = vector.extract_strided_slice %50 {offsets = [0, 6, 0], sizes = [8, 5, 16], strides = [1, 1, 1]} : vector<8x17x16xf32> to vector<8x5x16xf32>
    %cst_29 = arith.constant dense<0.000000e+00> : vector<8x16xf32>
    %56 = vector.multi_reduction <add>, %55, %cst_29 [1] : vector<8x5x16xf32> to vector<8x16xf32>
    %57 = vector.extract_strided_slice %50 {offsets = [0, 9, 0], sizes = [8, 5, 16], strides = [1, 1, 1]} : vector<8x17x16xf32> to vector<8x5x16xf32>
    %cst_30 = arith.constant dense<0.000000e+00> : vector<8x16xf32>
    %58 = vector.multi_reduction <add>, %57, %cst_30 [1] : vector<8x5x16xf32> to vector<8x16xf32>
    %59 = vector.extract_strided_slice %50 {offsets = [0, 12, 0], sizes = [8, 5, 16], strides = [1, 1, 1]} : vector<8x17x16xf32> to vector<8x5x16xf32>
    %cst_31 = arith.constant dense<0.000000e+00> : vector<8x16xf32>
    %60 = vector.multi_reduction <add>, %59, %cst_31 [1] : vector<8x5x16xf32> to vector<8x16xf32>
    %61 = tpu.concatenate %4, %6, %8, %10, %12, %16, %18, %20, %22, %24, %28, %30, %32, %34, %36, %40 in 0 : vector<8x16xf32>, vector<8x16xf32>, vector<8x16xf32>, vector<8x16xf32>, vector<8x16xf32>, vector<8x16xf32>, vector<8x16xf32>, vector<8x16xf32>, vector<8x16xf32>, vector<8x16xf32>, vector<8x16xf32>, vector<8x16xf32>, vector<8x16xf32>, vector<8x16xf32>, vector<8x16xf32>, vector<8x16xf32> -> vector<128x16xf32>
    %62 = tpu.concatenate %42, %44, %46, %48, %52, %54, %56, %58, %60 in 0 : vector<8x16xf32>, vector<8x16xf32>, vector<8x16xf32>, vector<8x16xf32>, vector<8x16xf32>, vector<8x16xf32>, vector<8x16xf32>, vector<8x16xf32>, vector<8x16xf32> -> vector<72x16xf32>
    %63 = tpu.concatenate %61, %62 in 0 : vector<128x16xf32>, vector<72x16xf32> -> vector<200x16xf32>
    %cst_32 = arith.constant 4.000000e-02 : f32
    %64 = vector.broadcast %cst_32 : f32 to vector<200x16xf32>
    %65 = arith.mulf %63, %64 : vector<200x16xf32>
    %c0_33 = arith.constant 0 : index
    %c0_34 = arith.constant 0 : index
    %66 = vector.load %arg2[%c0_33, %c0_34] : memref<16x128xf32, #tpu.memory_space<vmem>>, vector<16x128xf32>
    %cst_35 = arith.constant dense<0.000000e+00> : vector<200x128xf32>
    %67 = tpu.matmul %65, %66, %cst_35 {dimension_numbers = #tpu.dot_dimension_numbers<[1], [0], [0], [1], [0, 0, 1, 1], [], []>} : vector<200x16xf32>, vector<16x128xf32>, vector<200x128xf32> -> vector<200x128xf32>
    %c0_36 = arith.constant 0 : index
    %c0_37 = arith.constant 0 : index
    %68 = vector.load %arg3[%c0_36, %c0_37] : memref<1x128xf32, #tpu.memory_space<vmem>>, vector<1x128xf32>
    %69 = vector.broadcast %68 : vector<1x128xf32> to vector<200x128xf32>
    %70 = arith.addf %67, %69 : vector<200x128xf32>
    %cst_38 = arith.constant 0.000000e+00 : f32
    %71 = vector.broadcast %cst_38 : f32 to vector<200x128xf32>
    %72 = arith.maximumf %70, %71 : vector<200x128xf32>
    %73 = vector.extract_strided_slice %72 {offsets = [0, 0], sizes = [8, 128], strides = [1, 1]} : vector<200x128xf32> to vector<8x128xf32>
    %74 = vector.extract_strided_slice %72 {offsets = [8, 0], sizes = [8, 128], strides = [1, 1]} : vector<200x128xf32> to vector<8x128xf32>
    %75 = vector.extract_strided_slice %72 {offsets = [16, 0], sizes = [8, 128], strides = [1, 1]} : vector<200x128xf32> to vector<8x128xf32>
    %76 = vector.extract_strided_slice %72 {offsets = [24, 0], sizes = [8, 128], strides = [1, 1]} : vector<200x128xf32> to vector<8x128xf32>
    %77 = vector.extract_strided_slice %72 {offsets = [32, 0], sizes = [8, 128], strides = [1, 1]} : vector<200x128xf32> to vector<8x128xf32>
    %78 = vector.extract_strided_slice %72 {offsets = [40, 0], sizes = [8, 128], strides = [1, 1]} : vector<200x128xf32> to vector<8x128xf32>
    %79 = vector.extract_strided_slice %72 {offsets = [48, 0], sizes = [8, 128], strides = [1, 1]} : vector<200x128xf32> to vector<8x128xf32>
    %80 = vector.extract_strided_slice %72 {offsets = [56, 0], sizes = [8, 128], strides = [1, 1]} : vector<200x128xf32> to vector<8x128xf32>
    %81 = vector.extract_strided_slice %72 {offsets = [64, 0], sizes = [8, 128], strides = [1, 1]} : vector<200x128xf32> to vector<8x128xf32>
    %82 = vector.extract_strided_slice %72 {offsets = [72, 0], sizes = [8, 128], strides = [1, 1]} : vector<200x128xf32> to vector<8x128xf32>
    %83 = vector.extract_strided_slice %72 {offsets = [80, 0], sizes = [8, 128], strides = [1, 1]} : vector<200x128xf32> to vector<8x128xf32>
    %84 = vector.extract_strided_slice %72 {offsets = [88, 0], sizes = [8, 128], strides = [1, 1]} : vector<200x128xf32> to vector<8x128xf32>
    %85 = vector.extract_strided_slice %72 {offsets = [96, 0], sizes = [8, 128], strides = [1, 1]} : vector<200x128xf32> to vector<8x128xf32>
    %86 = vector.extract_strided_slice %72 {offsets = [104, 0], sizes = [8, 128], strides = [1, 1]} : vector<200x128xf32> to vector<8x128xf32>
    %87 = vector.extract_strided_slice %72 {offsets = [112, 0], sizes = [8, 128], strides = [1, 1]} : vector<200x128xf32> to vector<8x128xf32>
    %88 = vector.extract_strided_slice %72 {offsets = [120, 0], sizes = [8, 128], strides = [1, 1]} : vector<200x128xf32> to vector<8x128xf32>
    %89 = vector.extract_strided_slice %72 {offsets = [128, 0], sizes = [8, 128], strides = [1, 1]} : vector<200x128xf32> to vector<8x128xf32>
    %90 = vector.extract_strided_slice %72 {offsets = [136, 0], sizes = [8, 128], strides = [1, 1]} : vector<200x128xf32> to vector<8x128xf32>
    %91 = vector.extract_strided_slice %72 {offsets = [144, 0], sizes = [8, 128], strides = [1, 1]} : vector<200x128xf32> to vector<8x128xf32>
    %92 = vector.extract_strided_slice %72 {offsets = [152, 0], sizes = [8, 128], strides = [1, 1]} : vector<200x128xf32> to vector<8x128xf32>
    %93 = vector.extract_strided_slice %72 {offsets = [160, 0], sizes = [8, 128], strides = [1, 1]} : vector<200x128xf32> to vector<8x128xf32>
    %94 = vector.extract_strided_slice %72 {offsets = [168, 0], sizes = [8, 128], strides = [1, 1]} : vector<200x128xf32> to vector<8x128xf32>
    %95 = vector.extract_strided_slice %72 {offsets = [176, 0], sizes = [8, 128], strides = [1, 1]} : vector<200x128xf32> to vector<8x128xf32>
    %96 = vector.extract_strided_slice %72 {offsets = [184, 0], sizes = [8, 128], strides = [1, 1]} : vector<200x128xf32> to vector<8x128xf32>
    %97 = vector.extract_strided_slice %72 {offsets = [192, 0], sizes = [8, 128], strides = [1, 1]} : vector<200x128xf32> to vector<8x128xf32>
    %98 = tpu.concatenate %73, %74, %75, %76, %77, %78, %79, %80, %81, %82, %83, %84, %85, %86, %87, %88 in 1 : vector<8x128xf32>, vector<8x128xf32>, vector<8x128xf32>, vector<8x128xf32>, vector<8x128xf32>, vector<8x128xf32>, vector<8x128xf32>, vector<8x128xf32>, vector<8x128xf32>, vector<8x128xf32>, vector<8x128xf32>, vector<8x128xf32>, vector<8x128xf32>, vector<8x128xf32>, vector<8x128xf32>, vector<8x128xf32> -> vector<8x2048xf32>
    %99 = tpu.concatenate %89, %90, %91, %92, %93, %94, %95, %96, %97 in 1 : vector<8x128xf32>, vector<8x128xf32>, vector<8x128xf32>, vector<8x128xf32>, vector<8x128xf32>, vector<8x128xf32>, vector<8x128xf32>, vector<8x128xf32>, vector<8x128xf32> -> vector<8x1152xf32>
    %100 = tpu.concatenate %98, %99 in 1 : vector<8x2048xf32>, vector<8x1152xf32> -> vector<8x3200xf32>
    %101 = arith.truncf %100 : vector<8x3200xf32> to vector<8x3200xbf16>
    %c0_39 = arith.constant 0 : index
    %c0_40 = arith.constant 0 : index
    %102 = vector.load %arg4[%c0_39, %c0_40] : memref<8x3200xbf16, #tpu.memory_space<vmem>>, vector<8x3200xbf16>
    tpu.vector_store %arg4[%c0_39, %c0_40], %101 {strides = array<i32>} : memref<8x3200xbf16, #tpu.memory_space<vmem>>, vector<8x3200xbf16>,
    return
  }
  func.func @transform_0(%arg0: i32) -> (i32, i32, i32, i32) {
    %c0_i32 = arith.constant 0 : i32
    %c0_i32_0 = arith.constant 0 : i32
    %c0_i32_1 = arith.constant 0 : i32
    %c0_i32_2 = arith.constant 0 : i32
    %c0_i32_3 = arith.constant 0 : i32
    return %c0_i32, %c0_i32_0, %c0_i32_1, %c0_i32_2 : i32, i32, i32, i32
  }
  func.func @transform_1(%arg0: i32) -> (i32, i32) {
    %c0_i32 = arith.constant 0 : i32
    %c0_i32_0 = arith.constant 0 : i32
    %c0_i32_1 = arith.constant 0 : i32
    return %c0_i32, %c0_i32_0 : i32, i32
  }
  func.func @transform_2(%arg0: i32) -> (i32, i32) {
    %c0_i32 = arith.constant 0 : i32
    %c0_i32_0 = arith.constant 0 : i32
    %c0_i32_1 = arith.constant 0 : i32
    return %c0_i32, %c0_i32_0 : i32, i32
  }
  func.func @transform_3(%arg0: i32) -> (i32, i32) {
    %c0_i32 = arith.constant 0 : i32
    %c0_i32_0 = arith.constant 0 : i32
    %c0_i32_1 = arith.constant 0 : i32
    return %c0_i32, %c0_i32_0 : i32, i32
  }
}

</mosaic_0001>

<llo_original>
// kernel: tpu_custom_call.1
$region0: #{tpu_custom_call.1}
  #allocation0 [shape = 'u32[]', space=smem, size = 0x4, offset = 0x4, fixed_abs, tag = 'smem constant byte address 0x4 - core index']
  #allocation1 [shape = 'u32[144,128]{1,0:T(1,128)}', space=vmem, size = 0x12000, scoped, tag = 'internal scratch']
  %s0 = inlined_call_operand.vmem [shape: f32[8,17,17,16], index: 0, kind: input, shape index: {}]
  %s1 = inlined_call_operand.vmem [shape: f32[16,128], index: 1, kind: input, shape index: {}]
  %s2 = inlined_call_operand.vmem [shape: f32[1,128], index: 2, kind: input, shape index: {}]
  %s3 = inlined_call_operand.hbm [shape: bf16[8,3200], index: 3, kind: output, shape index: {}]
  %s4 = sld [smem:[#allocation0]]
  $region22: #{tpu_custom_call.1} parent=0
    _
  %s6 = ssub.s32 1, %s4
  %s7 = scalar_select 0, %s6, %s4
  $region1: #{tpu_custom_call.1} parent=0
    #allocation2 [shape = 'u8[51200]{0}', space=vmem, size = 0xc800, scoped, tag = 'output window, operand 0, single buffered']
    #allocation3 [shape = 's32[1]{0}', space=sflag, size = 0x4, scoped, tag = 'scoped memory for tpu_custom_call.1']
    %8 = vsyncpa [#allocation3], 0
    // Predicated region
    $region2: #{tpu_custom_call.1} parent=1 // pred_check
      _
    $region3: #{tpu_custom_call.1} parent=1 // pred_check_branch
      %10 = sbr.rel (0) target = $region5
    $region4: #{tpu_custom_call.1} parent=1 // pred_region
      _
    $region5: #{tpu_custom_call.1} parent=1 // pred_fallthru
      _
    // Predicated region
    $region6: #{tpu_custom_call.1} parent=1 // pred_check
      _
    $region7: #{tpu_custom_call.1} parent=1 // pred_check_branch
      %12 = sbr.rel (0) target = $region9
    $region8: #{tpu_custom_call.1} parent=1 // pred_region
      _
    $region9: #{tpu_custom_call.1} parent=1 // pred_fallthru
      _
    // Predicated region
    $region10: #{tpu_custom_call.1} parent=1 // pred_check
      _
    $region11: #{tpu_custom_call.1} parent=1 // pred_check_branch
      %14 = sbr.rel (0) target = $region13
    $region12: #{tpu_custom_call.1} parent=1 // pred_region
      _
    $region13: #{tpu_custom_call.1} parent=1 // pred_fallthru
      _
    %v15 = vld [vmem:[%s0] sm:$0xff]
    %v16 = vld [vmem:[%s0 + $0x8] sm:$0xff]
    %v17 = vld [vmem:[%s0 + $0x10] sm:$0x1]
    %v18 = vld [vmem:[%s0 + $0x18] sm:$0xff]
    %v19 = vld [vmem:[%s0 + $0x20] sm:$0xff]
    %v20 = vld [vmem:[%s0 + $0x28] sm:$0x1]
    %v21 = vld [vmem:[%s0 + $0x30] sm:$0xff]
    %v22 = vld [vmem:[%s0 + $0x38] sm:$0xff]
    %v23 = vld [vmem:[%s0 + $0x40] sm:$0x1]
    %v24 = vld [vmem:[%s0 + $0x48] sm:$0xff]
    %v25 = vld [vmem:[%s0 + $0x50] sm:$0xff]
    %v26 = vld [vmem:[%s0 + $0x58] sm:$0x1]
    %v27 = vld [vmem:[%s0 + $0x60] sm:$0xff]
    %v28 = vld [vmem:[%s0 + $0x68] sm:$0xff]
    %v29 = vld [vmem:[%s0 + $0x70] sm:$0x1]
    %v30 = vld [vmem:[%s0 + $0x78] sm:$0xff]
    %v31 = vld [vmem:[%s0 + $0x80] sm:$0xff]
    %v32 = vld [vmem:[%s0 + $0x88] sm:$0x1]
    %v33 = vld [vmem:[%s0 + $0x90] sm:$0xff]
    %v34 = vld [vmem:[%s0 + $0x98] sm:$0xff]
    %v35 = vld [vmem:[%s0 + $0xa0] sm:$0x1]
    %v36 = vld [vmem:[%s0 + $0xa8] sm:$0xff]
    %v37 = vld [vmem:[%s0 + $0xb0] sm:$0xff]
    %v38 = vld [vmem:[%s0 + $0xb8] sm:$0x1]
    %v39 = vld [vmem:[%s0 + $0xc0] sm:$0xff]
    %v40 = vld [vmem:[%s0 + $0xc8] sm:$0xff]
    %v41 = vld [vmem:[%s0 + $0xd0] sm:$0x1]
    %v42 = vld [vmem:[%s0 + $0xd8] sm:$0xff]
    %v43 = vld [vmem:[%s0 + $0xe0] sm:$0xff]
    %v44 = vld [vmem:[%s0 + $0xe8] sm:$0x1]
    %v45 = vld [vmem:[%s0 + $0xf0] sm:$0xff]
    %v46 = vld [vmem:[%s0 + $0xf8] sm:$0xff]
    %v47 = vld [vmem:[%s0 + $0x100] sm:$0x1]
    %v48 = vld [vmem:[%s0 + $0x108] sm:$0xff]
    %v49 = vld [vmem:[%s0 + $0x110] sm:$0xff]
    %v50 = vld [vmem:[%s0 + $0x118] sm:$0x1]
    %v51 = vld [vmem:[%s0 + $0x120] sm:$0xff]
    %v52 = vld [vmem:[%s0 + $0x128] sm:$0xff]
    %v53 = vld [vmem:[%s0 + $0x130] sm:$0x1]
    %v54 = vld [vmem:[%s0 + $0x138] sm:$0xff]
    %v55 = vld [vmem:[%s0 + $0x140] sm:$0xff]
    %v56 = vld [vmem:[%s0 + $0x148] sm:$0x1]
    %v57 = vld [vmem:[%s0 + $0x150] sm:$0xff]
    %v58 = vld [vmem:[%s0 + $0x158] sm:$0xff]
    %v59 = vld [vmem:[%s0 + $0x160] sm:$0x1]
    %v60 = vld [vmem:[%s0 + $0x168] sm:$0xff]
    %v61 = vld [vmem:[%s0 + $0x170] sm:$0xff]
    %v62 = vld [vmem:[%s0 + $0x178] sm:$0x1]
    %v63 = vld [vmem:[%s0 + $0x180] sm:$0xff]
    %v64 = vld [vmem:[%s0 + $0x188] sm:$0xff]
    %v65 = vld [vmem:[%s0 + $0x190] sm:$0x1]
    %v66 = vld [vmem:[%s0 + $0x198] sm:$0xff]
    %v67 = vld [vmem:[%s0 + $0x1a0] sm:$0xff]
    %v68 = vld [vmem:[%s0 + $0x1a8] sm:$0x1]
    %v69 = vld [vmem:[%s0 + $0x1b0] sm:$0xff]
    %v70 = vld [vmem:[%s0 + $0x1b8] sm:$0xff]
    %v71 = vld [vmem:[%s0 + $0x1c0] sm:$0x1]
    %v72 = vld [vmem:[%s0 + $0x1c8] sm:$0xff]
    %v73 = vld [vmem:[%s0 + $0x1d0] sm:$0xff]
    %v74 = vld [vmem:[%s0 + $0x1d8] sm:$0x1]
    %v75 = vld [vmem:[%s0 + $0x1e0] sm:$0xff]
    %v76 = vld [vmem:[%s0 + $0x1e8] sm:$0xff]
    %v77 = vld [vmem:[%s0 + $0x1f0] sm:$0x1]
    %v78 = vld [vmem:[%s0 + $0x1f8] sm:$0xff]
    %v79 = vld [vmem:[%s0 + $0x200] sm:$0xff]
    %v80 = vld [vmem:[%s0 + $0x208] sm:$0x1]
    %v81 = vld [vmem:[%s0 + $0x210] sm:$0xff]
    %v82 = vld [vmem:[%s0 + $0x218] sm:$0xff]
    %v83 = vld [vmem:[%s0 + $0x220] sm:$0x1]
    %v84 = vld [vmem:[%s0 + $0x228] sm:$0xff]
    %v85 = vld [vmem:[%s0 + $0x230] sm:$0xff]
    %v86 = vld [vmem:[%s0 + $0x238] sm:$0x1]
    %v87 = vld [vmem:[%s0 + $0x240] sm:$0xff]
    %v88 = vld [vmem:[%s0 + $0x248] sm:$0xff]
    %v89 = vld [vmem:[%s0 + $0x250] sm:$0x1]
    %v90 = vld [vmem:[%s0 + $0x258] sm:$0xff]
    %v91 = vld [vmem:[%s0 + $0x260] sm:$0xff]
    %v92 = vld [vmem:[%s0 + $0x268] sm:$0x1]
    %v93 = vld [vmem:[%s0 + $0x270] sm:$0xff]
    %v94 = vld [vmem:[%s0 + $0x278] sm:$0xff]
    %v95 = vld [vmem:[%s0 + $0x280] sm:$0x1]
    %v96 = vld [vmem:[%s0 + $0x288] sm:$0xff]
    %v97 = vld [vmem:[%s0 + $0x290] sm:$0xff]
    %v98 = vld [vmem:[%s0 + $0x298] sm:$0x1]
    %v99 = vld [vmem:[%s0 + $0x2a0] sm:$0xff]
    %v100 = vld [vmem:[%s0 + $0x2a8] sm:$0xff]
    %v101 = vld [vmem:[%s0 + $0x2b0] sm:$0x1]
    %v102 = vld [vmem:[%s0 + $0x2b8] sm:$0xff]
    %v103 = vld [vmem:[%s0 + $0x2c0] sm:$0xff]
    %v104 = vld [vmem:[%s0 + $0x2c8] sm:$0x1]
    %v105 = vld [vmem:[%s0 + $0x2d0] sm:$0xff]
    %v106 = vld [vmem:[%s0 + $0x2d8] sm:$0xff]
    %v107 = vld [vmem:[%s0 + $0x2e0] sm:$0x1]
    %v108 = vld [vmem:[%s0 + $0x2e8] sm:$0xff]
    %v109 = vld [vmem:[%s0 + $0x2f0] sm:$0xff]
    %v110 = vld [vmem:[%s0 + $0x2f8] sm:$0x1]
    %v111 = vld [vmem:[%s0 + $0x300] sm:$0xff]
    %v112 = vld [vmem:[%s0 + $0x308] sm:$0xff]
    %v113 = vld [vmem:[%s0 + $0x310] sm:$0x1]
    %v114 = vld [vmem:[%s0 + $0x318] sm:$0xff]
    %v115 = vld [vmem:[%s0 + $0x320] sm:$0xff]
    %v116 = vld [vmem:[%s0 + $0x328] sm:$0x1]
    %v117 = vld [vmem:[%s0 + $0x330] sm:$0xff]
    %v118 = vld [vmem:[%s0 + $0x338] sm:$0xff]
    %v119 = vld [vmem:[%s0 + $0x340] sm:$0x1]
    %v120 = vld [vmem:[%s0 + $0x348] sm:$0xff]
    %v121 = vld [vmem:[%s0 + $0x350] sm:$0xff]
    %v122 = vld [vmem:[%s0 + $0x358] sm:$0x1]
    %v123 = vld [vmem:[%s0 + $0x360] sm:$0xff]
    %v124 = vld [vmem:[%s0 + $0x368] sm:$0xff]
    %v125 = vld [vmem:[%s0 + $0x370] sm:$0x1]
    %v126 = vld [vmem:[%s0 + $0x378] sm:$0xff]
    %v127 = vld [vmem:[%s0 + $0x380] sm:$0xff]
    %v128 = vld [vmem:[%s0 + $0x388] sm:$0x1]
    %v129 = vld [vmem:[%s0 + $0x390] sm:$0xff]
    %v130 = vld [vmem:[%s0 + $0x398] sm:$0xff]
    %v131 = vld [vmem:[%s0 + $0x3a0] sm:$0x1]
    %v132 = vld [vmem:[%s0 + $0x3a8] sm:$0xff]
    %v133 = vld [vmem:[%s0 + $0x3b0] sm:$0xff]
    %v134 = vld [vmem:[%s0 + $0x3b8] sm:$0x1]
    %v135 = vld [vmem:[%s0 + $0x3c0] sm:$0xff]
    %v136 = vld [vmem:[%s0 + $0x3c8] sm:$0xff]
    %v137 = vld [vmem:[%s0 + $0x3d0] sm:$0x1]
    %v138 = vld [vmem:[%s0 + $0x3d8] sm:$0xff]
    %v139 = vld [vmem:[%s0 + $0x3e0] sm:$0xff]
    %v140 = vld [vmem:[%s0 + $0x3e8] sm:$0x1]
    %v141 = vld [vmem:[%s0 + $0x3f0] sm:$0xff]
    %v142 = vld [vmem:[%s0 + $0x3f8] sm:$0xff]
    %v143 = vld [vmem:[%s0 + $0x400] sm:$0x1]
    %v144 = vld [vmem:[%s0 + $0x408] sm:$0xff]
    %v145 = vld [vmem:[%s0 + $0x410] sm:$0xff]
    %v146 = vld [vmem:[%s0 + $0x418] sm:$0x1]
    %v147 = vld [vmem:[%s0 + $0x420] sm:$0xff]
    %v148 = vld [vmem:[%s0 + $0x428] sm:$0xff]
    %v149 = vld [vmem:[%s0 + $0x430] sm:$0x1]
    %v150 = vld [vmem:[%s0 + $0x438] sm:$0xff]
    %v151 = vld [vmem:[%s0 + $0x440] sm:$0xff]
    %v152 = vld [vmem:[%s0 + $0x448] sm:$0x1]
    %v153 = vld [vmem:[%s0 + $0x450] sm:$0xff]
    %v154 = vld [vmem:[%s0 + $0x458] sm:$0xff]
    %v155 = vld [vmem:[%s0 + $0x460] sm:$0x1]
    %v156 = vld [vmem:[%s0 + $0x468] sm:$0xff]
    %v157 = vld [vmem:[%s0 + $0x470] sm:$0xff]
    %v158 = vld [vmem:[%s0 + $0x478] sm:$0x1]
    %v159 = vld [vmem:[%s0 + $0x480] sm:$0xff]
    %v160 = vld [vmem:[%s0 + $0x488] sm:$0xff]
    %v161 = vld [vmem:[%s0 + $0x490] sm:$0x1]
    %v162 = vld [vmem:[%s0 + $0x498] sm:$0xff]
    %v163 = vld [vmem:[%s0 + $0x4a0] sm:$0xff]
    %v164 = vld [vmem:[%s0 + $0x4a8] sm:$0x1]
    %v165 = vld [vmem:[%s0 + $0x4b0] sm:$0xff]
    %v166 = vld [vmem:[%s0 + $0x4b8] sm:$0xff]
    %v167 = vld [vmem:[%s0 + $0x4c0] sm:$0x1]
    %v168 = vld [vmem:[%s0 + $0x4c8] sm:$0xff]
    %v169 = vld [vmem:[%s0 + $0x4d0] sm:$0xff]
    %v170 = vld [vmem:[%s0 + $0x4d8] sm:$0x1]
    %v171 = vld [vmem:[%s0 + $0x4e0] sm:$0xff]
    %v172 = vld [vmem:[%s0 + $0x4e8] sm:$0xff]
    %v173 = vld [vmem:[%s0 + $0x4f0] sm:$0x1]
    %v174 = vld [vmem:[%s0 + $0x4f8] sm:$0xff]
    %v175 = vld [vmem:[%s0 + $0x500] sm:$0xff]
    %v176 = vld [vmem:[%s0 + $0x508] sm:$0x1]
    %v177 = vld [vmem:[%s0 + $0x510] sm:$0xff]
    %v178 = vld [vmem:[%s0 + $0x518] sm:$0xff]
    %v179 = vld [vmem:[%s0 + $0x520] sm:$0x1]
    %v180 = vld [vmem:[%s0 + $0x528] sm:$0xff]
    %v181 = vld [vmem:[%s0 + $0x530] sm:$0xff]
    %v182 = vld [vmem:[%s0 + $0x538] sm:$0x1]
    %v183 = vld [vmem:[%s0 + $0x540] sm:$0xff]
    %v184 = vld [vmem:[%s0 + $0x548] sm:$0xff]
    %v185 = vld [vmem:[%s0 + $0x550] sm:$0x1]
    %v186 = vld [vmem:[%s0 + $0x558] sm:$0xff]
    %v187 = vld [vmem:[%s0 + $0x560] sm:$0xff]
    %v188 = vld [vmem:[%s0 + $0x568] sm:$0x1]
    %v189 = vld [vmem:[%s0 + $0x570] sm:$0xff]
    %v190 = vld [vmem:[%s0 + $0x578] sm:$0xff]
    %v191 = vld [vmem:[%s0 + $0x580] sm:$0x1]
    %v192 = vld [vmem:[%s0 + $0x588] sm:$0xff]
    %v193 = vld [vmem:[%s0 + $0x590] sm:$0xff]
    %v194 = vld [vmem:[%s0 + $0x598] sm:$0x1]
    %v195 = vld [vmem:[%s0 + $0x5a0] sm:$0xff]
    %v196 = vld [vmem:[%s0 + $0x5a8] sm:$0xff]
    %v197 = vld [vmem:[%s0 + $0x5b0] sm:$0x1]
    %v198 = vld [vmem:[%s0 + $0x5b8] sm:$0xff]
    %v199 = vld [vmem:[%s0 + $0x5c0] sm:$0xff]
    %v200 = vld [vmem:[%s0 + $0x5c8] sm:$0x1]
    %v201 = vld [vmem:[%s0 + $0x5d0] sm:$0xff]
    %v202 = vld [vmem:[%s0 + $0x5d8] sm:$0xff]
    %v203 = vld [vmem:[%s0 + $0x5e0] sm:$0x1]
    %v204 = vld [vmem:[%s0 + $0x5e8] sm:$0xff]
    %v205 = vld [vmem:[%s0 + $0x5f0] sm:$0xff]
    %v206 = vld [vmem:[%s0 + $0x5f8] sm:$0x1]
    %v207 = vld [vmem:[%s0 + $0x600] sm:$0xff]
    %v208 = vld [vmem:[%s0 + $0x608] sm:$0xff]
    %v209 = vld [vmem:[%s0 + $0x610] sm:$0x1]
    %v210 = vld [vmem:[%s0 + $0x618] sm:$0xff]
    %v211 = vld [vmem:[%s0 + $0x620] sm:$0xff]
    %v212 = vld [vmem:[%s0 + $0x628] sm:$0x1]
    %v213 = vld [vmem:[%s0 + $0x630] sm:$0xff]
    %v214 = vld [vmem:[%s0 + $0x638] sm:$0xff]
    %v215 = vld [vmem:[%s0 + $0x640] sm:$0x1]
    %v216 = vld [vmem:[%s0 + $0x648] sm:$0xff]
    %v217 = vld [vmem:[%s0 + $0x650] sm:$0xff]
    %v218 = vld [vmem:[%s0 + $0x658] sm:$0x1]
    %v219 = vld [vmem:[%s0 + $0x660] sm:$0xff]
    %v220 = vld [vmem:[%s0 + $0x668] sm:$0xff]
    %v221 = vld [vmem:[%s0 + $0x670] sm:$0x1]
    %v222 = vld [vmem:[%s0 + $0x678] sm:$0xff]
    %v223 = vld [vmem:[%s0 + $0x680] sm:$0xff]
    %v224 = vld [vmem:[%s0 + $0x688] sm:$0x1]
    %v225 = vld [vmem:[%s0 + $0x690] sm:$0xff]
    %v226 = vld [vmem:[%s0 + $0x698] sm:$0xff]
    %v227 = vld [vmem:[%s0 + $0x6a0] sm:$0x1]
    %v228 = vld [vmem:[%s0 + $0x6a8] sm:$0xff]
    %v229 = vld [vmem:[%s0 + $0x6b0] sm:$0xff]
    %v230 = vld [vmem:[%s0 + $0x6b8] sm:$0x1]
    %v231 = vld [vmem:[%s0 + $0x6c0] sm:$0xff]
    %v232 = vld [vmem:[%s0 + $0x6c8] sm:$0xff]
    %v233 = vld [vmem:[%s0 + $0x6d0] sm:$0x1]
    %v234 = vld [vmem:[%s0 + $0x6d8] sm:$0xff]
    %v235 = vld [vmem:[%s0 + $0x6e0] sm:$0xff]
    %v236 = vld [vmem:[%s0 + $0x6e8] sm:$0x1]
    %v237 = vld [vmem:[%s0 + $0x6f0] sm:$0xff]
    %v238 = vld [vmem:[%s0 + $0x6f8] sm:$0xff]
    %v239 = vld [vmem:[%s0 + $0x700] sm:$0x1]
    %v240 = vld [vmem:[%s0 + $0x708] sm:$0xff]
    %v241 = vld [vmem:[%s0 + $0x710] sm:$0xff]
    %v242 = vld [vmem:[%s0 + $0x718] sm:$0x1]
    %v243 = vld [vmem:[%s0 + $0x720] sm:$0xff]
    %v244 = vld [vmem:[%s0 + $0x728] sm:$0xff]
    %v245 = vld [vmem:[%s0 + $0x730] sm:$0x1]
    %v246 = vld [vmem:[%s0 + $0x738] sm:$0xff]
    %v247 = vld [vmem:[%s0 + $0x740] sm:$0xff]
    %v248 = vld [vmem:[%s0 + $0x748] sm:$0x1]
    %v249 = vld [vmem:[%s0 + $0x750] sm:$0xff]
    %v250 = vld [vmem:[%s0 + $0x758] sm:$0xff]
    %v251 = vld [vmem:[%s0 + $0x760] sm:$0x1]
    %v252 = vld [vmem:[%s0 + $0x768] sm:$0xff]
    %v253 = vld [vmem:[%s0 + $0x770] sm:$0xff]
    %v254 = vld [vmem:[%s0 + $0x778] sm:$0x1]
    %v255 = vld [vmem:[%s0 + $0x780] sm:$0xff]
    %v256 = vld [vmem:[%s0 + $0x788] sm:$0xff]
    %v257 = vld [vmem:[%s0 + $0x790] sm:$0x1]
    %v258 = vld [vmem:[%s0 + $0x798] sm:$0xff]
    %v259 = vld [vmem:[%s0 + $0x7a0] sm:$0xff]
    %v260 = vld [vmem:[%s0 + $0x7a8] sm:$0x1]
    %v261 = vld [vmem:[%s0 + $0x7b0] sm:$0xff]
    %v262 = vld [vmem:[%s0 + $0x7b8] sm:$0xff]
    %v263 = vld [vmem:[%s0 + $0x7c0] sm:$0x1]
    %v264 = vld [vmem:[%s0 + $0x7c8] sm:$0xff]
    %v265 = vld [vmem:[%s0 + $0x7d0] sm:$0xff]
    %v266 = vld [vmem:[%s0 + $0x7d8] sm:$0x1]
    %v267 = vld [vmem:[%s0 + $0x7e0] sm:$0xff]
    %v268 = vld [vmem:[%s0 + $0x7e8] sm:$0xff]
    %v269 = vld [vmem:[%s0 + $0x7f0] sm:$0x1]
    %v270 = vld [vmem:[%s0 + $0x7f8] sm:$0xff]
    %v271 = vld [vmem:[%s0 + $0x800] sm:$0xff]
    %v272 = vld [vmem:[%s0 + $0x808] sm:$0x1]
    %v273 = vld [vmem:[%s0 + $0x810] sm:$0xff]
    %v274 = vld [vmem:[%s0 + $0x818] sm:$0xff]
    %v275 = vld [vmem:[%s0 + $0x820] sm:$0x1]
    %v276 = vld [vmem:[%s0 + $0x828] sm:$0xff]
    %v277 = vld [vmem:[%s0 + $0x830] sm:$0xff]
    %v278 = vld [vmem:[%s0 + $0x838] sm:$0x1]
    %v279 = vld [vmem:[%s0 + $0x840] sm:$0xff]
    %v280 = vld [vmem:[%s0 + $0x848] sm:$0xff]
    %v281 = vld [vmem:[%s0 + $0x850] sm:$0x1]
    %v282 = vld [vmem:[%s0 + $0x858] sm:$0xff]
    %v283 = vld [vmem:[%s0 + $0x860] sm:$0xff]
    %v284 = vld [vmem:[%s0 + $0x868] sm:$0x1]
    %v285 = vld [vmem:[%s0 + $0x870] sm:$0xff]
    %v286 = vld [vmem:[%s0 + $0x878] sm:$0xff]
    %v287 = vld [vmem:[%s0 + $0x880] sm:$0x1]
    %v288 = vld [vmem:[%s0 + $0x888] sm:$0xff]
    %v289 = vld [vmem:[%s0 + $0x890] sm:$0xff]
    %v290 = vld [vmem:[%s0 + $0x898] sm:$0x1]
    %v291 = vld [vmem:[%s0 + $0x8a0] sm:$0xff]
    %v292 = vld [vmem:[%s0 + $0x8a8] sm:$0xff]
    %v293 = vld [vmem:[%s0 + $0x8b0] sm:$0x1]
    %v294 = vld [vmem:[%s0 + $0x8b8] sm:$0xff]
    %v295 = vld [vmem:[%s0 + $0x8c0] sm:$0xff]
    %v296 = vld [vmem:[%s0 + $0x8c8] sm:$0x1]
    %v297 = vld [vmem:[%s0 + $0x8d0] sm:$0xff]
    %v298 = vld [vmem:[%s0 + $0x8d8] sm:$0xff]
    %v299 = vld [vmem:[%s0 + $0x8e0] sm:$0x1]
    %v300 = vld [vmem:[%s0 + $0x8e8] sm:$0xff]
    %v301 = vld [vmem:[%s0 + $0x8f0] sm:$0xff]
    %v302 = vld [vmem:[%s0 + $0x8f8] sm:$0x1]
    %v303 = vld [vmem:[%s0 + $0x900] sm:$0xff]
    %v304 = vld [vmem:[%s0 + $0x908] sm:$0xff]
    %v305 = vld [vmem:[%s0 + $0x910] sm:$0x1]
    %v306 = vld [vmem:[%s0 + $0x918] sm:$0xff]
    %v307 = vld [vmem:[%s0 + $0x920] sm:$0xff]
    %v308 = vld [vmem:[%s0 + $0x928] sm:$0x1]
    %v309 = vld [vmem:[%s0 + $0x930] sm:$0xff]
    %v310 = vld [vmem:[%s0 + $0x938] sm:$0xff]
    %v311 = vld [vmem:[%s0 + $0x940] sm:$0x1]
    %v312 = vld [vmem:[%s0 + $0x948] sm:$0xff]
    %v313 = vld [vmem:[%s0 + $0x950] sm:$0xff]
    %v314 = vld [vmem:[%s0 + $0x958] sm:$0x1]
    %v315 = vld [vmem:[%s0 + $0x960] sm:$0xff]
    %v316 = vld [vmem:[%s0 + $0x968] sm:$0xff]
    %v317 = vld [vmem:[%s0 + $0x970] sm:$0x1]
    %v318 = vld [vmem:[%s0 + $0x978] sm:$0xff]
    %v319 = vld [vmem:[%s0 + $0x980] sm:$0xff]
    %v320 = vld [vmem:[%s0 + $0x988] sm:$0x1]
    %v321 = vld [vmem:[%s0 + $0x990] sm:$0xff]
    %v322 = vld [vmem:[%s0 + $0x998] sm:$0xff]
    %v323 = vld [vmem:[%s0 + $0x9a0] sm:$0x1]
    %v324 = vld [vmem:[%s0 + $0x9a8] sm:$0xff]
    %v325 = vld [vmem:[%s0 + $0x9b0] sm:$0xff]
    %v326 = vld [vmem:[%s0 + $0x9b8] sm:$0x1]
    %v327 = vld [vmem:[%s0 + $0x9c0] sm:$0xff]
    %v328 = vld [vmem:[%s0 + $0x9c8] sm:$0xff]
    %v329 = vld [vmem:[%s0 + $0x9d0] sm:$0x1]
    %v330 = vld [vmem:[%s0 + $0x9d8] sm:$0xff]
    %v331 = vld [vmem:[%s0 + $0x9e0] sm:$0xff]
    %v332 = vld [vmem:[%s0 + $0x9e8] sm:$0x1]
    %v333 = vld [vmem:[%s0 + $0x9f0] sm:$0xff]
    %v334 = vld [vmem:[%s0 + $0x9f8] sm:$0xff]
    %v335 = vld [vmem:[%s0 + $0xa00] sm:$0x1]
    %v336 = vld [vmem:[%s0 + $0xa08] sm:$0xff]
    %v337 = vld [vmem:[%s0 + $0xa10] sm:$0xff]
    %v338 = vld [vmem:[%s0 + $0xa18] sm:$0x1]
    %v339 = vld [vmem:[%s0 + $0xa20] sm:$0xff]
    %v340 = vld [vmem:[%s0 + $0xa28] sm:$0xff]
    %v341 = vld [vmem:[%s0 + $0xa30] sm:$0x1]
    %v342 = vld [vmem:[%s0 + $0xa38] sm:$0xff]
    %v343 = vld [vmem:[%s0 + $0xa40] sm:$0xff]
    %v344 = vld [vmem:[%s0 + $0xa48] sm:$0x1]
    %v345 = vld [vmem:[%s0 + $0xa50] sm:$0xff]
    %v346 = vld [vmem:[%s0 + $0xa58] sm:$0xff]
    %v347 = vld [vmem:[%s0 + $0xa60] sm:$0x1]
    %v348 = vld [vmem:[%s0 + $0xa68] sm:$0xff]
    %v349 = vld [vmem:[%s0 + $0xa70] sm:$0xff]
    %v350 = vld [vmem:[%s0 + $0xa78] sm:$0x1]
    %v351 = vld [vmem:[%s0 + $0xa80] sm:$0xff]
    %v352 = vld [vmem:[%s0 + $0xa88] sm:$0xff]
    %v353 = vld [vmem:[%s0 + $0xa90] sm:$0x1]
    %v354 = vld [vmem:[%s0 + $0xa98] sm:$0xff]
    %v355 = vld [vmem:[%s0 + $0xaa0] sm:$0xff]
    %v356 = vld [vmem:[%s0 + $0xaa8] sm:$0x1]
    %v357 = vld [vmem:[%s0 + $0xab0] sm:$0xff]
    %v358 = vld [vmem:[%s0 + $0xab8] sm:$0xff]
    %v359 = vld [vmem:[%s0 + $0xac0] sm:$0x1]
    %v360 = vld [vmem:[%s0 + $0xac8] sm:$0xff]
    %v361 = vld [vmem:[%s0 + $0xad0] sm:$0xff]
    %v362 = vld [vmem:[%s0 + $0xad8] sm:$0x1]
    %v363 = vld [vmem:[%s0 + $0xae0] sm:$0xff]
    %v364 = vld [vmem:[%s0 + $0xae8] sm:$0xff]
    %v365 = vld [vmem:[%s0 + $0xaf0] sm:$0x1]
    %v366 = vld [vmem:[%s0 + $0xaf8] sm:$0xff]
    %v367 = vld [vmem:[%s0 + $0xb00] sm:$0xff]
    %v368 = vld [vmem:[%s0 + $0xb08] sm:$0x1]
    %v369 = vld [vmem:[%s0 + $0xb10] sm:$0xff]
    %v370 = vld [vmem:[%s0 + $0xb18] sm:$0xff]
    %v371 = vld [vmem:[%s0 + $0xb20] sm:$0x1]
    %v372 = vld [vmem:[%s0 + $0xb28] sm:$0xff]
    %v373 = vld [vmem:[%s0 + $0xb30] sm:$0xff]
    %v374 = vld [vmem:[%s0 + $0xb38] sm:$0x1]
    %v375 = vld [vmem:[%s0 + $0xb40] sm:$0xff]
    %v376 = vld [vmem:[%s0 + $0xb48] sm:$0xff]
    %v377 = vld [vmem:[%s0 + $0xb50] sm:$0x1]
    %v378 = vld [vmem:[%s0 + $0xb58] sm:$0xff]
    %v379 = vld [vmem:[%s0 + $0xb60] sm:$0xff]
    %v380 = vld [vmem:[%s0 + $0xb68] sm:$0x1]
    %v381 = vld [vmem:[%s0 + $0xb70] sm:$0xff]
    %v382 = vld [vmem:[%s0 + $0xb78] sm:$0xff]
    %v383 = vld [vmem:[%s0 + $0xb80] sm:$0x1]
    %v384 = vld [vmem:[%s0 + $0xb88] sm:$0xff]
    %v385 = vld [vmem:[%s0 + $0xb90] sm:$0xff]
    %v386 = vld [vmem:[%s0 + $0xb98] sm:$0x1]
    %v387 = vld [vmem:[%s0 + $0xba0] sm:$0xff]
    %v388 = vld [vmem:[%s0 + $0xba8] sm:$0xff]
    %v389 = vld [vmem:[%s0 + $0xbb0] sm:$0x1]
    %v390 = vld [vmem:[%s0 + $0xbb8] sm:$0xff]
    %v391 = vld [vmem:[%s0 + $0xbc0] sm:$0xff]
    %v392 = vld [vmem:[%s0 + $0xbc8] sm:$0x1]
    %v393 = vld [vmem:[%s0 + $0xbd0] sm:$0xff]
    %v394 = vld [vmem:[%s0 + $0xbd8] sm:$0xff]
    %v395 = vld [vmem:[%s0 + $0xbe0] sm:$0x1]
    %v396 = vld [vmem:[%s0 + $0xbe8] sm:$0xff]
    %v397 = vld [vmem:[%s0 + $0xbf0] sm:$0xff]
    %v398 = vld [vmem:[%s0 + $0xbf8] sm:$0x1]
    %v399 = vld [vmem:[%s0 + $0xc00] sm:$0xff]
    %v400 = vld [vmem:[%s0 + $0xc08] sm:$0xff]
    %v401 = vld [vmem:[%s0 + $0xc10] sm:$0x1]
    %v402 = vld [vmem:[%s0 + $0xc18] sm:$0xff]
    %v403 = vld [vmem:[%s0 + $0xc20] sm:$0xff]
    %v404 = vld [vmem:[%s0 + $0xc28] sm:$0x1]
    %v405 = vld [vmem:[%s0 + $0xc30] sm:$0xff]
    %v406 = vld [vmem:[%s0 + $0xc38] sm:$0xff]
    %v407 = vld [vmem:[%s0 + $0xc40] sm:$0x1]
    %v408 = vld [vmem:[%s0 + $0xc48] sm:$0xff]
    %v409 = vld [vmem:[%s0 + $0xc50] sm:$0xff]
    %v410 = vld [vmem:[%s0 + $0xc58] sm:$0x1]
    %v411 = vld [vmem:[%s0 + $0xc60] sm:$0xff]
    %v412 = vld [vmem:[%s0 + $0xc68] sm:$0xff]
    %v413 = vld [vmem:[%s0 + $0xc70] sm:$0x1]
    %v414 = vld [vmem:[%s0 + $0xc78] sm:$0xff]
    %v415 = vld [vmem:[%s0 + $0xc80] sm:$0xff]
    %v416 = vld [vmem:[%s0 + $0xc88] sm:$0x1]
    %v417 = vld [vmem:[%s0 + $0xc90] sm:$0xff]
    %v418 = vld [vmem:[%s0 + $0xc98] sm:$0xff]
    %v419 = vld [vmem:[%s0 + $0xca0] sm:$0x1]
    %v420 = vld [vmem:[%s0 + $0xca8] sm:$0xff]
    %v421 = vld [vmem:[%s0 + $0xcb0] sm:$0xff]
    %v422 = vld [vmem:[%s0 + $0xcb8] sm:$0x1]
    %vm423 = vcmask 130048
    %v424 = vsel %vm423, %v15, 0.0
    %v425 = vsel %vm423, %v18, 0.0
    %v426 = vadd.f32 %v424, %v425
    %v427 = vsel %vm423, %v21, 0.0
    %v428 = vadd.f32 %v426, %v427
    %v429 = vsel %vm423, %v24, 0.0
    %v430 = vadd.f32 %v428, %v429
    %v431 = vsel %vm423, %v27, 0.0
    %v432 = vadd.f32 %v430, %v431
    %v433 = vsel %vm423, %v16, 0.0
    %v434 = vsel %vm423, %v19, 0.0
    %v435 = vadd.f32 %v433, %v434
    %v436 = vsel %vm423, %v22, 0.0
    %v437 = vadd.f32 %v435, %v436
    %v438 = vsel %vm423, %v25, 0.0
    %v439 = vadd.f32 %v437, %v438
    %v440 = vsel %vm423, %v28, 0.0
    %v441 = vadd.f32 %v439, %v440
    %vm442 = vcmask 122880
    %v443 = vsel %vm442, %v17, 0.0
    %v444 = vsel %vm442, %v20, 0.0
    %v445 = vadd.f32 %v443, %v444
    %v446 = vsel %vm442, %v23, 0.0
    %v447 = vadd.f32 %v445, %v446
    %v448 = vsel %vm442, %v26, 0.0
    %v449 = vadd.f32 %v447, %v448
    %v450 = vsel %vm442, %v29, 0.0
    %v451 = vadd.f32 %v449, %v450
    %v452 = vsel %vm423, %v66, 0.0
    %v453 = vsel %vm423, %v69, 0.0
    %v454 = vadd.f32 %v452, %v453
    %v455 = vsel %vm423, %v72, 0.0
    %v456 = vadd.f32 %v454, %v455
    %v457 = vsel %vm423, %v75, 0.0
    %v458 = vadd.f32 %v456, %v457
    %v459 = vsel %vm423, %v78, 0.0
    %v460 = vadd.f32 %v458, %v459
    %v461 = vsel %vm423, %v67, 0.0
    %v462 = vsel %vm423, %v70, 0.0
    %v463 = vadd.f32 %v461, %v462
    %v464 = vsel %vm423, %v73, 0.0
    %v465 = vadd.f32 %v463, %v464
    %v466 = vsel %vm423, %v76, 0.0
    %v467 = vadd.f32 %v465, %v466
    %v468 = vsel %vm423, %v79, 0.0
    %v469 = vadd.f32 %v467, %v468
    %v470 = vsel %vm442, %v68, 0.0
    %v471 = vsel %vm442, %v71, 0.0
    %v472 = vadd.f32 %v470, %v471
    %v473 = vsel %vm442, %v74, 0.0
    %v474 = vadd.f32 %v472, %v473
    %v475 = vsel %vm442, %v77, 0.0
    %v476 = vadd.f32 %v474, %v475
    %v477 = vsel %vm442, %v80, 0.0
    %v478 = vadd.f32 %v476, %v477
    %v479 = vsel %vm423, %v117, 0.0
    %v480 = vsel %vm423, %v120, 0.0
    %v481 = vadd.f32 %v479, %v480
    %v482 = vsel %vm423, %v123, 0.0
    %v483 = vadd.f32 %v481, %v482
    %v484 = vsel %vm423, %v126, 0.0
    %v485 = vadd.f32 %v483, %v484
    %v486 = vsel %vm423, %v129, 0.0
    %v487 = vadd.f32 %v485, %v486
    %v488 = vsel %vm423, %v118, 0.0
    %v489 = vsel %vm423, %v121, 0.0
    %v490 = vadd.f32 %v488, %v489
    %v491 = vsel %vm423, %v124, 0.0
    %v492 = vadd.f32 %v490, %v491
    %v493 = vsel %vm423, %v127, 0.0
    %v494 = vadd.f32 %v492, %v493
    %v495 = vsel %vm423, %v130, 0.0
    %v496 = vadd.f32 %v494, %v495
    %v497 = vsel %vm442, %v119, 0.0
    %v498 = vsel %vm442, %v122, 0.0
    %v499 = vadd.f32 %v497, %v498
    %v500 = vsel %vm442, %v125, 0.0
    %v501 = vadd.f32 %v499, %v500
    %v502 = vsel %vm442, %v128, 0.0
    %v503 = vadd.f32 %v501, %v502
    %v504 = vsel %vm442, %v131, 0.0
    %v505 = vadd.f32 %v503, %v504
    %v506 = vsel %vm423, %v168, 0.0
    %v507 = vsel %vm423, %v171, 0.0
    %v508 = vadd.f32 %v506, %v507
    %v509 = vsel %vm423, %v174, 0.0
    %v510 = vadd.f32 %v508, %v509
    %v511 = vsel %vm423, %v177, 0.0
    %v512 = vadd.f32 %v510, %v511
    %v513 = vsel %vm423, %v180, 0.0
    %v514 = vadd.f32 %v512, %v513
    %v515 = vsel %vm423, %v169, 0.0
    %v516 = vsel %vm423, %v172, 0.0
    %v517 = vadd.f32 %v515, %v516
    %v518 = vsel %vm423, %v175, 0.0
    %v519 = vadd.f32 %v517, %v518
    %v520 = vsel %vm423, %v178, 0.0
    %v521 = vadd.f32 %v519, %v520
    %v522 = vsel %vm423, %v181, 0.0
    %v523 = vadd.f32 %v521, %v522
    %v524 = vsel %vm442, %v170, 0.0
    %v525 = vsel %vm442, %v173, 0.0
    %v526 = vadd.f32 %v524, %v525
    %v527 = vsel %vm442, %v176, 0.0
    %v528 = vadd.f32 %v526, %v527
    %v529 = vsel %vm442, %v179, 0.0
    %v530 = vadd.f32 %v528, %v529
    %v531 = vsel %vm442, %v182, 0.0
    %v532 = vadd.f32 %v530, %v531
    %v533 = vsel %vm423, %v219, 0.0
    %v534 = vsel %vm423, %v222, 0.0
    %v535 = vadd.f32 %v533, %v534
    %v536 = vsel %vm423, %v225, 0.0
    %v537 = vadd.f32 %v535, %v536
    %v538 = vsel %vm423, %v228, 0.0
    %v539 = vadd.f32 %v537, %v538
    %v540 = vsel %vm423, %v231, 0.0
    %v541 = vadd.f32 %v539, %v540
    %v542 = vsel %vm423, %v220, 0.0
    %v543 = vsel %vm423, %v223, 0.0
    %v544 = vadd.f32 %v542, %v543
    %v545 = vsel %vm423, %v226, 0.0
    %v546 = vadd.f32 %v544, %v545
    %v547 = vsel %vm423, %v229, 0.0
    %v548 = vadd.f32 %v546, %v547
    %v549 = vsel %vm423, %v232, 0.0
    %v550 = vadd.f32 %v548, %v549
    %v551 = vsel %vm442, %v221, 0.0
    %v552 = vsel %vm442, %v224, 0.0
    %v553 = vadd.f32 %v551, %v552
    %v554 = vsel %vm442, %v227, 0.0
    %v555 = vadd.f32 %v553, %v554
    %v556 = vsel %vm442, %v230, 0.0
    %v557 = vadd.f32 %v555, %v556
    %v558 = vsel %vm442, %v233, 0.0
    %v559 = vadd.f32 %v557, %v558
    %v560 = vsel %vm423, %v270, 0.0
    %v561 = vsel %vm423, %v273, 0.0
    %v562 = vadd.f32 %v560, %v561
    %v563 = vsel %vm423, %v276, 0.0
    %v564 = vadd.f32 %v562, %v563
    %v565 = vsel %vm423, %v279, 0.0
    %v566 = vadd.f32 %v564, %v565
    %v567 = vsel %vm423, %v282, 0.0
    %v568 = vadd.f32 %v566, %v567
    %v569 = vsel %vm423, %v271, 0.0
    %v570 = vsel %vm423, %v274, 0.0
    %v571 = vadd.f32 %v569, %v570
    %v572 = vsel %vm423, %v277, 0.0
    %v573 = vadd.f32 %v571, %v572
    %v574 = vsel %vm423, %v280, 0.0
    %v575 = vadd.f32 %v573, %v574
    %v576 = vsel %vm423, %v283, 0.0
    %v577 = vadd.f32 %v575, %v576
    %v578 = vsel %vm442, %v272, 0.0
    %v579 = vsel %vm442, %v275, 0.0
    %v580 = vadd.f32 %v578, %v579
    %v581 = vsel %vm442, %v278, 0.0
    %v582 = vadd.f32 %v580, %v581
    %v583 = vsel %vm442, %v281, 0.0
    %v584 = vadd.f32 %v582, %v583
    %v585 = vsel %vm442, %v284, 0.0
    %v586 = vadd.f32 %v584, %v585
    %v587 = vsel %vm423, %v321, 0.0
    %v588 = vsel %vm423, %v324, 0.0
    %v589 = vadd.f32 %v587, %v588
    %v590 = vsel %vm423, %v327, 0.0
    %v591 = vadd.f32 %v589, %v590
    %v592 = vsel %vm423, %v330, 0.0
    %v593 = vadd.f32 %v591, %v592
    %v594 = vsel %vm423, %v333, 0.0
    %v595 = vadd.f32 %v593, %v594
    %v596 = vsel %vm423, %v322, 0.0
    %v597 = vsel %vm423, %v325, 0.0
    %v598 = vadd.f32 %v596, %v597
    %v599 = vsel %vm423, %v328, 0.0
    %v600 = vadd.f32 %v598, %v599
    %v601 = vsel %vm423, %v331, 0.0
    %v602 = vadd.f32 %v600, %v601
    %v603 = vsel %vm423, %v334, 0.0
    %v604 = vadd.f32 %v602, %v603
    %v605 = vsel %vm442, %v323, 0.0
    %v606 = vsel %vm442, %v326, 0.0
    %v607 = vadd.f32 %v605, %v606
    %v608 = vsel %vm442, %v329, 0.0
    %v609 = vadd.f32 %v607, %v608
    %v610 = vsel %vm442, %v332, 0.0
    %v611 = vadd.f32 %v609, %v610
    %v612 = vsel %vm442, %v335, 0.0
    %v613 = vadd.f32 %v611, %v612
    %v614 = vsel %vm423, %v372, 0.0
    %v615 = vsel %vm423, %v375, 0.0
    %v616 = vadd.f32 %v614, %v615
    %v617 = vsel %vm423, %v378, 0.0
    %v618 = vadd.f32 %v616, %v617
    %v619 = vsel %vm423, %v381, 0.0
    %v620 = vadd.f32 %v618, %v619
    %v621 = vsel %vm423, %v384, 0.0
    %v622 = vadd.f32 %v620, %v621
    %v623 = vsel %vm423, %v373, 0.0
    %v624 = vsel %vm423, %v376, 0.0
    %v625 = vadd.f32 %v623, %v624
    %v626 = vsel %vm423, %v379, 0.0
    %v627 = vadd.f32 %v625, %v626
    %v628 = vsel %vm423, %v382, 0.0
    %v629 = vadd.f32 %v627, %v628
    %v630 = vsel %vm423, %v385, 0.0
    %v631 = vadd.f32 %v629, %v630
    %v632 = vsel %vm442, %v374, 0.0
    %v633 = vsel %vm442, %v377, 0.0
    %v634 = vadd.f32 %v632, %v633
    %v635 = vsel %vm442, %v380, 0.0
    %v636 = vadd.f32 %v634, %v635
    %v637 = vsel %vm442, %v383, 0.0
    %v638 = vadd.f32 %v636, %v637
    %v639 = vsel %vm442, %v386, 0.0
    %v640 = vadd.f32 %v638, %v639
    %vm641 = vcmask 126976
    %v642 = vsel %vm641, %v432, 0.0
    %v643 = vrot.slane %v642, 4
    %v644 = vadd.f32 %v642, %v643
    %v645 = vrot.slane %v644, 2
    %v646 = vadd.f32 %v644, %v645
    %v647 = vrot.slane %v646, 1
    %v648 = vadd.f32 %v646, %v647
    %v649 = vsel %vm641, %v460, 0.0
    %v650 = vrot.slane %v649, 4
    %v651 = vadd.f32 %v649, %v650
    %v652 = vrot.slane %v651, 2
    %v653 = vadd.f32 %v651, %v652
    %v654 = vrot.slane %v653, 1
    %v655 = vadd.f32 %v653, %v654
    %v656 = vsel %vm641, %v487, 0.0
    %v657 = vrot.slane %v656, 4
    %v658 = vadd.f32 %v656, %v657
    %v659 = vrot.slane %v658, 2
    %v660 = vadd.f32 %v658, %v659
    %v661 = vrot.slane %v660, 1
    %v662 = vadd.f32 %v660, %v661
    %v663 = vsel %vm641, %v514, 0.0
    %v664 = vrot.slane %v663, 4
    %v665 = vadd.f32 %v663, %v664
    %v666 = vrot.slane %v665, 2
    %v667 = vadd.f32 %v665, %v666
    %v668 = vrot.slane %v667, 1
    %v669 = vadd.f32 %v667, %v668
    %v670 = vsel %vm641, %v541, 0.0
    %v671 = vrot.slane %v670, 4
    %v672 = vadd.f32 %v670, %v671
    %v673 = vrot.slane %v672, 2
    %v674 = vadd.f32 %v672, %v673
    %v675 = vrot.slane %v674, 1
    %v676 = vadd.f32 %v674, %v675
    %v677 = vsel %vm641, %v568, 0.0
    %v678 = vrot.slane %v677, 4
    %v679 = vadd.f32 %v677, %v678
    %v680 = vrot.slane %v679, 2
    %v681 = vadd.f32 %v679, %v680
    %v682 = vrot.slane %v681, 1
    %v683 = vadd.f32 %v681, %v682
    %v684 = vsel %vm641, %v595, 0.0
    %v685 = vrot.slane %v684, 4
    %v686 = vadd.f32 %v684, %v685
    %v687 = vrot.slane %v686, 2
    %v688 = vadd.f32 %v686, %v687
    %v689 = vrot.slane %v688, 1
    %v690 = vadd.f32 %v688, %v689
    %v691 = vsel %vm641, %v622, 0.0
    %v692 = vrot.slane %v691, 4
    %v693 = vadd.f32 %v691, %v692
    %v694 = vrot.slane %v693, 2
    %v695 = vadd.f32 %v693, %v694
    %v696 = vrot.slane %v695, 1
    %v697 = vadd.f32 %v695, %v696
    %v706 = vrot.slane %v432, 3
    %v707 = vrot.slane %v460, 3
    %v708 = vrot.slane %v487, 3
    %v709 = vrot.slane %v514, 3
    %v710 = vrot.slane %v541, 3
    %v711 = vrot.slane %v568, 3
    %v712 = vrot.slane %v595, 3
    %v713 = vrot.slane %v622, 3
    %v722 = vsel %vm641, %v706, 0.0
    %v723 = vrot.slane %v722, 4
    %v724 = vadd.f32 %v722, %v723
    %v725 = vrot.slane %v724, 2
    %v726 = vadd.f32 %v724, %v725
    %v727 = vrot.slane %v726, 1
    %v728 = vadd.f32 %v726, %v727
    %v729 = vsel %vm641, %v707, 0.0
    %v730 = vrot.slane %v729, 4
    %v731 = vadd.f32 %v729, %v730
    %v732 = vrot.slane %v731, 2
    %v733 = vadd.f32 %v731, %v732
    %v734 = vrot.slane %v733, 1
    %v735 = vadd.f32 %v733, %v734
    %v736 = vsel %vm641, %v708, 0.0
    %v737 = vrot.slane %v736, 4
    %v738 = vadd.f32 %v736, %v737
    %v739 = vrot.slane %v738, 2
    %v740 = vadd.f32 %v738, %v739
    %v741 = vrot.slane %v740, 1
    %v742 = vadd.f32 %v740, %v741
    %v743 = vsel %vm641, %v709, 0.0
    %v744 = vrot.slane %v743, 4
    %v745 = vadd.f32 %v743, %v744
    %v746 = vrot.slane %v745, 2
    %v747 = vadd.f32 %v745, %v746
    %v748 = vrot.slane %v747, 1
    %v749 = vadd.f32 %v747, %v748
    %v750 = vsel %vm641, %v710, 0.0
    %v751 = vrot.slane %v750, 4
    %v752 = vadd.f32 %v750, %v751
    %v753 = vrot.slane %v752, 2
    %v754 = vadd.f32 %v752, %v753
    %v755 = vrot.slane %v754, 1
    %v756 = vadd.f32 %v754, %v755
    %v757 = vsel %vm641, %v711, 0.0
    %v758 = vrot.slane %v757, 4
    %v759 = vadd.f32 %v757, %v758
    %v760 = vrot.slane %v759, 2
    %v761 = vadd.f32 %v759, %v760
    %v762 = vrot.slane %v761, 1
    %v763 = vadd.f32 %v761, %v762
    %v764 = vsel %vm641, %v712, 0.0
    %v765 = vrot.slane %v764, 4
    %v766 = vadd.f32 %v764, %v765
    %v767 = vrot.slane %v766, 2
    %v768 = vadd.f32 %v766, %v767
    %v769 = vrot.slane %v768, 1
    %v770 = vadd.f32 %v768, %v769
    %v771 = vsel %vm641, %v713, 0.0
    %v772 = vrot.slane %v771, 4
    %v773 = vadd.f32 %v771, %v772
    %v774 = vrot.slane %v773, 2
    %v775 = vadd.f32 %v773, %v774
    %v776 = vrot.slane %v775, 1
    %v777 = vadd.f32 %v775, %v776
    %vm786 = vcmask 1041408
    %v787 = vrot.slane %v432, 6
    %v788 = vrot.slane %v441, 6
    %v789 = vsel %vm786, %v787, %v788
    %v790 = vrot.slane %v460, 6
    %v791 = vrot.slane %v469, 6
    %v792 = vsel %vm786, %v790, %v791
    %v793 = vrot.slane %v487, 6
    %v794 = vrot.slane %v496, 6
    %v795 = vsel %vm786, %v793, %v794
    %v796 = vrot.slane %v514, 6
    %v797 = vrot.slane %v523, 6
    %v798 = vsel %vm786, %v796, %v797
    %v799 = vrot.slane %v541, 6
    %v800 = vrot.slane %v550, 6
    %v801 = vsel %vm786, %v799, %v800
    %v802 = vrot.slane %v568, 6
    %v803 = vrot.slane %v577, 6
    %v804 = vsel %vm786, %v802, %v803
    %v805 = vrot.slane %v595, 6
    %v806 = vrot.slane %v604, 6
    %v807 = vsel %vm786, %v805, %v806
    %v808 = vrot.slane %v622, 6
    %v809 = vrot.slane %v631, 6
    %v810 = vsel %vm786, %v808, %v809
    %v819 = vsel %vm641, %v789, 0.0
    %v820 = vrot.slane %v819, 4
    %v821 = vadd.f32 %v819, %v820
    %v822 = vrot.slane %v821, 2
    %v823 = vadd.f32 %v821, %v822
    %v824 = vrot.slane %v823, 1
    %v825 = vadd.f32 %v823, %v824
    %v826 = vsel %vm641, %v792, 0.0
    %v827 = vrot.slane %v826, 4
    %v828 = vadd.f32 %v826, %v827
    %v829 = vrot.slane %v828, 2
    %v830 = vadd.f32 %v828, %v829
    %v831 = vrot.slane %v830, 1
    %v832 = vadd.f32 %v830, %v831
    %v833 = vsel %vm641, %v795, 0.0
    %v834 = vrot.slane %v833, 4
    %v835 = vadd.f32 %v833, %v834
    %v836 = vrot.slane %v835, 2
    %v837 = vadd.f32 %v835, %v836
    %v838 = vrot.slane %v837, 1
    %v839 = vadd.f32 %v837, %v838
    %v840 = vsel %vm641, %v798, 0.0
    %v841 = vrot.slane %v840, 4
    %v842 = vadd.f32 %v840, %v841
    %v843 = vrot.slane %v842, 2
    %v844 = vadd.f32 %v842, %v843
    %v845 = vrot.slane %v844, 1
    %v846 = vadd.f32 %v844, %v845
    %v847 = vsel %vm641, %v801, 0.0
    %v848 = vrot.slane %v847, 4
    %v849 = vadd.f32 %v847, %v848
    %v850 = vrot.slane %v849, 2
    %v851 = vadd.f32 %v849, %v850
    %v852 = vrot.slane %v851, 1
    %v853 = vadd.f32 %v851, %v852
    %v854 = vsel %vm641, %v804, 0.0
    %v855 = vrot.slane %v854, 4
    %v856 = vadd.f32 %v854, %v855
    %v857 = vrot.slane %v856, 2
    %v858 = vadd.f32 %v856, %v857
    %v859 = vrot.slane %v858, 1
    %v860 = vadd.f32 %v858, %v859
    %v861 = vsel %vm641, %v807, 0.0
    %v862 = vrot.slane %v861, 4
    %v863 = vadd.f32 %v861, %v862
    %v864 = vrot.slane %v863, 2
    %v865 = vadd.f32 %v863, %v864
    %v866 = vrot.slane %v865, 1
    %v867 = vadd.f32 %v865, %v866
    %v868 = vsel %vm641, %v810, 0.0
    %v869 = vrot.slane %v868, 4
    %v870 = vadd.f32 %v868, %v869
    %v871 = vrot.slane %v870, 2
    %v872 = vadd.f32 %v870, %v871
    %v873 = vrot.slane %v872, 1
    %v874 = vadd.f32 %v872, %v873
    %v875 = vrot.slane %v441, 1
    %v876 = vrot.slane %v469, 1
    %v877 = vrot.slane %v496, 1
    %v878 = vrot.slane %v523, 1
    %v879 = vrot.slane %v550, 1
    %v880 = vrot.slane %v577, 1
    %v881 = vrot.slane %v604, 1
    %v882 = vrot.slane %v631, 1
    %v891 = vsel %vm641, %v875, 0.0
    %v892 = vrot.slane %v891, 4
    %v893 = vadd.f32 %v891, %v892
    %v894 = vrot.slane %v893, 2
    %v895 = vadd.f32 %v893, %v894
    %v896 = vrot.slane %v895, 1
    %v897 = vadd.f32 %v895, %v896
    %v898 = vsel %vm641, %v876, 0.0
    %v899 = vrot.slane %v898, 4
    %v900 = vadd.f32 %v898, %v899
    %v901 = vrot.slane %v900, 2
    %v902 = vadd.f32 %v900, %v901
    %v903 = vrot.slane %v902, 1
    %v904 = vadd.f32 %v902, %v903
    %v905 = vsel %vm641, %v877, 0.0
    %v906 = vrot.slane %v905, 4
    %v907 = vadd.f32 %v905, %v906
    %v908 = vrot.slane %v907, 2
    %v909 = vadd.f32 %v907, %v908
    %v910 = vrot.slane %v909, 1
    %v911 = vadd.f32 %v909, %v910
    %v912 = vsel %vm641, %v878, 0.0
    %v913 = vrot.slane %v912, 4
    %v914 = vadd.f32 %v912, %v913
    %v915 = vrot.slane %v914, 2
    %v916 = vadd.f32 %v914, %v915
    %v917 = vrot.slane %v916, 1
    %v918 = vadd.f32 %v916, %v917
    %v919 = vsel %vm641, %v879, 0.0
    %v920 = vrot.slane %v919, 4
    %v921 = vadd.f32 %v919, %v920
    %v922 = vrot.slane %v921, 2
    %v923 = vadd.f32 %v921, %v922
    %v924 = vrot.slane %v923, 1
    %v925 = vadd.f32 %v923, %v924
    %v926 = vsel %vm641, %v880, 0.0
    %v927 = vrot.slane %v926, 4
    %v928 = vadd.f32 %v926, %v927
    %v929 = vrot.slane %v928, 2
    %v930 = vadd.f32 %v928, %v929
    %v931 = vrot.slane %v930, 1
    %v932 = vadd.f32 %v930, %v931
    %v933 = vsel %vm641, %v881, 0.0
    %v934 = vrot.slane %v933, 4
    %v935 = vadd.f32 %v933, %v934
    %v936 = vrot.slane %v935, 2
    %v937 = vadd.f32 %v935, %v936
    %v938 = vrot.slane %v937, 1
    %v939 = vadd.f32 %v937, %v938
    %v940 = vsel %vm641, %v882, 0.0
    %v941 = vrot.slane %v940, 4
    %v942 = vadd.f32 %v940, %v941
    %v943 = vrot.slane %v942, 2
    %v944 = vadd.f32 %v942, %v943
    %v945 = vrot.slane %v944, 1
    %v946 = vadd.f32 %v944, %v945
    %vm955 = vcmask 1043456
    %v956 = vrot.slane %v441, 4
    %v957 = vrot.slane %v451, 4
    %v958 = vsel %vm955, %v956, %v957
    %v959 = vrot.slane %v469, 4
    %v960 = vrot.slane %v478, 4
    %v961 = vsel %vm955, %v959, %v960
    %v962 = vrot.slane %v496, 4
    %v963 = vrot.slane %v505, 4
    %v964 = vsel %vm955, %v962, %v963
    %v965 = vrot.slane %v523, 4
    %v966 = vrot.slane %v532, 4
    %v967 = vsel %vm955, %v965, %v966
    %v968 = vrot.slane %v550, 4
    %v969 = vrot.slane %v559, 4
    %v970 = vsel %vm955, %v968, %v969
    %v971 = vrot.slane %v577, 4
    %v972 = vrot.slane %v586, 4
    %v973 = vsel %vm955, %v971, %v972
    %v974 = vrot.slane %v604, 4
    %v975 = vrot.slane %v613, 4
    %v976 = vsel %vm955, %v974, %v975
    %v977 = vrot.slane %v631, 4
    %v978 = vrot.slane %v640, 4
    %v979 = vsel %vm955, %v977, %v978
    %v988 = vsel %vm641, %v958, 0.0
    %v989 = vrot.slane %v988, 4
    %v990 = vadd.f32 %v988, %v989
    %v991 = vrot.slane %v990, 2
    %v992 = vadd.f32 %v990, %v991
    %v993 = vrot.slane %v992, 1
    %v994 = vadd.f32 %v992, %v993
    %v995 = vsel %vm641, %v961, 0.0
    %v996 = vrot.slane %v995, 4
    %v997 = vadd.f32 %v995, %v996
    %v998 = vrot.slane %v997, 2
    %v999 = vadd.f32 %v997, %v998
    %v1000 = vrot.slane %v999, 1
    %v1001 = vadd.f32 %v999, %v1000
    %v1002 = vsel %vm641, %v964, 0.0
    %v1003 = vrot.slane %v1002, 4
    %v1004 = vadd.f32 %v1002, %v1003
    %v1005 = vrot.slane %v1004, 2
    %v1006 = vadd.f32 %v1004, %v1005
    %v1007 = vrot.slane %v1006, 1
    %v1008 = vadd.f32 %v1006, %v1007
    %v1009 = vsel %vm641, %v967, 0.0
    %v1010 = vrot.slane %v1009, 4
    %v1011 = vadd.f32 %v1009, %v1010
    %v1012 = vrot.slane %v1011, 2
    %v1013 = vadd.f32 %v1011, %v1012
    %v1014 = vrot.slane %v1013, 1
    %v1015 = vadd.f32 %v1013, %v1014
    %v1016 = vsel %vm641, %v970, 0.0
    %v1017 = vrot.slane %v1016, 4
    %v1018 = vadd.f32 %v1016, %v1017
    %v1019 = vrot.slane %v1018, 2
    %v1020 = vadd.f32 %v1018, %v1019
    %v1021 = vrot.slane %v1020, 1
    %v1022 = vadd.f32 %v1020, %v1021
    %v1023 = vsel %vm641, %v973, 0.0
    %v1024 = vrot.slane %v1023, 4
    %v1025 = vadd.f32 %v1023, %v1024
    %v1026 = vrot.slane %v1025, 2
    %v1027 = vadd.f32 %v1025, %v1026
    %v1028 = vrot.slane %v1027, 1
    %v1029 = vadd.f32 %v1027, %v1028
    %v1030 = vsel %vm641, %v976, 0.0
    %v1031 = vrot.slane %v1030, 4
    %v1032 = vadd.f32 %v1030, %v1031
    %v1033 = vrot.slane %v1032, 2
    %v1034 = vadd.f32 %v1032, %v1033
    %v1035 = vrot.slane %v1034, 1
    %v1036 = vadd.f32 %v1034, %v1035
    %v1037 = vsel %vm641, %v979, 0.0
    %v1038 = vrot.slane %v1037, 4
    %v1039 = vadd.f32 %v1037, %v1038
    %v1040 = vrot.slane %v1039, 2
    %v1041 = vadd.f32 %v1039, %v1040
    %v1042 = vrot.slane %v1041, 1
    %v1043 = vadd.f32 %v1041, %v1042
    %v1044 = vadd.f32 %v429, %v431
    %v1045 = vsel %vm423, %v30, 0.0
    %v1046 = vadd.f32 %v1044, %v1045
    %v1047 = vsel %vm423, %v33, 0.0
    %v1048 = vadd.f32 %v1046, %v1047
    %v1049 = vsel %vm423, %v36, 0.0
    %v1050 = vadd.f32 %v1048, %v1049
    %v1051 = vadd.f32 %v438, %v440
    %v1052 = vsel %vm423, %v31, 0.0
    %v1053 = vadd.f32 %v1051, %v1052
    %v1054 = vsel %vm423, %v34, 0.0
    %v1055 = vadd.f32 %v1053, %v1054
    %v1056 = vsel %vm423, %v37, 0.0
    %v1057 = vadd.f32 %v1055, %v1056
    %v1058 = vadd.f32 %v448, %v450
    %v1059 = vsel %vm442, %v32, 0.0
    %v1060 = vadd.f32 %v1058, %v1059
    %v1061 = vsel %vm442, %v35, 0.0
    %v1062 = vadd.f32 %v1060, %v1061
    %v1063 = vsel %vm442, %v38, 0.0
    %v1064 = vadd.f32 %v1062, %v1063
    %v1065 = vadd.f32 %v457, %v459
    %v1066 = vsel %vm423, %v81, 0.0
    %v1067 = vadd.f32 %v1065, %v1066
    %v1068 = vsel %vm423, %v84, 0.0
    %v1069 = vadd.f32 %v1067, %v1068
    %v1070 = vsel %vm423, %v87, 0.0
    %v1071 = vadd.f32 %v1069, %v1070
    %v1072 = vadd.f32 %v466, %v468
    %v1073 = vsel %vm423, %v82, 0.0
    %v1074 = vadd.f32 %v1072, %v1073
    %v1075 = vsel %vm423, %v85, 0.0
    %v1076 = vadd.f32 %v1074, %v1075
    %v1077 = vsel %vm423, %v88, 0.0
    %v1078 = vadd.f32 %v1076, %v1077
    %v1079 = vadd.f32 %v475, %v477
    %v1080 = vsel %vm442, %v83, 0.0
    %v1081 = vadd.f32 %v1079, %v1080
    %v1082 = vsel %vm442, %v86, 0.0
    %v1083 = vadd.f32 %v1081, %v1082
    %v1084 = vsel %vm442, %v89, 0.0
    %v1085 = vadd.f32 %v1083, %v1084
    %v1086 = vadd.f32 %v484, %v486
    %v1087 = vsel %vm423, %v132, 0.0
    %v1088 = vadd.f32 %v1086, %v1087
    %v1089 = vsel %vm423, %v135, 0.0
    %v1090 = vadd.f32 %v1088, %v1089
    %v1091 = vsel %vm423, %v138, 0.0
    %v1092 = vadd.f32 %v1090, %v1091
    %v1093 = vadd.f32 %v493, %v495
    %v1094 = vsel %vm423, %v133, 0.0
    %v1095 = vadd.f32 %v1093, %v1094
    %v1096 = vsel %vm423, %v136, 0.0
    %v1097 = vadd.f32 %v1095, %v1096
    %v1098 = vsel %vm423, %v139, 0.0
    %v1099 = vadd.f32 %v1097, %v1098
    %v1100 = vadd.f32 %v502, %v504
    %v1101 = vsel %vm442, %v134, 0.0
    %v1102 = vadd.f32 %v1100, %v1101
    %v1103 = vsel %vm442, %v137, 0.0
    %v1104 = vadd.f32 %v1102, %v1103
    %v1105 = vsel %vm442, %v140, 0.0
    %v1106 = vadd.f32 %v1104, %v1105
    %v1107 = vadd.f32 %v511, %v513
    %v1108 = vsel %vm423, %v183, 0.0
    %v1109 = vadd.f32 %v1107, %v1108
    %v1110 = vsel %vm423, %v186, 0.0
    %v1111 = vadd.f32 %v1109, %v1110
    %v1112 = vsel %vm423, %v189, 0.0
    %v1113 = vadd.f32 %v1111, %v1112
    %v1114 = vadd.f32 %v520, %v522
    %v1115 = vsel %vm423, %v184, 0.0
    %v1116 = vadd.f32 %v1114, %v1115
    %v1117 = vsel %vm423, %v187, 0.0
    %v1118 = vadd.f32 %v1116, %v1117
    %v1119 = vsel %vm423, %v190, 0.0
    %v1120 = vadd.f32 %v1118, %v1119
    %v1121 = vadd.f32 %v529, %v531
    %v1122 = vsel %vm442, %v185, 0.0
    %v1123 = vadd.f32 %v1121, %v1122
    %v1124 = vsel %vm442, %v188, 0.0
    %v1125 = vadd.f32 %v1123, %v1124
    %v1126 = vsel %vm442, %v191, 0.0
    %v1127 = vadd.f32 %v1125, %v1126
    %v1128 = vadd.f32 %v538, %v540
    %v1129 = vsel %vm423, %v234, 0.0
    %v1130 = vadd.f32 %v1128, %v1129
    %v1131 = vsel %vm423, %v237, 0.0
    %v1132 = vadd.f32 %v1130, %v1131
    %v1133 = vsel %vm423, %v240, 0.0
    %v1134 = vadd.f32 %v1132, %v1133
    %v1135 = vadd.f32 %v547, %v549
    %v1136 = vsel %vm423, %v235, 0.0
    %v1137 = vadd.f32 %v1135, %v1136
    %v1138 = vsel %vm423, %v238, 0.0
    %v1139 = vadd.f32 %v1137, %v1138
    %v1140 = vsel %vm423, %v241, 0.0
    %v1141 = vadd.f32 %v1139, %v1140
    %v1142 = vadd.f32 %v556, %v558
    %v1143 = vsel %vm442, %v236, 0.0
    %v1144 = vadd.f32 %v1142, %v1143
    %v1145 = vsel %vm442, %v239, 0.0
    %v1146 = vadd.f32 %v1144, %v1145
    %v1147 = vsel %vm442, %v242, 0.0
    %v1148 = vadd.f32 %v1146, %v1147
    %v1149 = vadd.f32 %v565, %v567
    %v1150 = vsel %vm423, %v285, 0.0
    %v1151 = vadd.f32 %v1149, %v1150
    %v1152 = vsel %vm423, %v288, 0.0
    %v1153 = vadd.f32 %v1151, %v1152
    %v1154 = vsel %vm423, %v291, 0.0
    %v1155 = vadd.f32 %v1153, %v1154
    %v1156 = vadd.f32 %v574, %v576
    %v1157 = vsel %vm423, %v286, 0.0
    %v1158 = vadd.f32 %v1156, %v1157
    %v1159 = vsel %vm423, %v289, 0.0
    %v1160 = vadd.f32 %v1158, %v1159
    %v1161 = vsel %vm423, %v292, 0.0
    %v1162 = vadd.f32 %v1160, %v1161
    %v1163 = vadd.f32 %v583, %v585
    %v1164 = vsel %vm442, %v287, 0.0
    %v1165 = vadd.f32 %v1163, %v1164
    %v1166 = vsel %vm442, %v290, 0.0
    %v1167 = vadd.f32 %v1165, %v1166
    %v1168 = vsel %vm442, %v293, 0.0
    %v1169 = vadd.f32 %v1167, %v1168
    %v1170 = vadd.f32 %v592, %v594
    %v1171 = vsel %vm423, %v336, 0.0
    %v1172 = vadd.f32 %v1170, %v1171
    %v1173 = vsel %vm423, %v339, 0.0
    %v1174 = vadd.f32 %v1172, %v1173
    %v1175 = vsel %vm423, %v342, 0.0
    %v1176 = vadd.f32 %v1174, %v1175
    %v1177 = vadd.f32 %v601, %v603
    %v1178 = vsel %vm423, %v337, 0.0
    %v1179 = vadd.f32 %v1177, %v1178
    %v1180 = vsel %vm423, %v340, 0.0
    %v1181 = vadd.f32 %v1179, %v1180
    %v1182 = vsel %vm423, %v343, 0.0
    %v1183 = vadd.f32 %v1181, %v1182
    %v1184 = vadd.f32 %v610, %v612
    %v1185 = vsel %vm442, %v338, 0.0
    %v1186 = vadd.f32 %v1184, %v1185
    %v1187 = vsel %vm442, %v341, 0.0
    %v1188 = vadd.f32 %v1186, %v1187
    %v1189 = vsel %vm442, %v344, 0.0
    %v1190 = vadd.f32 %v1188, %v1189
    %v1191 = vadd.f32 %v619, %v621
    %v1192 = vsel %vm423, %v387, 0.0
    %v1193 = vadd.f32 %v1191, %v1192
    %v1194 = vsel %vm423, %v390, 0.0
    %v1195 = vadd.f32 %v1193, %v1194
    %v1196 = vsel %vm423, %v393, 0.0
    %v1197 = vadd.f32 %v1195, %v1196
    %v1198 = vadd.f32 %v628, %v630
    %v1199 = vsel %vm423, %v388, 0.0
    %v1200 = vadd.f32 %v1198, %v1199
    %v1201 = vsel %vm423, %v391, 0.0
    %v1202 = vadd.f32 %v1200, %v1201
    %v1203 = vsel %vm423, %v394, 0.0
    %v1204 = vadd.f32 %v1202, %v1203
    %v1205 = vadd.f32 %v637, %v639
    %v1206 = vsel %vm442, %v389, 0.0
    %v1207 = vadd.f32 %v1205, %v1206
    %v1208 = vsel %vm442, %v392, 0.0
    %v1209 = vadd.f32 %v1207, %v1208
    %v1210 = vsel %vm442, %v395, 0.0
    %v1211 = vadd.f32 %v1209, %v1210
    %v1212 = vsel %vm641, %v1050, 0.0
    %v1213 = vrot.slane %v1212, 4
    %v1214 = vadd.f32 %v1212, %v1213
    %v1215 = vrot.slane %v1214, 2
    %v1216 = vadd.f32 %v1214, %v1215
    %v1217 = vrot.slane %v1216, 1
    %v1218 = vadd.f32 %v1216, %v1217
    %v1219 = vsel %vm641, %v1071, 0.0
    %v1220 = vrot.slane %v1219, 4
    %v1221 = vadd.f32 %v1219, %v1220
    %v1222 = vrot.slane %v1221, 2
    %v1223 = vadd.f32 %v1221, %v1222
    %v1224 = vrot.slane %v1223, 1
    %v1225 = vadd.f32 %v1223, %v1224
    %v1226 = vsel %vm641, %v1092, 0.0
    %v1227 = vrot.slane %v1226, 4
    %v1228 = vadd.f32 %v1226, %v1227
    %v1229 = vrot.slane %v1228, 2
    %v1230 = vadd.f32 %v1228, %v1229
    %v1231 = vrot.slane %v1230, 1
    %v1232 = vadd.f32 %v1230, %v1231
    %v1233 = vsel %vm641, %v1113, 0.0
    %v1234 = vrot.slane %v1233, 4
    %v1235 = vadd.f32 %v1233, %v1234
    %v1236 = vrot.slane %v1235, 2
    %v1237 = vadd.f32 %v1235, %v1236
    %v1238 = vrot.slane %v1237, 1
    %v1239 = vadd.f32 %v1237, %v1238
    %v1240 = vsel %vm641, %v1134, 0.0
    %v1241 = vrot.slane %v1240, 4
    %v1242 = vadd.f32 %v1240, %v1241
    %v1243 = vrot.slane %v1242, 2
    %v1244 = vadd.f32 %v1242, %v1243
    %v1245 = vrot.slane %v1244, 1
    %v1246 = vadd.f32 %v1244, %v1245
    %v1247 = vsel %vm641, %v1155, 0.0
    %v1248 = vrot.slane %v1247, 4
    %v1249 = vadd.f32 %v1247, %v1248
    %v1250 = vrot.slane %v1249, 2
    %v1251 = vadd.f32 %v1249, %v1250
    %v1252 = vrot.slane %v1251, 1
    %v1253 = vadd.f32 %v1251, %v1252
    %v1254 = vsel %vm641, %v1176, 0.0
    %v1255 = vrot.slane %v1254, 4
    %v1256 = vadd.f32 %v1254, %v1255
    %v1257 = vrot.slane %v1256, 2
    %v1258 = vadd.f32 %v1256, %v1257
    %v1259 = vrot.slane %v1258, 1
    %v1260 = vadd.f32 %v1258, %v1259
    %v1261 = vsel %vm641, %v1197, 0.0
    %v1262 = vrot.slane %v1261, 4
    %v1263 = vadd.f32 %v1261, %v1262
    %v1264 = vrot.slane %v1263, 2
    %v1265 = vadd.f32 %v1263, %v1264
    %v1266 = vrot.slane %v1265, 1
    %v1267 = vadd.f32 %v1265, %v1266
    %v1276 = vrot.slane %v1050, 3
    %v1277 = vrot.slane %v1071, 3
    %v1278 = vrot.slane %v1092, 3
    %v1279 = vrot.slane %v1113, 3
    %v1280 = vrot.slane %v1134, 3
    %v1281 = vrot.slane %v1155, 3
    %v1282 = vrot.slane %v1176, 3
    %v1283 = vrot.slane %v1197, 3
    %v1292 = vsel %vm641, %v1276, 0.0
    %v1293 = vrot.slane %v1292, 4
    %v1294 = vadd.f32 %v1292, %v1293
    %v1295 = vrot.slane %v1294, 2
    %v1296 = vadd.f32 %v1294, %v1295
    %v1297 = vrot.slane %v1296, 1
    %v1298 = vadd.f32 %v1296, %v1297
    %v1299 = vsel %vm641, %v1277, 0.0
    %v1300 = vrot.slane %v1299, 4
    %v1301 = vadd.f32 %v1299, %v1300
    %v1302 = vrot.slane %v1301, 2
    %v1303 = vadd.f32 %v1301, %v1302
    %v1304 = vrot.slane %v1303, 1
    %v1305 = vadd.f32 %v1303, %v1304
    %v1306 = vsel %vm641, %v1278, 0.0
    %v1307 = vrot.slane %v1306, 4
    %v1308 = vadd.f32 %v1306, %v1307
    %v1309 = vrot.slane %v1308, 2
    %v1310 = vadd.f32 %v1308, %v1309
    %v1311 = vrot.slane %v1310, 1
    %v1312 = vadd.f32 %v1310, %v1311
    %v1313 = vsel %vm641, %v1279, 0.0
    %v1314 = vrot.slane %v1313, 4
    %v1315 = vadd.f32 %v1313, %v1314
    %v1316 = vrot.slane %v1315, 2
    %v1317 = vadd.f32 %v1315, %v1316
    %v1318 = vrot.slane %v1317, 1
    %v1319 = vadd.f32 %v1317, %v1318
    %v1320 = vsel %vm641, %v1280, 0.0
    %v1321 = vrot.slane %v1320, 4
    %v1322 = vadd.f32 %v1320, %v1321
    %v1323 = vrot.slane %v1322, 2
    %v1324 = vadd.f32 %v1322, %v1323
    %v1325 = vrot.slane %v1324, 1
    %v1326 = vadd.f32 %v1324, %v1325
    %v1327 = vsel %vm641, %v1281, 0.0
    %v1328 = vrot.slane %v1327, 4
    %v1329 = vadd.f32 %v1327, %v1328
    %v1330 = vrot.slane %v1329, 2
    %v1331 = vadd.f32 %v1329, %v1330
    %v1332 = vrot.slane %v1331, 1
    %v1333 = vadd.f32 %v1331, %v1332
    %v1334 = vsel %vm641, %v1282, 0.0
    %v1335 = vrot.slane %v1334, 4
    %v1336 = vadd.f32 %v1334, %v1335
    %v1337 = vrot.slane %v1336, 2
    %v1338 = vadd.f32 %v1336, %v1337
    %v1339 = vrot.slane %v1338, 1
    %v1340 = vadd.f32 %v1338, %v1339
    %v1341 = vsel %vm641, %v1283, 0.0
    %v1342 = vrot.slane %v1341, 4
    %v1343 = vadd.f32 %v1341, %v1342
    %v1344 = vrot.slane %v1343, 2
    %v1345 = vadd.f32 %v1343, %v1344
    %v1346 = vrot.slane %v1345, 1
    %v1347 = vadd.f32 %v1345, %v1346
    %v1356 = vrot.slane %v1050, 6
    %v1357 = vrot.slane %v1057, 6
    %v1358 = vsel %vm786, %v1356, %v1357
    %v1359 = vrot.slane %v1071, 6
    %v1360 = vrot.slane %v1078, 6
    %v1361 = vsel %vm786, %v1359, %v1360
    %v1362 = vrot.slane %v1092, 6
    %v1363 = vrot.slane %v1099, 6
    %v1364 = vsel %vm786, %v1362, %v1363
    %v1365 = vrot.slane %v1113, 6
    %v1366 = vrot.slane %v1120, 6
    %v1367 = vsel %vm786, %v1365, %v1366
    %v1368 = vrot.slane %v1134, 6
    %v1369 = vrot.slane %v1141, 6
    %v1370 = vsel %vm786, %v1368, %v1369
    %v1371 = vrot.slane %v1155, 6
    %v1372 = vrot.slane %v1162, 6
    %v1373 = vsel %vm786, %v1371, %v1372
    %v1374 = vrot.slane %v1176, 6
    %v1375 = vrot.slane %v1183, 6
    %v1376 = vsel %vm786, %v1374, %v1375
    %v1377 = vrot.slane %v1197, 6
    %v1378 = vrot.slane %v1204, 6
    %v1379 = vsel %vm786, %v1377, %v1378
    %v1388 = vsel %vm641, %v1358, 0.0
    %v1389 = vrot.slane %v1388, 4
    %v1390 = vadd.f32 %v1388, %v1389
    %v1391 = vrot.slane %v1390, 2
    %v1392 = vadd.f32 %v1390, %v1391
    %v1393 = vrot.slane %v1392, 1
    %v1394 = vadd.f32 %v1392, %v1393
    %v1395 = vsel %vm641, %v1361, 0.0
    %v1396 = vrot.slane %v1395, 4
    %v1397 = vadd.f32 %v1395, %v1396
    %v1398 = vrot.slane %v1397, 2
    %v1399 = vadd.f32 %v1397, %v1398
    %v1400 = vrot.slane %v1399, 1
    %v1401 = vadd.f32 %v1399, %v1400
    %v1402 = vsel %vm641, %v1364, 0.0
    %v1403 = vrot.slane %v1402, 4
    %v1404 = vadd.f32 %v1402, %v1403
    %v1405 = vrot.slane %v1404, 2
    %v1406 = vadd.f32 %v1404, %v1405
    %v1407 = vrot.slane %v1406, 1
    %v1408 = vadd.f32 %v1406, %v1407
    %v1409 = vsel %vm641, %v1367, 0.0
    %v1410 = vrot.slane %v1409, 4
    %v1411 = vadd.f32 %v1409, %v1410
    %v1412 = vrot.slane %v1411, 2
    %v1413 = vadd.f32 %v1411, %v1412
    %v1414 = vrot.slane %v1413, 1
    %v1415 = vadd.f32 %v1413, %v1414
    %v1416 = vsel %vm641, %v1370, 0.0
    %v1417 = vrot.slane %v1416, 4
    %v1418 = vadd.f32 %v1416, %v1417
    %v1419 = vrot.slane %v1418, 2
    %v1420 = vadd.f32 %v1418, %v1419
    %v1421 = vrot.slane %v1420, 1
    %v1422 = vadd.f32 %v1420, %v1421
    %v1423 = vsel %vm641, %v1373, 0.0
    %v1424 = vrot.slane %v1423, 4
    %v1425 = vadd.f32 %v1423, %v1424
    %v1426 = vrot.slane %v1425, 2
    %v1427 = vadd.f32 %v1425, %v1426
    %v1428 = vrot.slane %v1427, 1
    %v1429 = vadd.f32 %v1427, %v1428
    %v1430 = vsel %vm641, %v1376, 0.0
    %v1431 = vrot.slane %v1430, 4
    %v1432 = vadd.f32 %v1430, %v1431
    %v1433 = vrot.slane %v1432, 2
    %v1434 = vadd.f32 %v1432, %v1433
    %v1435 = vrot.slane %v1434, 1
    %v1436 = vadd.f32 %v1434, %v1435
    %v1437 = vsel %vm641, %v1379, 0.0
    %v1438 = vrot.slane %v1437, 4
    %v1439 = vadd.f32 %v1437, %v1438
    %v1440 = vrot.slane %v1439, 2
    %v1441 = vadd.f32 %v1439, %v1440
    %v1442 = vrot.slane %v1441, 1
    %v1443 = vadd.f32 %v1441, %v1442
    %v1444 = vrot.slane %v1057, 1
    %v1445 = vrot.slane %v1078, 1
    %v1446 = vrot.slane %v1099, 1
    %v1447 = vrot.slane %v1120, 1
    %v1448 = vrot.slane %v1141, 1
    %v1449 = vrot.slane %v1162, 1
    %v1450 = vrot.slane %v1183, 1
    %v1451 = vrot.slane %v1204, 1
    %v1460 = vsel %vm641, %v1444, 0.0
    %v1461 = vrot.slane %v1460, 4
    %v1462 = vadd.f32 %v1460, %v1461
    %v1463 = vrot.slane %v1462, 2
    %v1464 = vadd.f32 %v1462, %v1463
    %v1465 = vrot.slane %v1464, 1
    %v1466 = vadd.f32 %v1464, %v1465
    %v1467 = vsel %vm641, %v1445, 0.0
    %v1468 = vrot.slane %v1467, 4
    %v1469 = vadd.f32 %v1467, %v1468
    %v1470 = vrot.slane %v1469, 2
    %v1471 = vadd.f32 %v1469, %v1470
    %v1472 = vrot.slane %v1471, 1
    %v1473 = vadd.f32 %v1471, %v1472
    %v1474 = vsel %vm641, %v1446, 0.0
    %v1475 = vrot.slane %v1474, 4
    %v1476 = vadd.f32 %v1474, %v1475
    %v1477 = vrot.slane %v1476, 2
    %v1478 = vadd.f32 %v1476, %v1477
    %v1479 = vrot.slane %v1478, 1
    %v1480 = vadd.f32 %v1478, %v1479
    %v1481 = vsel %vm641, %v1447, 0.0
    %v1482 = vrot.slane %v1481, 4
    %v1483 = vadd.f32 %v1481, %v1482
    %v1484 = vrot.slane %v1483, 2
    %v1485 = vadd.f32 %v1483, %v1484
    %v1486 = vrot.slane %v1485, 1
    %v1487 = vadd.f32 %v1485, %v1486
    %v1488 = vsel %vm641, %v1448, 0.0
    %v1489 = vrot.slane %v1488, 4
    %v1490 = vadd.f32 %v1488, %v1489
    %v1491 = vrot.slane %v1490, 2
    %v1492 = vadd.f32 %v1490, %v1491
    %v1493 = vrot.slane %v1492, 1
    %v1494 = vadd.f32 %v1492, %v1493
    %v1495 = vsel %vm641, %v1449, 0.0
    %v1496 = vrot.slane %v1495, 4
    %v1497 = vadd.f32 %v1495, %v1496
    %v1498 = vrot.slane %v1497, 2
    %v1499 = vadd.f32 %v1497, %v1498
    %v1500 = vrot.slane %v1499, 1
    %v1501 = vadd.f32 %v1499, %v1500
    %v1502 = vsel %vm641, %v1450, 0.0
    %v1503 = vrot.slane %v1502, 4
    %v1504 = vadd.f32 %v1502, %v1503
    %v1505 = vrot.slane %v1504, 2
    %v1506 = vadd.f32 %v1504, %v1505
    %v1507 = vrot.slane %v1506, 1
    %v1508 = vadd.f32 %v1506, %v1507
    %v1509 = vsel %vm641, %v1451, 0.0
    %v1510 = vrot.slane %v1509, 4
    %v1511 = vadd.f32 %v1509, %v1510
    %v1512 = vrot.slane %v1511, 2
    %v1513 = vadd.f32 %v1511, %v1512
    %v1514 = vrot.slane %v1513, 1
    %v1515 = vadd.f32 %v1513, %v1514
    %v1524 = vrot.slane %v1057, 4
    %v1525 = vrot.slane %v1064, 4
    %v1526 = vsel %vm955, %v1524, %v1525
    %v1527 = vrot.slane %v1078, 4
    %v1528 = vrot.slane %v1085, 4
    %v1529 = vsel %vm955, %v1527, %v1528
    %v1530 = vrot.slane %v1099, 4
    %v1531 = vrot.slane %v1106, 4
    %v1532 = vsel %vm955, %v1530, %v1531
    %v1533 = vrot.slane %v1120, 4
    %v1534 = vrot.slane %v1127, 4
    %v1535 = vsel %vm955, %v1533, %v1534
    %v1536 = vrot.slane %v1141, 4
    %v1537 = vrot.slane %v1148, 4
    %v1538 = vsel %vm955, %v1536, %v1537
    %v1539 = vrot.slane %v1162, 4
    %v1540 = vrot.slane %v1169, 4
    %v1541 = vsel %vm955, %v1539, %v1540
    %v1542 = vrot.slane %v1183, 4
    %v1543 = vrot.slane %v1190, 4
    %v1544 = vsel %vm955, %v1542, %v1543
    %v1545 = vrot.slane %v1204, 4
    %v1546 = vrot.slane %v1211, 4
    %v1547 = vsel %vm955, %v1545, %v1546
    %v1556 = vsel %vm641, %v1526, 0.0
    %v1557 = vrot.slane %v1556, 4
    %v1558 = vadd.f32 %v1556, %v1557
    %v1559 = vrot.slane %v1558, 2
    %v1560 = vadd.f32 %v1558, %v1559
    %v1561 = vrot.slane %v1560, 1
    %v1562 = vadd.f32 %v1560, %v1561
    %v1563 = vsel %vm641, %v1529, 0.0
    %v1564 = vrot.slane %v1563, 4
    %v1565 = vadd.f32 %v1563, %v1564
    %v1566 = vrot.slane %v1565, 2
    %v1567 = vadd.f32 %v1565, %v1566
    %v1568 = vrot.slane %v1567, 1
    %v1569 = vadd.f32 %v1567, %v1568
    %v1570 = vsel %vm641, %v1532, 0.0
    %v1571 = vrot.slane %v1570, 4
    %v1572 = vadd.f32 %v1570, %v1571
    %v1573 = vrot.slane %v1572, 2
    %v1574 = vadd.f32 %v1572, %v1573
    %v1575 = vrot.slane %v1574, 1
    %v1576 = vadd.f32 %v1574, %v1575
    %v1577 = vsel %vm641, %v1535, 0.0
    %v1578 = vrot.slane %v1577, 4
    %v1579 = vadd.f32 %v1577, %v1578
    %v1580 = vrot.slane %v1579, 2
    %v1581 = vadd.f32 %v1579, %v1580
    %v1582 = vrot.slane %v1581, 1
    %v1583 = vadd.f32 %v1581, %v1582
    %v1584 = vsel %vm641, %v1538, 0.0
    %v1585 = vrot.slane %v1584, 4
    %v1586 = vadd.f32 %v1584, %v1585
    %v1587 = vrot.slane %v1586, 2
    %v1588 = vadd.f32 %v1586, %v1587
    %v1589 = vrot.slane %v1588, 1
    %v1590 = vadd.f32 %v1588, %v1589
    %v1591 = vsel %vm641, %v1541, 0.0
    %v1592 = vrot.slane %v1591, 4
    %v1593 = vadd.f32 %v1591, %v1592
    %v1594 = vrot.slane %v1593, 2
    %v1595 = vadd.f32 %v1593, %v1594
    %v1596 = vrot.slane %v1595, 1
    %v1597 = vadd.f32 %v1595, %v1596
    %v1598 = vsel %vm641, %v1544, 0.0
    %v1599 = vrot.slane %v1598, 4
    %v1600 = vadd.f32 %v1598, %v1599
    %v1601 = vrot.slane %v1600, 2
    %v1602 = vadd.f32 %v1600, %v1601
    %v1603 = vrot.slane %v1602, 1
    %v1604 = vadd.f32 %v1602, %v1603
    %v1605 = vsel %vm641, %v1547, 0.0
    %v1606 = vrot.slane %v1605, 4
    %v1607 = vadd.f32 %v1605, %v1606
    %v1608 = vrot.slane %v1607, 2
    %v1609 = vadd.f32 %v1607, %v1608
    %v1610 = vrot.slane %v1609, 1
    %v1611 = vadd.f32 %v1609, %v1610
    %v1612 = vadd.f32 %v1047, %v1049
    %v1613 = vsel %vm423, %v39, 0.0
    %v1614 = vadd.f32 %v1612, %v1613
    %v1615 = vsel %vm423, %v42, 0.0
    %v1616 = vadd.f32 %v1614, %v1615
    %v1617 = vsel %vm423, %v45, 0.0
    %v1618 = vadd.f32 %v1616, %v1617
    %v1619 = vadd.f32 %v1054, %v1056
    %v1620 = vsel %vm423, %v40, 0.0
    %v1621 = vadd.f32 %v1619, %v1620
    %v1622 = vsel %vm423, %v43, 0.0
    %v1623 = vadd.f32 %v1621, %v1622
    %v1624 = vsel %vm423, %v46, 0.0
    %v1625 = vadd.f32 %v1623, %v1624
    %v1626 = vadd.f32 %v1061, %v1063
    %v1627 = vsel %vm442, %v41, 0.0
    %v1628 = vadd.f32 %v1626, %v1627
    %v1629 = vsel %vm442, %v44, 0.0
    %v1630 = vadd.f32 %v1628, %v1629
    %v1631 = vsel %vm442, %v47, 0.0
    %v1632 = vadd.f32 %v1630, %v1631
    %v1633 = vadd.f32 %v1068, %v1070
    %v1634 = vsel %vm423, %v90, 0.0
    %v1635 = vadd.f32 %v1633, %v1634
    %v1636 = vsel %vm423, %v93, 0.0
    %v1637 = vadd.f32 %v1635, %v1636
    %v1638 = vsel %vm423, %v96, 0.0
    %v1639 = vadd.f32 %v1637, %v1638
    %v1640 = vadd.f32 %v1075, %v1077
    %v1641 = vsel %vm423, %v91, 0.0
    %v1642 = vadd.f32 %v1640, %v1641
    %v1643 = vsel %vm423, %v94, 0.0
    %v1644 = vadd.f32 %v1642, %v1643
    %v1645 = vsel %vm423, %v97, 0.0
    %v1646 = vadd.f32 %v1644, %v1645
    %v1647 = vadd.f32 %v1082, %v1084
    %v1648 = vsel %vm442, %v92, 0.0
    %v1649 = vadd.f32 %v1647, %v1648
    %v1650 = vsel %vm442, %v95, 0.0
    %v1651 = vadd.f32 %v1649, %v1650
    %v1652 = vsel %vm442, %v98, 0.0
    %v1653 = vadd.f32 %v1651, %v1652
    %v1654 = vadd.f32 %v1089, %v1091
    %v1655 = vsel %vm423, %v141, 0.0
    %v1656 = vadd.f32 %v1654, %v1655
    %v1657 = vsel %vm423, %v144, 0.0
    %v1658 = vadd.f32 %v1656, %v1657
    %v1659 = vsel %vm423, %v147, 0.0
    %v1660 = vadd.f32 %v1658, %v1659
    %v1661 = vadd.f32 %v1096, %v1098
    %v1662 = vsel %vm423, %v142, 0.0
    %v1663 = vadd.f32 %v1661, %v1662
    %v1664 = vsel %vm423, %v145, 0.0
    %v1665 = vadd.f32 %v1663, %v1664
    %v1666 = vsel %vm423, %v148, 0.0
    %v1667 = vadd.f32 %v1665, %v1666
    %v1668 = vadd.f32 %v1103, %v1105
    %v1669 = vsel %vm442, %v143, 0.0
    %v1670 = vadd.f32 %v1668, %v1669
    %v1671 = vsel %vm442, %v146, 0.0
    %v1672 = vadd.f32 %v1670, %v1671
    %v1673 = vsel %vm442, %v149, 0.0
    %v1674 = vadd.f32 %v1672, %v1673
    %v1675 = vadd.f32 %v1110, %v1112
    %v1676 = vsel %vm423, %v192, 0.0
    %v1677 = vadd.f32 %v1675, %v1676
    %v1678 = vsel %vm423, %v195, 0.0
    %v1679 = vadd.f32 %v1677, %v1678
    %v1680 = vsel %vm423, %v198, 0.0
    %v1681 = vadd.f32 %v1679, %v1680
    %v1682 = vadd.f32 %v1117, %v1119
    %v1683 = vsel %vm423, %v193, 0.0
    %v1684 = vadd.f32 %v1682, %v1683
    %v1685 = vsel %vm423, %v196, 0.0
    %v1686 = vadd.f32 %v1684, %v1685
    %v1687 = vsel %vm423, %v199, 0.0
    %v1688 = vadd.f32 %v1686, %v1687
    %v1689 = vadd.f32 %v1124, %v1126
    %v1690 = vsel %vm442, %v194, 0.0
    %v1691 = vadd.f32 %v1689, %v1690
    %v1692 = vsel %vm442, %v197, 0.0
    %v1693 = vadd.f32 %v1691, %v1692
    %v1694 = vsel %vm442, %v200, 0.0
    %v1695 = vadd.f32 %v1693, %v1694
    %v1696 = vadd.f32 %v1131, %v1133
    %v1697 = vsel %vm423, %v243, 0.0
    %v1698 = vadd.f32 %v1696, %v1697
    %v1699 = vsel %vm423, %v246, 0.0
    %v1700 = vadd.f32 %v1698, %v1699
    %v1701 = vsel %vm423, %v249, 0.0
    %v1702 = vadd.f32 %v1700, %v1701
    %v1703 = vadd.f32 %v1138, %v1140
    %v1704 = vsel %vm423, %v244, 0.0
    %v1705 = vadd.f32 %v1703, %v1704
    %v1706 = vsel %vm423, %v247, 0.0
    %v1707 = vadd.f32 %v1705, %v1706
    %v1708 = vsel %vm423, %v250, 0.0
    %v1709 = vadd.f32 %v1707, %v1708
    %v1710 = vadd.f32 %v1145, %v1147
    %v1711 = vsel %vm442, %v245, 0.0
    %v1712 = vadd.f32 %v1710, %v1711
    %v1713 = vsel %vm442, %v248, 0.0
    %v1714 = vadd.f32 %v1712, %v1713
    %v1715 = vsel %vm442, %v251, 0.0
    %v1716 = vadd.f32 %v1714, %v1715
    %v1717 = vadd.f32 %v1152, %v1154
    %v1718 = vsel %vm423, %v294, 0.0
    %v1719 = vadd.f32 %v1717, %v1718
    %v1720 = vsel %vm423, %v297, 0.0
    %v1721 = vadd.f32 %v1719, %v1720
    %v1722 = vsel %vm423, %v300, 0.0
    %v1723 = vadd.f32 %v1721, %v1722
    %v1724 = vadd.f32 %v1159, %v1161
    %v1725 = vsel %vm423, %v295, 0.0
    %v1726 = vadd.f32 %v1724, %v1725
    %v1727 = vsel %vm423, %v298, 0.0
    %v1728 = vadd.f32 %v1726, %v1727
    %v1729 = vsel %vm423, %v301, 0.0
    %v1730 = vadd.f32 %v1728, %v1729
    %v1731 = vadd.f32 %v1166, %v1168
    %v1732 = vsel %vm442, %v296, 0.0
    %v1733 = vadd.f32 %v1731, %v1732
    %v1734 = vsel %vm442, %v299, 0.0
    %v1735 = vadd.f32 %v1733, %v1734
    %v1736 = vsel %vm442, %v302, 0.0
    %v1737 = vadd.f32 %v1735, %v1736
    %v1738 = vadd.f32 %v1173, %v1175
    %v1739 = vsel %vm423, %v345, 0.0
    %v1740 = vadd.f32 %v1738, %v1739
    %v1741 = vsel %vm423, %v348, 0.0
    %v1742 = vadd.f32 %v1740, %v1741
    %v1743 = vsel %vm423, %v351, 0.0
    %v1744 = vadd.f32 %v1742, %v1743
    %v1745 = vadd.f32 %v1180, %v1182
    %v1746 = vsel %vm423, %v346, 0.0
    %v1747 = vadd.f32 %v1745, %v1746
    %v1748 = vsel %vm423, %v349, 0.0
    %v1749 = vadd.f32 %v1747, %v1748
    %v1750 = vsel %vm423, %v352, 0.0
    %v1751 = vadd.f32 %v1749, %v1750
    %v1752 = vadd.f32 %v1187, %v1189
    %v1753 = vsel %vm442, %v347, 0.0
    %v1754 = vadd.f32 %v1752, %v1753
    %v1755 = vsel %vm442, %v350, 0.0
    %v1756 = vadd.f32 %v1754, %v1755
    %v1757 = vsel %vm442, %v353, 0.0
    %v1758 = vadd.f32 %v1756, %v1757
    %v1759 = vadd.f32 %v1194, %v1196
    %v1760 = vsel %vm423, %v396, 0.0
    %v1761 = vadd.f32 %v1759, %v1760
    %v1762 = vsel %vm423, %v399, 0.0
    %v1763 = vadd.f32 %v1761, %v1762
    %v1764 = vsel %vm423, %v402, 0.0
    %v1765 = vadd.f32 %v1763, %v1764
    %v1766 = vadd.f32 %v1201, %v1203
    %v1767 = vsel %vm423, %v397, 0.0
    %v1768 = vadd.f32 %v1766, %v1767
    %v1769 = vsel %vm423, %v400, 0.0
    %v1770 = vadd.f32 %v1768, %v1769
    %v1771 = vsel %vm423, %v403, 0.0
    %v1772 = vadd.f32 %v1770, %v1771
    %v1773 = vadd.f32 %v1208, %v1210
    %v1774 = vsel %vm442, %v398, 0.0
    %v1775 = vadd.f32 %v1773, %v1774
    %v1776 = vsel %vm442, %v401, 0.0
    %v1777 = vadd.f32 %v1775, %v1776
    %v1778 = vsel %vm442, %v404, 0.0
    %v1779 = vadd.f32 %v1777, %v1778
    %v1780 = vsel %vm641, %v1618, 0.0
    %v1781 = vrot.slane %v1780, 4
    %v1782 = vadd.f32 %v1780, %v1781
    %v1783 = vrot.slane %v1782, 2
    %v1784 = vadd.f32 %v1782, %v1783
    %v1785 = vrot.slane %v1784, 1
    %v1786 = vadd.f32 %v1784, %v1785
    %v1787 = vsel %vm641, %v1639, 0.0
    %v1788 = vrot.slane %v1787, 4
    %v1789 = vadd.f32 %v1787, %v1788
    %v1790 = vrot.slane %v1789, 2
    %v1791 = vadd.f32 %v1789, %v1790
    %v1792 = vrot.slane %v1791, 1
    %v1793 = vadd.f32 %v1791, %v1792
    %v1794 = vsel %vm641, %v1660, 0.0
    %v1795 = vrot.slane %v1794, 4
    %v1796 = vadd.f32 %v1794, %v1795
    %v1797 = vrot.slane %v1796, 2
    %v1798 = vadd.f32 %v1796, %v1797
    %v1799 = vrot.slane %v1798, 1
    %v1800 = vadd.f32 %v1798, %v1799
    %v1801 = vsel %vm641, %v1681, 0.0
    %v1802 = vrot.slane %v1801, 4
    %v1803 = vadd.f32 %v1801, %v1802
    %v1804 = vrot.slane %v1803, 2
    %v1805 = vadd.f32 %v1803, %v1804
    %v1806 = vrot.slane %v1805, 1
    %v1807 = vadd.f32 %v1805, %v1806
    %v1808 = vsel %vm641, %v1702, 0.0
    %v1809 = vrot.slane %v1808, 4
    %v1810 = vadd.f32 %v1808, %v1809
    %v1811 = vrot.slane %v1810, 2
    %v1812 = vadd.f32 %v1810, %v1811
    %v1813 = vrot.slane %v1812, 1
    %v1814 = vadd.f32 %v1812, %v1813
    %v1815 = vsel %vm641, %v1723, 0.0
    %v1816 = vrot.slane %v1815, 4
    %v1817 = vadd.f32 %v1815, %v1816
    %v1818 = vrot.slane %v1817, 2
    %v1819 = vadd.f32 %v1817, %v1818
    %v1820 = vrot.slane %v1819, 1
    %v1821 = vadd.f32 %v1819, %v1820
    %v1822 = vsel %vm641, %v1744, 0.0
    %v1823 = vrot.slane %v1822, 4
    %v1824 = vadd.f32 %v1822, %v1823
    %v1825 = vrot.slane %v1824, 2
    %v1826 = vadd.f32 %v1824, %v1825
    %v1827 = vrot.slane %v1826, 1
    %v1828 = vadd.f32 %v1826, %v1827
    %v1829 = vsel %vm641, %v1765, 0.0
    %v1830 = vrot.slane %v1829, 4
    %v1831 = vadd.f32 %v1829, %v1830
    %v1832 = vrot.slane %v1831, 2
    %v1833 = vadd.f32 %v1831, %v1832
    %v1834 = vrot.slane %v1833, 1
    %v1835 = vadd.f32 %v1833, %v1834
    %v1844 = vrot.slane %v1618, 3
    %v1845 = vrot.slane %v1639, 3
    %v1846 = vrot.slane %v1660, 3
    %v1847 = vrot.slane %v1681, 3
    %v1848 = vrot.slane %v1702, 3
    %v1849 = vrot.slane %v1723, 3
    %v1850 = vrot.slane %v1744, 3
    %v1851 = vrot.slane %v1765, 3
    %v1860 = vsel %vm641, %v1844, 0.0
    %v1861 = vrot.slane %v1860, 4
    %v1862 = vadd.f32 %v1860, %v1861
    %v1863 = vrot.slane %v1862, 2
    %v1864 = vadd.f32 %v1862, %v1863
    %v1865 = vrot.slane %v1864, 1
    %v1866 = vadd.f32 %v1864, %v1865
    %v1867 = vsel %vm641, %v1845, 0.0
    %v1868 = vrot.slane %v1867, 4
    %v1869 = vadd.f32 %v1867, %v1868
    %v1870 = vrot.slane %v1869, 2
    %v1871 = vadd.f32 %v1869, %v1870
    %v1872 = vrot.slane %v1871, 1
    %v1873 = vadd.f32 %v1871, %v1872
    %v1874 = vsel %vm641, %v1846, 0.0
    %v1875 = vrot.slane %v1874, 4
    %v1876 = vadd.f32 %v1874, %v1875
    %v1877 = vrot.slane %v1876, 2
    %v1878 = vadd.f32 %v1876, %v1877
    %v1879 = vrot.slane %v1878, 1
    %v1880 = vadd.f32 %v1878, %v1879
    %v1881 = vsel %vm641, %v1847, 0.0
    %v1882 = vrot.slane %v1881, 4
    %v1883 = vadd.f32 %v1881, %v1882
    %v1884 = vrot.slane %v1883, 2
    %v1885 = vadd.f32 %v1883, %v1884
    %v1886 = vrot.slane %v1885, 1
    %v1887 = vadd.f32 %v1885, %v1886
    %v1888 = vsel %vm641, %v1848, 0.0
    %v1889 = vrot.slane %v1888, 4
    %v1890 = vadd.f32 %v1888, %v1889
    %v1891 = vrot.slane %v1890, 2
    %v1892 = vadd.f32 %v1890, %v1891
    %v1893 = vrot.slane %v1892, 1
    %v1894 = vadd.f32 %v1892, %v1893
    %v1895 = vsel %vm641, %v1849, 0.0
    %v1896 = vrot.slane %v1895, 4
    %v1897 = vadd.f32 %v1895, %v1896
    %v1898 = vrot.slane %v1897, 2
    %v1899 = vadd.f32 %v1897, %v1898
    %v1900 = vrot.slane %v1899, 1
    %v1901 = vadd.f32 %v1899, %v1900
    %v1902 = vsel %vm641, %v1850, 0.0
    %v1903 = vrot.slane %v1902, 4
    %v1904 = vadd.f32 %v1902, %v1903
    %v1905 = vrot.slane %v1904, 2
    %v1906 = vadd.f32 %v1904, %v1905
    %v1907 = vrot.slane %v1906, 1
    %v1908 = vadd.f32 %v1906, %v1907
    %v1909 = vsel %vm641, %v1851, 0.0
    %v1910 = vrot.slane %v1909, 4
    %v1911 = vadd.f32 %v1909, %v1910
    %v1912 = vrot.slane %v1911, 2
    %v1913 = vadd.f32 %v1911, %v1912
    %v1914 = vrot.slane %v1913, 1
    %v1915 = vadd.f32 %v1913, %v1914
    %v1924 = vrot.slane %v1618, 6
    %v1925 = vrot.slane %v1625, 6
    %v1926 = vsel %vm786, %v1924, %v1925
    %v1927 = vrot.slane %v1639, 6
    %v1928 = vrot.slane %v1646, 6
    %v1929 = vsel %vm786, %v1927, %v1928
    %v1930 = vrot.slane %v1660, 6
    %v1931 = vrot.slane %v1667, 6
    %v1932 = vsel %vm786, %v1930, %v1931
    %v1933 = vrot.slane %v1681, 6
    %v1934 = vrot.slane %v1688, 6
    %v1935 = vsel %vm786, %v1933, %v1934
    %v1936 = vrot.slane %v1702, 6
    %v1937 = vrot.slane %v1709, 6
    %v1938 = vsel %vm786, %v1936, %v1937
    %v1939 = vrot.slane %v1723, 6
    %v1940 = vrot.slane %v1730, 6
    %v1941 = vsel %vm786, %v1939, %v1940
    %v1942 = vrot.slane %v1744, 6
    %v1943 = vrot.slane %v1751, 6
    %v1944 = vsel %vm786, %v1942, %v1943
    %v1945 = vrot.slane %v1765, 6
    %v1946 = vrot.slane %v1772, 6
    %v1947 = vsel %vm786, %v1945, %v1946
    %v1956 = vsel %vm641, %v1926, 0.0
    %v1957 = vrot.slane %v1956, 4
    %v1958 = vadd.f32 %v1956, %v1957
    %v1959 = vrot.slane %v1958, 2
    %v1960 = vadd.f32 %v1958, %v1959
    %v1961 = vrot.slane %v1960, 1
    %v1962 = vadd.f32 %v1960, %v1961
    %v1963 = vsel %vm641, %v1929, 0.0
    %v1964 = vrot.slane %v1963, 4
    %v1965 = vadd.f32 %v1963, %v1964
    %v1966 = vrot.slane %v1965, 2
    %v1967 = vadd.f32 %v1965, %v1966
    %v1968 = vrot.slane %v1967, 1
    %v1969 = vadd.f32 %v1967, %v1968
    %v1970 = vsel %vm641, %v1932, 0.0
    %v1971 = vrot.slane %v1970, 4
    %v1972 = vadd.f32 %v1970, %v1971
    %v1973 = vrot.slane %v1972, 2
    %v1974 = vadd.f32 %v1972, %v1973
    %v1975 = vrot.slane %v1974, 1
    %v1976 = vadd.f32 %v1974, %v1975
    %v1977 = vsel %vm641, %v1935, 0.0
    %v1978 = vrot.slane %v1977, 4
    %v1979 = vadd.f32 %v1977, %v1978
    %v1980 = vrot.slane %v1979, 2
    %v1981 = vadd.f32 %v1979, %v1980
    %v1982 = vrot.slane %v1981, 1
    %v1983 = vadd.f32 %v1981, %v1982
    %v1984 = vsel %vm641, %v1938, 0.0
    %v1985 = vrot.slane %v1984, 4
    %v1986 = vadd.f32 %v1984, %v1985
    %v1987 = vrot.slane %v1986, 2
    %v1988 = vadd.f32 %v1986, %v1987
    %v1989 = vrot.slane %v1988, 1
    %v1990 = vadd.f32 %v1988, %v1989
    %v1991 = vsel %vm641, %v1941, 0.0
    %v1992 = vrot.slane %v1991, 4
    %v1993 = vadd.f32 %v1991, %v1992
    %v1994 = vrot.slane %v1993, 2
    %v1995 = vadd.f32 %v1993, %v1994
    %v1996 = vrot.slane %v1995, 1
    %v1997 = vadd.f32 %v1995, %v1996
    %v1998 = vsel %vm641, %v1944, 0.0
    %v1999 = vrot.slane %v1998, 4
    %v2000 = vadd.f32 %v1998, %v1999
    %v2001 = vrot.slane %v2000, 2
    %v2002 = vadd.f32 %v2000, %v2001
    %v2003 = vrot.slane %v2002, 1
    %v2004 = vadd.f32 %v2002, %v2003
    %v2005 = vsel %vm641, %v1947, 0.0
    %v2006 = vrot.slane %v2005, 4
    %v2007 = vadd.f32 %v2005, %v2006
    %v2008 = vrot.slane %v2007, 2
    %v2009 = vadd.f32 %v2007, %v2008
    %v2010 = vrot.slane %v2009, 1
    %v2011 = vadd.f32 %v2009, %v2010
    %v2012 = vrot.slane %v1625, 1
    %v2013 = vrot.slane %v1646, 1
    %v2014 = vrot.slane %v1667, 1
    %v2015 = vrot.slane %v1688, 1
    %v2016 = vrot.slane %v1709, 1
    %v2017 = vrot.slane %v1730, 1
    %v2018 = vrot.slane %v1751, 1
    %v2019 = vrot.slane %v1772, 1
    %v2028 = vsel %vm641, %v2012, 0.0
    %v2029 = vrot.slane %v2028, 4
    %v2030 = vadd.f32 %v2028, %v2029
    %v2031 = vrot.slane %v2030, 2
    %v2032 = vadd.f32 %v2030, %v2031
    %v2033 = vrot.slane %v2032, 1
    %v2034 = vadd.f32 %v2032, %v2033
    %v2035 = vsel %vm641, %v2013, 0.0
    %v2036 = vrot.slane %v2035, 4
    %v2037 = vadd.f32 %v2035, %v2036
    %v2038 = vrot.slane %v2037, 2
    %v2039 = vadd.f32 %v2037, %v2038
    %v2040 = vrot.slane %v2039, 1
    %v2041 = vadd.f32 %v2039, %v2040
    %v2042 = vsel %vm641, %v2014, 0.0
    %v2043 = vrot.slane %v2042, 4
    %v2044 = vadd.f32 %v2042, %v2043
    %v2045 = vrot.slane %v2044, 2
    %v2046 = vadd.f32 %v2044, %v2045
    %v2047 = vrot.slane %v2046, 1
    %v2048 = vadd.f32 %v2046, %v2047
    %v2049 = vsel %vm641, %v2015, 0.0
    %v2050 = vrot.slane %v2049, 4
    %v2051 = vadd.f32 %v2049, %v2050
    %v2052 = vrot.slane %v2051, 2
    %v2053 = vadd.f32 %v2051, %v2052
    %v2054 = vrot.slane %v2053, 1
    %v2055 = vadd.f32 %v2053, %v2054
    %v2056 = vsel %vm641, %v2016, 0.0
    %v2057 = vrot.slane %v2056, 4
    %v2058 = vadd.f32 %v2056, %v2057
    %v2059 = vrot.slane %v2058, 2
    %v2060 = vadd.f32 %v2058, %v2059
    %v2061 = vrot.slane %v2060, 1
    %v2062 = vadd.f32 %v2060, %v2061
    %v2063 = vsel %vm641, %v2017, 0.0
    %v2064 = vrot.slane %v2063, 4
    %v2065 = vadd.f32 %v2063, %v2064
    %v2066 = vrot.slane %v2065, 2
    %v2067 = vadd.f32 %v2065, %v2066
    %v2068 = vrot.slane %v2067, 1
    %v2069 = vadd.f32 %v2067, %v2068
    %v2070 = vsel %vm641, %v2018, 0.0
    %v2071 = vrot.slane %v2070, 4
    %v2072 = vadd.f32 %v2070, %v2071
    %v2073 = vrot.slane %v2072, 2
    %v2074 = vadd.f32 %v2072, %v2073
    %v2075 = vrot.slane %v2074, 1
    %v2076 = vadd.f32 %v2074, %v2075
    %v2077 = vsel %vm641, %v2019, 0.0
    %v2078 = vrot.slane %v2077, 4
    %v2079 = vadd.f32 %v2077, %v2078
    %v2080 = vrot.slane %v2079, 2
    %v2081 = vadd.f32 %v2079, %v2080
    %v2082 = vrot.slane %v2081, 1
    %v2083 = vadd.f32 %v2081, %v2082
    %v2092 = vrot.slane %v1625, 4
    %v2093 = vrot.slane %v1632, 4
    %v2094 = vsel %vm955, %v2092, %v2093
    %v2095 = vrot.slane %v1646, 4
    %v2096 = vrot.slane %v1653, 4
    %v2097 = vsel %vm955, %v2095, %v2096
    %v2098 = vrot.slane %v1667, 4
    %v2099 = vrot.slane %v1674, 4
    %v2100 = vsel %vm955, %v2098, %v2099
    %v2101 = vrot.slane %v1688, 4
    %v2102 = vrot.slane %v1695, 4
    %v2103 = vsel %vm955, %v2101, %v2102
    %v2104 = vrot.slane %v1709, 4
    %v2105 = vrot.slane %v1716, 4
    %v2106 = vsel %vm955, %v2104, %v2105
    %v2107 = vrot.slane %v1730, 4
    %v2108 = vrot.slane %v1737, 4
    %v2109 = vsel %vm955, %v2107, %v2108
    %v2110 = vrot.slane %v1751, 4
    %v2111 = vrot.slane %v1758, 4
    %v2112 = vsel %vm955, %v2110, %v2111
    %v2113 = vrot.slane %v1772, 4
    %v2114 = vrot.slane %v1779, 4
    %v2115 = vsel %vm955, %v2113, %v2114
    %v2124 = vsel %vm641, %v2094, 0.0
    %v2125 = vrot.slane %v2124, 4
    %v2126 = vadd.f32 %v2124, %v2125
    %v2127 = vrot.slane %v2126, 2
    %v2128 = vadd.f32 %v2126, %v2127
    %v2129 = vrot.slane %v2128, 1
    %v2130 = vadd.f32 %v2128, %v2129
    %v2131 = vsel %vm641, %v2097, 0.0
    %v2132 = vrot.slane %v2131, 4
    %v2133 = vadd.f32 %v2131, %v2132
    %v2134 = vrot.slane %v2133, 2
    %v2135 = vadd.f32 %v2133, %v2134
    %v2136 = vrot.slane %v2135, 1
    %v2137 = vadd.f32 %v2135, %v2136
    %v2138 = vsel %vm641, %v2100, 0.0
    %v2139 = vrot.slane %v2138, 4
    %v2140 = vadd.f32 %v2138, %v2139
    %v2141 = vrot.slane %v2140, 2
    %v2142 = vadd.f32 %v2140, %v2141
    %v2143 = vrot.slane %v2142, 1
    %v2144 = vadd.f32 %v2142, %v2143
    %v2145 = vsel %vm641, %v2103, 0.0
    %v2146 = vrot.slane %v2145, 4
    %v2147 = vadd.f32 %v2145, %v2146
    %v2148 = vrot.slane %v2147, 2
    %v2149 = vadd.f32 %v2147, %v2148
    %v2150 = vrot.slane %v2149, 1
    %v2151 = vadd.f32 %v2149, %v2150
    %v2152 = vsel %vm641, %v2106, 0.0
    %v2153 = vrot.slane %v2152, 4
    %v2154 = vadd.f32 %v2152, %v2153
    %v2155 = vrot.slane %v2154, 2
    %v2156 = vadd.f32 %v2154, %v2155
    %v2157 = vrot.slane %v2156, 1
    %v2158 = vadd.f32 %v2156, %v2157
    %v2159 = vsel %vm641, %v2109, 0.0
    %v2160 = vrot.slane %v2159, 4
    %v2161 = vadd.f32 %v2159, %v2160
    %v2162 = vrot.slane %v2161, 2
    %v2163 = vadd.f32 %v2161, %v2162
    %v2164 = vrot.slane %v2163, 1
    %v2165 = vadd.f32 %v2163, %v2164
    %v2166 = vsel %vm641, %v2112, 0.0
    %v2167 = vrot.slane %v2166, 4
    %v2168 = vadd.f32 %v2166, %v2167
    %v2169 = vrot.slane %v2168, 2
    %v2170 = vadd.f32 %v2168, %v2169
    %v2171 = vrot.slane %v2170, 1
    %v2172 = vadd.f32 %v2170, %v2171
    %v2173 = vsel %vm641, %v2115, 0.0
    %v2174 = vrot.slane %v2173, 4
    %v2175 = vadd.f32 %v2173, %v2174
    %v2176 = vrot.slane %v2175, 2
    %v2177 = vadd.f32 %v2175, %v2176
    %v2178 = vrot.slane %v2177, 1
    %v2179 = vadd.f32 %v2177, %v2178
    %v2180 = vadd.f32 %v1615, %v1617
    %v2181 = vsel %vm423, %v48, 0.0
    %v2182 = vadd.f32 %v2180, %v2181
    %v2183 = vsel %vm423, %v51, 0.0
    %v2184 = vadd.f32 %v2182, %v2183
    %v2185 = vsel %vm423, %v54, 0.0
    %v2186 = vadd.f32 %v2184, %v2185
    %v2187 = vadd.f32 %v1622, %v1624
    %v2188 = vsel %vm423, %v49, 0.0
    %v2189 = vadd.f32 %v2187, %v2188
    %v2190 = vsel %vm423, %v52, 0.0
    %v2191 = vadd.f32 %v2189, %v2190
    %v2192 = vsel %vm423, %v55, 0.0
    %v2193 = vadd.f32 %v2191, %v2192
    %v2194 = vadd.f32 %v1629, %v1631
    %v2195 = vsel %vm442, %v50, 0.0
    %v2196 = vadd.f32 %v2194, %v2195
    %v2197 = vsel %vm442, %v53, 0.0
    %v2198 = vadd.f32 %v2196, %v2197
    %v2199 = vsel %vm442, %v56, 0.0
    %v2200 = vadd.f32 %v2198, %v2199
    %v2201 = vadd.f32 %v1636, %v1638
    %v2202 = vsel %vm423, %v99, 0.0
    %v2203 = vadd.f32 %v2201, %v2202
    %v2204 = vsel %vm423, %v102, 0.0
    %v2205 = vadd.f32 %v2203, %v2204
    %v2206 = vsel %vm423, %v105, 0.0
    %v2207 = vadd.f32 %v2205, %v2206
    %v2208 = vadd.f32 %v1643, %v1645
    %v2209 = vsel %vm423, %v100, 0.0
    %v2210 = vadd.f32 %v2208, %v2209
    %v2211 = vsel %vm423, %v103, 0.0
    %v2212 = vadd.f32 %v2210, %v2211
    %v2213 = vsel %vm423, %v106, 0.0
    %v2214 = vadd.f32 %v2212, %v2213
    %v2215 = vadd.f32 %v1650, %v1652
    %v2216 = vsel %vm442, %v101, 0.0
    %v2217 = vadd.f32 %v2215, %v2216
    %v2218 = vsel %vm442, %v104, 0.0
    %v2219 = vadd.f32 %v2217, %v2218
    %v2220 = vsel %vm442, %v107, 0.0
    %v2221 = vadd.f32 %v2219, %v2220
    %v2222 = vadd.f32 %v1657, %v1659
    %v2223 = vsel %vm423, %v150, 0.0
    %v2224 = vadd.f32 %v2222, %v2223
    %v2225 = vsel %vm423, %v153, 0.0
    %v2226 = vadd.f32 %v2224, %v2225
    %v2227 = vsel %vm423, %v156, 0.0
    %v2228 = vadd.f32 %v2226, %v2227
    %v2229 = vadd.f32 %v1664, %v1666
    %v2230 = vsel %vm423, %v151, 0.0
    %v2231 = vadd.f32 %v2229, %v2230
    %v2232 = vsel %vm423, %v154, 0.0
    %v2233 = vadd.f32 %v2231, %v2232
    %v2234 = vsel %vm423, %v157, 0.0
    %v2235 = vadd.f32 %v2233, %v2234
    %v2236 = vadd.f32 %v1671, %v1673
    %v2237 = vsel %vm442, %v152, 0.0
    %v2238 = vadd.f32 %v2236, %v2237
    %v2239 = vsel %vm442, %v155, 0.0
    %v2240 = vadd.f32 %v2238, %v2239
    %v2241 = vsel %vm442, %v158, 0.0
    %v2242 = vadd.f32 %v2240, %v2241
    %v2243 = vadd.f32 %v1678, %v1680
    %v2244 = vsel %vm423, %v201, 0.0
    %v2245 = vadd.f32 %v2243, %v2244
    %v2246 = vsel %vm423, %v204, 0.0
    %v2247 = vadd.f32 %v2245, %v2246
    %v2248 = vsel %vm423, %v207, 0.0
    %v2249 = vadd.f32 %v2247, %v2248
    %v2250 = vadd.f32 %v1685, %v1687
    %v2251 = vsel %vm423, %v202, 0.0
    %v2252 = vadd.f32 %v2250, %v2251
    %v2253 = vsel %vm423, %v205, 0.0
    %v2254 = vadd.f32 %v2252, %v2253
    %v2255 = vsel %vm423, %v208, 0.0
    %v2256 = vadd.f32 %v2254, %v2255
    %v2257 = vadd.f32 %v1692, %v1694
    %v2258 = vsel %vm442, %v203, 0.0
    %v2259 = vadd.f32 %v2257, %v2258
    %v2260 = vsel %vm442, %v206, 0.0
    %v2261 = vadd.f32 %v2259, %v2260
    %v2262 = vsel %vm442, %v209, 0.0
    %v2263 = vadd.f32 %v2261, %v2262
    %v2264 = vadd.f32 %v1699, %v1701
    %v2265 = vsel %vm423, %v252, 0.0
    %v2266 = vadd.f32 %v2264, %v2265
    %v2267 = vsel %vm423, %v255, 0.0
    %v2268 = vadd.f32 %v2266, %v2267
    %v2269 = vsel %vm423, %v258, 0.0
    %v2270 = vadd.f32 %v2268, %v2269
    %v2271 = vadd.f32 %v1706, %v1708
    %v2272 = vsel %vm423, %v253, 0.0
    %v2273 = vadd.f32 %v2271, %v2272
    %v2274 = vsel %vm423, %v256, 0.0
    %v2275 = vadd.f32 %v2273, %v2274
    %v2276 = vsel %vm423, %v259, 0.0
    %v2277 = vadd.f32 %v2275, %v2276
    %v2278 = vadd.f32 %v1713, %v1715
    %v2279 = vsel %vm442, %v254, 0.0
    %v2280 = vadd.f32 %v2278, %v2279
    %v2281 = vsel %vm442, %v257, 0.0
    %v2282 = vadd.f32 %v2280, %v2281
    %v2283 = vsel %vm442, %v260, 0.0
    %v2284 = vadd.f32 %v2282, %v2283
    %v2285 = vadd.f32 %v1720, %v1722
    %v2286 = vsel %vm423, %v303, 0.0
    %v2287 = vadd.f32 %v2285, %v2286
    %v2288 = vsel %vm423, %v306, 0.0
    %v2289 = vadd.f32 %v2287, %v2288
    %v2290 = vsel %vm423, %v309, 0.0
    %v2291 = vadd.f32 %v2289, %v2290
    %v2292 = vadd.f32 %v1727, %v1729
    %v2293 = vsel %vm423, %v304, 0.0
    %v2294 = vadd.f32 %v2292, %v2293
    %v2295 = vsel %vm423, %v307, 0.0
    %v2296 = vadd.f32 %v2294, %v2295
    %v2297 = vsel %vm423, %v310, 0.0
    %v2298 = vadd.f32 %v2296, %v2297
    %v2299 = vadd.f32 %v1734, %v1736
    %v2300 = vsel %vm442, %v305, 0.0
    %v2301 = vadd.f32 %v2299, %v2300
    %v2302 = vsel %vm442, %v308, 0.0
    %v2303 = vadd.f32 %v2301, %v2302
    %v2304 = vsel %vm442, %v311, 0.0
    %v2305 = vadd.f32 %v2303, %v2304
    %v2306 = vadd.f32 %v1741, %v1743
    %v2307 = vsel %vm423, %v354, 0.0
    %v2308 = vadd.f32 %v2306, %v2307
    %v2309 = vsel %vm423, %v357, 0.0
    %v2310 = vadd.f32 %v2308, %v2309
    %v2311 = vsel %vm423, %v360, 0.0
    %v2312 = vadd.f32 %v2310, %v2311
    %v2313 = vadd.f32 %v1748, %v1750
    %v2314 = vsel %vm423, %v355, 0.0
    %v2315 = vadd.f32 %v2313, %v2314
    %v2316 = vsel %vm423, %v358, 0.0
    %v2317 = vadd.f32 %v2315, %v2316
    %v2318 = vsel %vm423, %v361, 0.0
    %v2319 = vadd.f32 %v2317, %v2318
    %v2320 = vadd.f32 %v1755, %v1757
    %v2321 = vsel %vm442, %v356, 0.0
    %v2322 = vadd.f32 %v2320, %v2321
    %v2323 = vsel %vm442, %v359, 0.0
    %v2324 = vadd.f32 %v2322, %v2323
    %v2325 = vsel %vm442, %v362, 0.0
    %v2326 = vadd.f32 %v2324, %v2325
    %v2327 = vadd.f32 %v1762, %v1764
    %v2328 = vsel %vm423, %v405, 0.0
    %v2329 = vadd.f32 %v2327, %v2328
    %v2330 = vsel %vm423, %v408, 0.0
    %v2331 = vadd.f32 %v2329, %v2330
    %v2332 = vsel %vm423, %v411, 0.0
    %v2333 = vadd.f32 %v2331, %v2332
    %v2334 = vadd.f32 %v1769, %v1771
    %v2335 = vsel %vm423, %v406, 0.0
    %v2336 = vadd.f32 %v2334, %v2335
    %v2337 = vsel %vm423, %v409, 0.0
    %v2338 = vadd.f32 %v2336, %v2337
    %v2339 = vsel %vm423, %v412, 0.0
    %v2340 = vadd.f32 %v2338, %v2339
    %v2341 = vadd.f32 %v1776, %v1778
    %v2342 = vsel %vm442, %v407, 0.0
    %v2343 = vadd.f32 %v2341, %v2342
    %v2344 = vsel %vm442, %v410, 0.0
    %v2345 = vadd.f32 %v2343, %v2344
    %v2346 = vsel %vm442, %v413, 0.0
    %v2347 = vadd.f32 %v2345, %v2346
    %v2348 = vsel %vm641, %v2186, 0.0
    %v2349 = vrot.slane %v2348, 4
    %v2350 = vadd.f32 %v2348, %v2349
    %v2351 = vrot.slane %v2350, 2
    %v2352 = vadd.f32 %v2350, %v2351
    %v2353 = vrot.slane %v2352, 1
    %v2354 = vadd.f32 %v2352, %v2353
    %v2355 = vsel %vm641, %v2207, 0.0
    %v2356 = vrot.slane %v2355, 4
    %v2357 = vadd.f32 %v2355, %v2356
    %v2358 = vrot.slane %v2357, 2
    %v2359 = vadd.f32 %v2357, %v2358
    %v2360 = vrot.slane %v2359, 1
    %v2361 = vadd.f32 %v2359, %v2360
    %v2362 = vsel %vm641, %v2228, 0.0
    %v2363 = vrot.slane %v2362, 4
    %v2364 = vadd.f32 %v2362, %v2363
    %v2365 = vrot.slane %v2364, 2
    %v2366 = vadd.f32 %v2364, %v2365
    %v2367 = vrot.slane %v2366, 1
    %v2368 = vadd.f32 %v2366, %v2367
    %v2369 = vsel %vm641, %v2249, 0.0
    %v2370 = vrot.slane %v2369, 4
    %v2371 = vadd.f32 %v2369, %v2370
    %v2372 = vrot.slane %v2371, 2
    %v2373 = vadd.f32 %v2371, %v2372
    %v2374 = vrot.slane %v2373, 1
    %v2375 = vadd.f32 %v2373, %v2374
    %v2376 = vsel %vm641, %v2270, 0.0
    %v2377 = vrot.slane %v2376, 4
    %v2378 = vadd.f32 %v2376, %v2377
    %v2379 = vrot.slane %v2378, 2
    %v2380 = vadd.f32 %v2378, %v2379
    %v2381 = vrot.slane %v2380, 1
    %v2382 = vadd.f32 %v2380, %v2381
    %v2383 = vsel %vm641, %v2291, 0.0
    %v2384 = vrot.slane %v2383, 4
    %v2385 = vadd.f32 %v2383, %v2384
    %v2386 = vrot.slane %v2385, 2
    %v2387 = vadd.f32 %v2385, %v2386
    %v2388 = vrot.slane %v2387, 1
    %v2389 = vadd.f32 %v2387, %v2388
    %v2390 = vsel %vm641, %v2312, 0.0
    %v2391 = vrot.slane %v2390, 4
    %v2392 = vadd.f32 %v2390, %v2391
    %v2393 = vrot.slane %v2392, 2
    %v2394 = vadd.f32 %v2392, %v2393
    %v2395 = vrot.slane %v2394, 1
    %v2396 = vadd.f32 %v2394, %v2395
    %v2397 = vsel %vm641, %v2333, 0.0
    %v2398 = vrot.slane %v2397, 4
    %v2399 = vadd.f32 %v2397, %v2398
    %v2400 = vrot.slane %v2399, 2
    %v2401 = vadd.f32 %v2399, %v2400
    %v2402 = vrot.slane %v2401, 1
    %v2403 = vadd.f32 %v2401, %v2402
    %v2412 = vrot.slane %v2186, 3
    %v2413 = vrot.slane %v2207, 3
    %v2414 = vrot.slane %v2228, 3
    %v2415 = vrot.slane %v2249, 3
    %v2416 = vrot.slane %v2270, 3
    %v2417 = vrot.slane %v2291, 3
    %v2418 = vrot.slane %v2312, 3
    %v2419 = vrot.slane %v2333, 3
    %v2428 = vsel %vm641, %v2412, 0.0
    %v2429 = vrot.slane %v2428, 4
    %v2430 = vadd.f32 %v2428, %v2429
    %v2431 = vrot.slane %v2430, 2
    %v2432 = vadd.f32 %v2430, %v2431
    %v2433 = vrot.slane %v2432, 1
    %v2434 = vadd.f32 %v2432, %v2433
    %v2435 = vsel %vm641, %v2413, 0.0
    %v2436 = vrot.slane %v2435, 4
    %v2437 = vadd.f32 %v2435, %v2436
    %v2438 = vrot.slane %v2437, 2
    %v2439 = vadd.f32 %v2437, %v2438
    %v2440 = vrot.slane %v2439, 1
    %v2441 = vadd.f32 %v2439, %v2440
    %v2442 = vsel %vm641, %v2414, 0.0
    %v2443 = vrot.slane %v2442, 4
    %v2444 = vadd.f32 %v2442, %v2443
    %v2445 = vrot.slane %v2444, 2
    %v2446 = vadd.f32 %v2444, %v2445
    %v2447 = vrot.slane %v2446, 1
    %v2448 = vadd.f32 %v2446, %v2447
    %v2449 = vsel %vm641, %v2415, 0.0
    %v2450 = vrot.slane %v2449, 4
    %v2451 = vadd.f32 %v2449, %v2450
    %v2452 = vrot.slane %v2451, 2
    %v2453 = vadd.f32 %v2451, %v2452
    %v2454 = vrot.slane %v2453, 1
    %v2455 = vadd.f32 %v2453, %v2454
    %v2456 = vsel %vm641, %v2416, 0.0
    %v2457 = vrot.slane %v2456, 4
    %v2458 = vadd.f32 %v2456, %v2457
    %v2459 = vrot.slane %v2458, 2
    %v2460 = vadd.f32 %v2458, %v2459
    %v2461 = vrot.slane %v2460, 1
    %v2462 = vadd.f32 %v2460, %v2461
    %v2463 = vsel %vm641, %v2417, 0.0
    %v2464 = vrot.slane %v2463, 4
    %v2465 = vadd.f32 %v2463, %v2464
    %v2466 = vrot.slane %v2465, 2
    %v2467 = vadd.f32 %v2465, %v2466
    %v2468 = vrot.slane %v2467, 1
    %v2469 = vadd.f32 %v2467, %v2468
    %v2470 = vsel %vm641, %v2418, 0.0
    %v2471 = vrot.slane %v2470, 4
    %v2472 = vadd.f32 %v2470, %v2471
    %v2473 = vrot.slane %v2472, 2
    %v2474 = vadd.f32 %v2472, %v2473
    %v2475 = vrot.slane %v2474, 1
    %v2476 = vadd.f32 %v2474, %v2475
    %v2477 = vsel %vm641, %v2419, 0.0
    %v2478 = vrot.slane %v2477, 4
    %v2479 = vadd.f32 %v2477, %v2478
    %v2480 = vrot.slane %v2479, 2
    %v2481 = vadd.f32 %v2479, %v2480
    %v2482 = vrot.slane %v2481, 1
    %v2483 = vadd.f32 %v2481, %v2482
    %v2492 = vrot.slane %v2186, 6
    %v2493 = vrot.slane %v2193, 6
    %v2494 = vsel %vm786, %v2492, %v2493
    %v2495 = vrot.slane %v2207, 6
    %v2496 = vrot.slane %v2214, 6
    %v2497 = vsel %vm786, %v2495, %v2496
    %v2498 = vrot.slane %v2228, 6
    %v2499 = vrot.slane %v2235, 6
    %v2500 = vsel %vm786, %v2498, %v2499
    %v2501 = vrot.slane %v2249, 6
    %v2502 = vrot.slane %v2256, 6
    %v2503 = vsel %vm786, %v2501, %v2502
    %v2504 = vrot.slane %v2270, 6
    %v2505 = vrot.slane %v2277, 6
    %v2506 = vsel %vm786, %v2504, %v2505
    %v2507 = vrot.slane %v2291, 6
    %v2508 = vrot.slane %v2298, 6
    %v2509 = vsel %vm786, %v2507, %v2508
    %v2510 = vrot.slane %v2312, 6
    %v2511 = vrot.slane %v2319, 6
    %v2512 = vsel %vm786, %v2510, %v2511
    %v2513 = vrot.slane %v2333, 6
    %v2514 = vrot.slane %v2340, 6
    %v2515 = vsel %vm786, %v2513, %v2514
    %v2524 = vsel %vm641, %v2494, 0.0
    %v2525 = vrot.slane %v2524, 4
    %v2526 = vadd.f32 %v2524, %v2525
    %v2527 = vrot.slane %v2526, 2
    %v2528 = vadd.f32 %v2526, %v2527
    %v2529 = vrot.slane %v2528, 1
    %v2530 = vadd.f32 %v2528, %v2529
    %v2531 = vsel %vm641, %v2497, 0.0
    %v2532 = vrot.slane %v2531, 4
    %v2533 = vadd.f32 %v2531, %v2532
    %v2534 = vrot.slane %v2533, 2
    %v2535 = vadd.f32 %v2533, %v2534
    %v2536 = vrot.slane %v2535, 1
    %v2537 = vadd.f32 %v2535, %v2536
    %v2538 = vsel %vm641, %v2500, 0.0
    %v2539 = vrot.slane %v2538, 4
    %v2540 = vadd.f32 %v2538, %v2539
    %v2541 = vrot.slane %v2540, 2
    %v2542 = vadd.f32 %v2540, %v2541
    %v2543 = vrot.slane %v2542, 1
    %v2544 = vadd.f32 %v2542, %v2543
    %v2545 = vsel %vm641, %v2503, 0.0
    %v2546 = vrot.slane %v2545, 4
    %v2547 = vadd.f32 %v2545, %v2546
    %v2548 = vrot.slane %v2547, 2
    %v2549 = vadd.f32 %v2547, %v2548
    %v2550 = vrot.slane %v2549, 1
    %v2551 = vadd.f32 %v2549, %v2550
    %v2552 = vsel %vm641, %v2506, 0.0
    %v2553 = vrot.slane %v2552, 4
    %v2554 = vadd.f32 %v2552, %v2553
    %v2555 = vrot.slane %v2554, 2
    %v2556 = vadd.f32 %v2554, %v2555
    %v2557 = vrot.slane %v2556, 1
    %v2558 = vadd.f32 %v2556, %v2557
    %v2559 = vsel %vm641, %v2509, 0.0
    %v2560 = vrot.slane %v2559, 4
    %v2561 = vadd.f32 %v2559, %v2560
    %v2562 = vrot.slane %v2561, 2
    %v2563 = vadd.f32 %v2561, %v2562
    %v2564 = vrot.slane %v2563, 1
    %v2565 = vadd.f32 %v2563, %v2564
    %v2566 = vsel %vm641, %v2512, 0.0
    %v2567 = vrot.slane %v2566, 4
    %v2568 = vadd.f32 %v2566, %v2567
    %v2569 = vrot.slane %v2568, 2
    %v2570 = vadd.f32 %v2568, %v2569
    %v2571 = vrot.slane %v2570, 1
    %v2572 = vadd.f32 %v2570, %v2571
    %v2573 = vsel %vm641, %v2515, 0.0
    %v2574 = vrot.slane %v2573, 4
    %v2575 = vadd.f32 %v2573, %v2574
    %v2576 = vrot.slane %v2575, 2
    %v2577 = vadd.f32 %v2575, %v2576
    %v2578 = vrot.slane %v2577, 1
    %v2579 = vadd.f32 %v2577, %v2578
    %v2580 = vrot.slane %v2193, 1
    %v2581 = vrot.slane %v2214, 1
    %v2582 = vrot.slane %v2235, 1
    %v2583 = vrot.slane %v2256, 1
    %v2584 = vrot.slane %v2277, 1
    %v2585 = vrot.slane %v2298, 1
    %v2586 = vrot.slane %v2319, 1
    %v2587 = vrot.slane %v2340, 1
    %v2596 = vsel %vm641, %v2580, 0.0
    %v2597 = vrot.slane %v2596, 4
    %v2598 = vadd.f32 %v2596, %v2597
    %v2599 = vrot.slane %v2598, 2
    %v2600 = vadd.f32 %v2598, %v2599
    %v2601 = vrot.slane %v2600, 1
    %v2602 = vadd.f32 %v2600, %v2601
    %v2603 = vsel %vm641, %v2581, 0.0
    %v2604 = vrot.slane %v2603, 4
    %v2605 = vadd.f32 %v2603, %v2604
    %v2606 = vrot.slane %v2605, 2
    %v2607 = vadd.f32 %v2605, %v2606
    %v2608 = vrot.slane %v2607, 1
    %v2609 = vadd.f32 %v2607, %v2608
    %v2610 = vsel %vm641, %v2582, 0.0
    %v2611 = vrot.slane %v2610, 4
    %v2612 = vadd.f32 %v2610, %v2611
    %v2613 = vrot.slane %v2612, 2
    %v2614 = vadd.f32 %v2612, %v2613
    %v2615 = vrot.slane %v2614, 1
    %v2616 = vadd.f32 %v2614, %v2615
    %v2617 = vsel %vm641, %v2583, 0.0
    %v2618 = vrot.slane %v2617, 4
    %v2619 = vadd.f32 %v2617, %v2618
    %v2620 = vrot.slane %v2619, 2
    %v2621 = vadd.f32 %v2619, %v2620
    %v2622 = vrot.slane %v2621, 1
    %v2623 = vadd.f32 %v2621, %v2622
    %v2624 = vsel %vm641, %v2584, 0.0
    %v2625 = vrot.slane %v2624, 4
    %v2626 = vadd.f32 %v2624, %v2625
    %v2627 = vrot.slane %v2626, 2
    %v2628 = vadd.f32 %v2626, %v2627
    %v2629 = vrot.slane %v2628, 1
    %v2630 = vadd.f32 %v2628, %v2629
    %v2631 = vsel %vm641, %v2585, 0.0
    %v2632 = vrot.slane %v2631, 4
    %v2633 = vadd.f32 %v2631, %v2632
    %v2634 = vrot.slane %v2633, 2
    %v2635 = vadd.f32 %v2633, %v2634
    %v2636 = vrot.slane %v2635, 1
    %v2637 = vadd.f32 %v2635, %v2636
    %v2638 = vsel %vm641, %v2586, 0.0
    %v2639 = vrot.slane %v2638, 4
    %v2640 = vadd.f32 %v2638, %v2639
    %v2641 = vrot.slane %v2640, 2
    %v2642 = vadd.f32 %v2640, %v2641
    %v2643 = vrot.slane %v2642, 1
    %v2644 = vadd.f32 %v2642, %v2643
    %v2645 = vsel %vm641, %v2587, 0.0
    %v2646 = vrot.slane %v2645, 4
    %v2647 = vadd.f32 %v2645, %v2646
    %v2648 = vrot.slane %v2647, 2
    %v2649 = vadd.f32 %v2647, %v2648
    %v2650 = vrot.slane %v2649, 1
    %v2651 = vadd.f32 %v2649, %v2650
    %v2660 = vrot.slane %v2193, 4
    %v2661 = vrot.slane %v2200, 4
    %v2662 = vsel %vm955, %v2660, %v2661
    %v2663 = vrot.slane %v2214, 4
    %v2664 = vrot.slane %v2221, 4
    %v2665 = vsel %vm955, %v2663, %v2664
    %v2666 = vrot.slane %v2235, 4
    %v2667 = vrot.slane %v2242, 4
    %v2668 = vsel %vm955, %v2666, %v2667
    %v2669 = vrot.slane %v2256, 4
    %v2670 = vrot.slane %v2263, 4
    %v2671 = vsel %vm955, %v2669, %v2670
    %v2672 = vrot.slane %v2277, 4
    %v2673 = vrot.slane %v2284, 4
    %v2674 = vsel %vm955, %v2672, %v2673
    %v2675 = vrot.slane %v2298, 4
    %v2676 = vrot.slane %v2305, 4
    %v2677 = vsel %vm955, %v2675, %v2676
    %v2678 = vrot.slane %v2319, 4
    %v2679 = vrot.slane %v2326, 4
    %v2680 = vsel %vm955, %v2678, %v2679
    %v2681 = vrot.slane %v2340, 4
    %v2682 = vrot.slane %v2347, 4
    %v2683 = vsel %vm955, %v2681, %v2682
    %v2692 = vsel %vm641, %v2662, 0.0
    %v2693 = vrot.slane %v2692, 4
    %v2694 = vadd.f32 %v2692, %v2693
    %v2695 = vrot.slane %v2694, 2
    %v2696 = vadd.f32 %v2694, %v2695
    %v2697 = vrot.slane %v2696, 1
    %v2698 = vadd.f32 %v2696, %v2697
    %v2699 = vsel %vm641, %v2665, 0.0
    %v2700 = vrot.slane %v2699, 4
    %v2701 = vadd.f32 %v2699, %v2700
    %v2702 = vrot.slane %v2701, 2
    %v2703 = vadd.f32 %v2701, %v2702
    %v2704 = vrot.slane %v2703, 1
    %v2705 = vadd.f32 %v2703, %v2704
    %v2706 = vsel %vm641, %v2668, 0.0
    %v2707 = vrot.slane %v2706, 4
    %v2708 = vadd.f32 %v2706, %v2707
    %v2709 = vrot.slane %v2708, 2
    %v2710 = vadd.f32 %v2708, %v2709
    %v2711 = vrot.slane %v2710, 1
    %v2712 = vadd.f32 %v2710, %v2711
    %v2713 = vsel %vm641, %v2671, 0.0
    %v2714 = vrot.slane %v2713, 4
    %v2715 = vadd.f32 %v2713, %v2714
    %v2716 = vrot.slane %v2715, 2
    %v2717 = vadd.f32 %v2715, %v2716
    %v2718 = vrot.slane %v2717, 1
    %v2719 = vadd.f32 %v2717, %v2718
    %v2720 = vsel %vm641, %v2674, 0.0
    %v2721 = vrot.slane %v2720, 4
    %v2722 = vadd.f32 %v2720, %v2721
    %v2723 = vrot.slane %v2722, 2
    %v2724 = vadd.f32 %v2722, %v2723
    %v2725 = vrot.slane %v2724, 1
    %v2726 = vadd.f32 %v2724, %v2725
    %v2727 = vsel %vm641, %v2677, 0.0
    %v2728 = vrot.slane %v2727, 4
    %v2729 = vadd.f32 %v2727, %v2728
    %v2730 = vrot.slane %v2729, 2
    %v2731 = vadd.f32 %v2729, %v2730
    %v2732 = vrot.slane %v2731, 1
    %v2733 = vadd.f32 %v2731, %v2732
    %v2734 = vsel %vm641, %v2680, 0.0
    %v2735 = vrot.slane %v2734, 4
    %v2736 = vadd.f32 %v2734, %v2735
    %v2737 = vrot.slane %v2736, 2
    %v2738 = vadd.f32 %v2736, %v2737
    %v2739 = vrot.slane %v2738, 1
    %v2740 = vadd.f32 %v2738, %v2739
    %v2741 = vsel %vm641, %v2683, 0.0
    %v2742 = vrot.slane %v2741, 4
    %v2743 = vadd.f32 %v2741, %v2742
    %v2744 = vrot.slane %v2743, 2
    %v2745 = vadd.f32 %v2743, %v2744
    %v2746 = vrot.slane %v2745, 1
    %v2747 = vadd.f32 %v2745, %v2746
    %v2748 = vadd.f32 %v2183, %v2185
    %v2749 = vsel %vm423, %v57, 0.0
    %v2750 = vadd.f32 %v2748, %v2749
    %v2751 = vsel %vm423, %v60, 0.0
    %v2752 = vadd.f32 %v2750, %v2751
    %v2753 = vsel %vm423, %v63, 0.0
    %v2754 = vadd.f32 %v2752, %v2753
    %v2755 = vadd.f32 %v2190, %v2192
    %v2756 = vsel %vm423, %v58, 0.0
    %v2757 = vadd.f32 %v2755, %v2756
    %v2758 = vsel %vm423, %v61, 0.0
    %v2759 = vadd.f32 %v2757, %v2758
    %v2760 = vsel %vm423, %v64, 0.0
    %v2761 = vadd.f32 %v2759, %v2760
    %v2762 = vadd.f32 %v2197, %v2199
    %v2763 = vsel %vm442, %v59, 0.0
    %v2764 = vadd.f32 %v2762, %v2763
    %v2765 = vsel %vm442, %v62, 0.0
    %v2766 = vadd.f32 %v2764, %v2765
    %v2767 = vsel %vm442, %v65, 0.0
    %v2768 = vadd.f32 %v2766, %v2767
    %v2769 = vadd.f32 %v2204, %v2206
    %v2770 = vsel %vm423, %v108, 0.0
    %v2771 = vadd.f32 %v2769, %v2770
    %v2772 = vsel %vm423, %v111, 0.0
    %v2773 = vadd.f32 %v2771, %v2772
    %v2774 = vsel %vm423, %v114, 0.0
    %v2775 = vadd.f32 %v2773, %v2774
    %v2776 = vadd.f32 %v2211, %v2213
    %v2777 = vsel %vm423, %v109, 0.0
    %v2778 = vadd.f32 %v2776, %v2777
    %v2779 = vsel %vm423, %v112, 0.0
    %v2780 = vadd.f32 %v2778, %v2779
    %v2781 = vsel %vm423, %v115, 0.0
    %v2782 = vadd.f32 %v2780, %v2781
    %v2783 = vadd.f32 %v2218, %v2220
    %v2784 = vsel %vm442, %v110, 0.0
    %v2785 = vadd.f32 %v2783, %v2784
    %v2786 = vsel %vm442, %v113, 0.0
    %v2787 = vadd.f32 %v2785, %v2786
    %v2788 = vsel %vm442, %v116, 0.0
    %v2789 = vadd.f32 %v2787, %v2788
    %v2790 = vadd.f32 %v2225, %v2227
    %v2791 = vsel %vm423, %v159, 0.0
    %v2792 = vadd.f32 %v2790, %v2791
    %v2793 = vsel %vm423, %v162, 0.0
    %v2794 = vadd.f32 %v2792, %v2793
    %v2795 = vsel %vm423, %v165, 0.0
    %v2796 = vadd.f32 %v2794, %v2795
    %v2797 = vadd.f32 %v2232, %v2234
    %v2798 = vsel %vm423, %v160, 0.0
    %v2799 = vadd.f32 %v2797, %v2798
    %v2800 = vsel %vm423, %v163, 0.0
    %v2801 = vadd.f32 %v2799, %v2800
    %v2802 = vsel %vm423, %v166, 0.0
    %v2803 = vadd.f32 %v2801, %v2802
    %v2804 = vadd.f32 %v2239, %v2241
    %v2805 = vsel %vm442, %v161, 0.0
    %v2806 = vadd.f32 %v2804, %v2805
    %v2807 = vsel %vm442, %v164, 0.0
    %v2808 = vadd.f32 %v2806, %v2807
    %v2809 = vsel %vm442, %v167, 0.0
    %v2810 = vadd.f32 %v2808, %v2809
    %v2811 = vadd.f32 %v2246, %v2248
    %v2812 = vsel %vm423, %v210, 0.0
    %v2813 = vadd.f32 %v2811, %v2812
    %v2814 = vsel %vm423, %v213, 0.0
    %v2815 = vadd.f32 %v2813, %v2814
    %v2816 = vsel %vm423, %v216, 0.0
    %v2817 = vadd.f32 %v2815, %v2816
    %v2818 = vadd.f32 %v2253, %v2255
    %v2819 = vsel %vm423, %v211, 0.0
    %v2820 = vadd.f32 %v2818, %v2819
    %v2821 = vsel %vm423, %v214, 0.0
    %v2822 = vadd.f32 %v2820, %v2821
    %v2823 = vsel %vm423, %v217, 0.0
    %v2824 = vadd.f32 %v2822, %v2823
    %v2825 = vadd.f32 %v2260, %v2262
    %v2826 = vsel %vm442, %v212, 0.0
    %v2827 = vadd.f32 %v2825, %v2826
    %v2828 = vsel %vm442, %v215, 0.0
    %v2829 = vadd.f32 %v2827, %v2828
    %v2830 = vsel %vm442, %v218, 0.0
    %v2831 = vadd.f32 %v2829, %v2830
    %v2832 = vadd.f32 %v2267, %v2269
    %v2833 = vsel %vm423, %v261, 0.0
    %v2834 = vadd.f32 %v2832, %v2833
    %v2835 = vsel %vm423, %v264, 0.0
    %v2836 = vadd.f32 %v2834, %v2835
    %v2837 = vsel %vm423, %v267, 0.0
    %v2838 = vadd.f32 %v2836, %v2837
    %v2839 = vadd.f32 %v2274, %v2276
    %v2840 = vsel %vm423, %v262, 0.0
    %v2841 = vadd.f32 %v2839, %v2840
    %v2842 = vsel %vm423, %v265, 0.0
    %v2843 = vadd.f32 %v2841, %v2842
    %v2844 = vsel %vm423, %v268, 0.0
    %v2845 = vadd.f32 %v2843, %v2844
    %v2846 = vadd.f32 %v2281, %v2283
    %v2847 = vsel %vm442, %v263, 0.0
    %v2848 = vadd.f32 %v2846, %v2847
    %v2849 = vsel %vm442, %v266, 0.0
    %v2850 = vadd.f32 %v2848, %v2849
    %v2851 = vsel %vm442, %v269, 0.0
    %v2852 = vadd.f32 %v2850, %v2851
    %v2853 = vadd.f32 %v2288, %v2290
    %v2854 = vsel %vm423, %v312, 0.0
    %v2855 = vadd.f32 %v2853, %v2854
    %v2856 = vsel %vm423, %v315, 0.0
    %v2857 = vadd.f32 %v2855, %v2856
    %v2858 = vsel %vm423, %v318, 0.0
    %v2859 = vadd.f32 %v2857, %v2858
    %v2860 = vadd.f32 %v2295, %v2297
    %v2861 = vsel %vm423, %v313, 0.0
    %v2862 = vadd.f32 %v2860, %v2861
    %v2863 = vsel %vm423, %v316, 0.0
    %v2864 = vadd.f32 %v2862, %v2863
    %v2865 = vsel %vm423, %v319, 0.0
    %v2866 = vadd.f32 %v2864, %v2865
    %v2867 = vadd.f32 %v2302, %v2304
    %v2868 = vsel %vm442, %v314, 0.0
    %v2869 = vadd.f32 %v2867, %v2868
    %v2870 = vsel %vm442, %v317, 0.0
    %v2871 = vadd.f32 %v2869, %v2870
    %v2872 = vsel %vm442, %v320, 0.0
    %v2873 = vadd.f32 %v2871, %v2872
    %v2874 = vadd.f32 %v2309, %v2311
    %v2875 = vsel %vm423, %v363, 0.0
    %v2876 = vadd.f32 %v2874, %v2875
    %v2877 = vsel %vm423, %v366, 0.0
    %v2878 = vadd.f32 %v2876, %v2877
    %v2879 = vsel %vm423, %v369, 0.0
    %v2880 = vadd.f32 %v2878, %v2879
    %v2881 = vadd.f32 %v2316, %v2318
    %v2882 = vsel %vm423, %v364, 0.0
    %v2883 = vadd.f32 %v2881, %v2882
    %v2884 = vsel %vm423, %v367, 0.0
    %v2885 = vadd.f32 %v2883, %v2884
    %v2886 = vsel %vm423, %v370, 0.0
    %v2887 = vadd.f32 %v2885, %v2886
    %v2888 = vadd.f32 %v2323, %v2325
    %v2889 = vsel %vm442, %v365, 0.0
    %v2890 = vadd.f32 %v2888, %v2889
    %v2891 = vsel %vm442, %v368, 0.0
    %v2892 = vadd.f32 %v2890, %v2891
    %v2893 = vsel %vm442, %v371, 0.0
    %v2894 = vadd.f32 %v2892, %v2893
    %v2895 = vadd.f32 %v2330, %v2332
    %v2896 = vsel %vm423, %v414, 0.0
    %v2897 = vadd.f32 %v2895, %v2896
    %v2898 = vsel %vm423, %v417, 0.0
    %v2899 = vadd.f32 %v2897, %v2898
    %v2900 = vsel %vm423, %v420, 0.0
    %v2901 = vadd.f32 %v2899, %v2900
    %v2902 = vadd.f32 %v2337, %v2339
    %v2903 = vsel %vm423, %v415, 0.0
    %v2904 = vadd.f32 %v2902, %v2903
    %v2905 = vsel %vm423, %v418, 0.0
    %v2906 = vadd.f32 %v2904, %v2905
    %v2907 = vsel %vm423, %v421, 0.0
    %v2908 = vadd.f32 %v2906, %v2907
    %v2909 = vadd.f32 %v2344, %v2346
    %v2910 = vsel %vm442, %v416, 0.0
    %v2911 = vadd.f32 %v2909, %v2910
    %v2912 = vsel %vm442, %v419, 0.0
    %v2913 = vadd.f32 %v2911, %v2912
    %v2914 = vsel %vm442, %v422, 0.0
    %v2915 = vadd.f32 %v2913, %v2914
    %v2916 = vsel %vm641, %v2754, 0.0
    %v2917 = vrot.slane %v2916, 4
    %v2918 = vadd.f32 %v2916, %v2917
    %v2919 = vrot.slane %v2918, 2
    %v2920 = vadd.f32 %v2918, %v2919
    %v2921 = vrot.slane %v2920, 1
    %v2922 = vadd.f32 %v2920, %v2921
    %v2923 = vsel %vm641, %v2775, 0.0
    %v2924 = vrot.slane %v2923, 4
    %v2925 = vadd.f32 %v2923, %v2924
    %v2926 = vrot.slane %v2925, 2
    %v2927 = vadd.f32 %v2925, %v2926
    %v2928 = vrot.slane %v2927, 1
    %v2929 = vadd.f32 %v2927, %v2928
    %v2930 = vsel %vm641, %v2796, 0.0
    %v2931 = vrot.slane %v2930, 4
    %v2932 = vadd.f32 %v2930, %v2931
    %v2933 = vrot.slane %v2932, 2
    %v2934 = vadd.f32 %v2932, %v2933
    %v2935 = vrot.slane %v2934, 1
    %v2936 = vadd.f32 %v2934, %v2935
    %v2937 = vsel %vm641, %v2817, 0.0
    %v2938 = vrot.slane %v2937, 4
    %v2939 = vadd.f32 %v2937, %v2938
    %v2940 = vrot.slane %v2939, 2
    %v2941 = vadd.f32 %v2939, %v2940
    %v2942 = vrot.slane %v2941, 1
    %v2943 = vadd.f32 %v2941, %v2942
    %v2944 = vsel %vm641, %v2838, 0.0
    %v2945 = vrot.slane %v2944, 4
    %v2946 = vadd.f32 %v2944, %v2945
    %v2947 = vrot.slane %v2946, 2
    %v2948 = vadd.f32 %v2946, %v2947
    %v2949 = vrot.slane %v2948, 1
    %v2950 = vadd.f32 %v2948, %v2949
    %v2951 = vsel %vm641, %v2859, 0.0
    %v2952 = vrot.slane %v2951, 4
    %v2953 = vadd.f32 %v2951, %v2952
    %v2954 = vrot.slane %v2953, 2
    %v2955 = vadd.f32 %v2953, %v2954
    %v2956 = vrot.slane %v2955, 1
    %v2957 = vadd.f32 %v2955, %v2956
    %v2958 = vsel %vm641, %v2880, 0.0
    %v2959 = vrot.slane %v2958, 4
    %v2960 = vadd.f32 %v2958, %v2959
    %v2961 = vrot.slane %v2960, 2
    %v2962 = vadd.f32 %v2960, %v2961
    %v2963 = vrot.slane %v2962, 1
    %v2964 = vadd.f32 %v2962, %v2963
    %v2965 = vsel %vm641, %v2901, 0.0
    %v2966 = vrot.slane %v2965, 4
    %v2967 = vadd.f32 %v2965, %v2966
    %v2968 = vrot.slane %v2967, 2
    %v2969 = vadd.f32 %v2967, %v2968
    %v2970 = vrot.slane %v2969, 1
    %v2971 = vadd.f32 %v2969, %v2970
    %v2980 = vrot.slane %v2754, 3
    %v2981 = vrot.slane %v2775, 3
    %v2982 = vrot.slane %v2796, 3
    %v2983 = vrot.slane %v2817, 3
    %v2984 = vrot.slane %v2838, 3
    %v2985 = vrot.slane %v2859, 3
    %v2986 = vrot.slane %v2880, 3
    %v2987 = vrot.slane %v2901, 3
    %v2996 = vsel %vm641, %v2980, 0.0
    %v2997 = vrot.slane %v2996, 4
    %v2998 = vadd.f32 %v2996, %v2997
    %v2999 = vrot.slane %v2998, 2
    %v3000 = vadd.f32 %v2998, %v2999
    %v3001 = vrot.slane %v3000, 1
    %v3002 = vadd.f32 %v3000, %v3001
    %v3003 = vsel %vm641, %v2981, 0.0
    %v3004 = vrot.slane %v3003, 4
    %v3005 = vadd.f32 %v3003, %v3004
    %v3006 = vrot.slane %v3005, 2
    %v3007 = vadd.f32 %v3005, %v3006
    %v3008 = vrot.slane %v3007, 1
    %v3009 = vadd.f32 %v3007, %v3008
    %v3010 = vsel %vm641, %v2982, 0.0
    %v3011 = vrot.slane %v3010, 4
    %v3012 = vadd.f32 %v3010, %v3011
    %v3013 = vrot.slane %v3012, 2
    %v3014 = vadd.f32 %v3012, %v3013
    %v3015 = vrot.slane %v3014, 1
    %v3016 = vadd.f32 %v3014, %v3015
    %v3017 = vsel %vm641, %v2983, 0.0
    %v3018 = vrot.slane %v3017, 4
    %v3019 = vadd.f32 %v3017, %v3018
    %v3020 = vrot.slane %v3019, 2
    %v3021 = vadd.f32 %v3019, %v3020
    %v3022 = vrot.slane %v3021, 1
    %v3023 = vadd.f32 %v3021, %v3022
    %v3024 = vsel %vm641, %v2984, 0.0
    %v3025 = vrot.slane %v3024, 4
    %v3026 = vadd.f32 %v3024, %v3025
    %v3027 = vrot.slane %v3026, 2
    %v3028 = vadd.f32 %v3026, %v3027
    %v3029 = vrot.slane %v3028, 1
    %v3030 = vadd.f32 %v3028, %v3029
    %v3031 = vsel %vm641, %v2985, 0.0
    %v3032 = vrot.slane %v3031, 4
    %v3033 = vadd.f32 %v3031, %v3032
    %v3034 = vrot.slane %v3033, 2
    %v3035 = vadd.f32 %v3033, %v3034
    %v3036 = vrot.slane %v3035, 1
    %v3037 = vadd.f32 %v3035, %v3036
    %v3038 = vsel %vm641, %v2986, 0.0
    %v3039 = vrot.slane %v3038, 4
    %v3040 = vadd.f32 %v3038, %v3039
    %v3041 = vrot.slane %v3040, 2
    %v3042 = vadd.f32 %v3040, %v3041
    %v3043 = vrot.slane %v3042, 1
    %v3044 = vadd.f32 %v3042, %v3043
    %v3045 = vsel %vm641, %v2987, 0.0
    %v3046 = vrot.slane %v3045, 4
    %v3047 = vadd.f32 %v3045, %v3046
    %v3048 = vrot.slane %v3047, 2
    %v3049 = vadd.f32 %v3047, %v3048
    %v3050 = vrot.slane %v3049, 1
    %v3051 = vadd.f32 %v3049, %v3050
    %v3060 = vrot.slane %v2754, 6
    %v3061 = vrot.slane %v2761, 6
    %v3062 = vsel %vm786, %v3060, %v3061
    %v3063 = vrot.slane %v2775, 6
    %v3064 = vrot.slane %v2782, 6
    %v3065 = vsel %vm786, %v3063, %v3064
    %v3066 = vrot.slane %v2796, 6
    %v3067 = vrot.slane %v2803, 6
    %v3068 = vsel %vm786, %v3066, %v3067
    %v3069 = vrot.slane %v2817, 6
    %v3070 = vrot.slane %v2824, 6
    %v3071 = vsel %vm786, %v3069, %v3070
    %v3072 = vrot.slane %v2838, 6
    %v3073 = vrot.slane %v2845, 6
    %v3074 = vsel %vm786, %v3072, %v3073
    %v3075 = vrot.slane %v2859, 6
    %v3076 = vrot.slane %v2866, 6
    %v3077 = vsel %vm786, %v3075, %v3076
    %v3078 = vrot.slane %v2880, 6
    %v3079 = vrot.slane %v2887, 6
    %v3080 = vsel %vm786, %v3078, %v3079
    %v3081 = vrot.slane %v2901, 6
    %v3082 = vrot.slane %v2908, 6
    %v3083 = vsel %vm786, %v3081, %v3082
    %v3092 = vsel %vm641, %v3062, 0.0
    %v3093 = vrot.slane %v3092, 4
    %v3094 = vadd.f32 %v3092, %v3093
    %v3095 = vrot.slane %v3094, 2
    %v3096 = vadd.f32 %v3094, %v3095
    %v3097 = vrot.slane %v3096, 1
    %v3098 = vadd.f32 %v3096, %v3097
    %v3099 = vsel %vm641, %v3065, 0.0
    %v3100 = vrot.slane %v3099, 4
    %v3101 = vadd.f32 %v3099, %v3100
    %v3102 = vrot.slane %v3101, 2
    %v3103 = vadd.f32 %v3101, %v3102
    %v3104 = vrot.slane %v3103, 1
    %v3105 = vadd.f32 %v3103, %v3104
    %v3106 = vsel %vm641, %v3068, 0.0
    %v3107 = vrot.slane %v3106, 4
    %v3108 = vadd.f32 %v3106, %v3107
    %v3109 = vrot.slane %v3108, 2
    %v3110 = vadd.f32 %v3108, %v3109
    %v3111 = vrot.slane %v3110, 1
    %v3112 = vadd.f32 %v3110, %v3111
    %v3113 = vsel %vm641, %v3071, 0.0
    %v3114 = vrot.slane %v3113, 4
    %v3115 = vadd.f32 %v3113, %v3114
    %v3116 = vrot.slane %v3115, 2
    %v3117 = vadd.f32 %v3115, %v3116
    %v3118 = vrot.slane %v3117, 1
    %v3119 = vadd.f32 %v3117, %v3118
    %v3120 = vsel %vm641, %v3074, 0.0
    %v3121 = vrot.slane %v3120, 4
    %v3122 = vadd.f32 %v3120, %v3121
    %v3123 = vrot.slane %v3122, 2
    %v3124 = vadd.f32 %v3122, %v3123
    %v3125 = vrot.slane %v3124, 1
    %v3126 = vadd.f32 %v3124, %v3125
    %v3127 = vsel %vm641, %v3077, 0.0
    %v3128 = vrot.slane %v3127, 4
    %v3129 = vadd.f32 %v3127, %v3128
    %v3130 = vrot.slane %v3129, 2
    %v3131 = vadd.f32 %v3129, %v3130
    %v3132 = vrot.slane %v3131, 1
    %v3133 = vadd.f32 %v3131, %v3132
    %v3134 = vsel %vm641, %v3080, 0.0
    %v3135 = vrot.slane %v3134, 4
    %v3136 = vadd.f32 %v3134, %v3135
    %v3137 = vrot.slane %v3136, 2
    %v3138 = vadd.f32 %v3136, %v3137
    %v3139 = vrot.slane %v3138, 1
    %v3140 = vadd.f32 %v3138, %v3139
    %v3141 = vsel %vm641, %v3083, 0.0
    %v3142 = vrot.slane %v3141, 4
    %v3143 = vadd.f32 %v3141, %v3142
    %v3144 = vrot.slane %v3143, 2
    %v3145 = vadd.f32 %v3143, %v3144
    %v3146 = vrot.slane %v3145, 1
    %v3147 = vadd.f32 %v3145, %v3146
    %v3148 = vrot.slane %v2761, 1
    %v3149 = vrot.slane %v2782, 1
    %v3150 = vrot.slane %v2803, 1
    %v3151 = vrot.slane %v2824, 1
    %v3152 = vrot.slane %v2845, 1
    %v3153 = vrot.slane %v2866, 1
    %v3154 = vrot.slane %v2887, 1
    %v3155 = vrot.slane %v2908, 1
    %v3164 = vsel %vm641, %v3148, 0.0
    %v3165 = vrot.slane %v3164, 4
    %v3166 = vadd.f32 %v3164, %v3165
    %v3167 = vrot.slane %v3166, 2
    %v3168 = vadd.f32 %v3166, %v3167
    %v3169 = vrot.slane %v3168, 1
    %v3170 = vadd.f32 %v3168, %v3169
    %v3171 = vsel %vm641, %v3149, 0.0
    %v3172 = vrot.slane %v3171, 4
    %v3173 = vadd.f32 %v3171, %v3172
    %v3174 = vrot.slane %v3173, 2
    %v3175 = vadd.f32 %v3173, %v3174
    %v3176 = vrot.slane %v3175, 1
    %v3177 = vadd.f32 %v3175, %v3176
    %v3178 = vsel %vm641, %v3150, 0.0
    %v3179 = vrot.slane %v3178, 4
    %v3180 = vadd.f32 %v3178, %v3179
    %v3181 = vrot.slane %v3180, 2
    %v3182 = vadd.f32 %v3180, %v3181
    %v3183 = vrot.slane %v3182, 1
    %v3184 = vadd.f32 %v3182, %v3183
    %v3185 = vsel %vm641, %v3151, 0.0
    %v3186 = vrot.slane %v3185, 4
    %v3187 = vadd.f32 %v3185, %v3186
    %v3188 = vrot.slane %v3187, 2
    %v3189 = vadd.f32 %v3187, %v3188
    %v3190 = vrot.slane %v3189, 1
    %v3191 = vadd.f32 %v3189, %v3190
    %v3192 = vsel %vm641, %v3152, 0.0
    %v3193 = vrot.slane %v3192, 4
    %v3194 = vadd.f32 %v3192, %v3193
    %v3195 = vrot.slane %v3194, 2
    %v3196 = vadd.f32 %v3194, %v3195
    %v3197 = vrot.slane %v3196, 1
    %v3198 = vadd.f32 %v3196, %v3197
    %v3199 = vsel %vm641, %v3153, 0.0
    %v3200 = vrot.slane %v3199, 4
    %v3201 = vadd.f32 %v3199, %v3200
    %v3202 = vrot.slane %v3201, 2
    %v3203 = vadd.f32 %v3201, %v3202
    %v3204 = vrot.slane %v3203, 1
    %v3205 = vadd.f32 %v3203, %v3204
    %v3206 = vsel %vm641, %v3154, 0.0
    %v3207 = vrot.slane %v3206, 4
    %v3208 = vadd.f32 %v3206, %v3207
    %v3209 = vrot.slane %v3208, 2
    %v3210 = vadd.f32 %v3208, %v3209
    %v3211 = vrot.slane %v3210, 1
    %v3212 = vadd.f32 %v3210, %v3211
    %v3213 = vsel %vm641, %v3155, 0.0
    %v3214 = vrot.slane %v3213, 4
    %v3215 = vadd.f32 %v3213, %v3214
    %v3216 = vrot.slane %v3215, 2
    %v3217 = vadd.f32 %v3215, %v3216
    %v3218 = vrot.slane %v3217, 1
    %v3219 = vadd.f32 %v3217, %v3218
    %v3228 = vrot.slane %v2761, 4
    %v3229 = vrot.slane %v2768, 4
    %v3230 = vsel %vm955, %v3228, %v3229
    %v3231 = vrot.slane %v2782, 4
    %v3232 = vrot.slane %v2789, 4
    %v3233 = vsel %vm955, %v3231, %v3232
    %v3234 = vrot.slane %v2803, 4
    %v3235 = vrot.slane %v2810, 4
    %v3236 = vsel %vm955, %v3234, %v3235
    %v3237 = vrot.slane %v2824, 4
    %v3238 = vrot.slane %v2831, 4
    %v3239 = vsel %vm955, %v3237, %v3238
    %v3240 = vrot.slane %v2845, 4
    %v3241 = vrot.slane %v2852, 4
    %v3242 = vsel %vm955, %v3240, %v3241
    %v3243 = vrot.slane %v2866, 4
    %v3244 = vrot.slane %v2873, 4
    %v3245 = vsel %vm955, %v3243, %v3244
    %v3246 = vrot.slane %v2887, 4
    %v3247 = vrot.slane %v2894, 4
    %v3248 = vsel %vm955, %v3246, %v3247
    %v3249 = vrot.slane %v2908, 4
    %v3250 = vrot.slane %v2915, 4
    %v3251 = vsel %vm955, %v3249, %v3250
    %v3260 = vsel %vm641, %v3230, 0.0
    %v3261 = vrot.slane %v3260, 4
    %v3262 = vadd.f32 %v3260, %v3261
    %v3263 = vrot.slane %v3262, 2
    %v3264 = vadd.f32 %v3262, %v3263
    %v3265 = vrot.slane %v3264, 1
    %v3266 = vadd.f32 %v3264, %v3265
    %v3267 = vsel %vm641, %v3233, 0.0
    %v3268 = vrot.slane %v3267, 4
    %v3269 = vadd.f32 %v3267, %v3268
    %v3270 = vrot.slane %v3269, 2
    %v3271 = vadd.f32 %v3269, %v3270
    %v3272 = vrot.slane %v3271, 1
    %v3273 = vadd.f32 %v3271, %v3272
    %v3274 = vsel %vm641, %v3236, 0.0
    %v3275 = vrot.slane %v3274, 4
    %v3276 = vadd.f32 %v3274, %v3275
    %v3277 = vrot.slane %v3276, 2
    %v3278 = vadd.f32 %v3276, %v3277
    %v3279 = vrot.slane %v3278, 1
    %v3280 = vadd.f32 %v3278, %v3279
    %v3281 = vsel %vm641, %v3239, 0.0
    %v3282 = vrot.slane %v3281, 4
    %v3283 = vadd.f32 %v3281, %v3282
    %v3284 = vrot.slane %v3283, 2
    %v3285 = vadd.f32 %v3283, %v3284
    %v3286 = vrot.slane %v3285, 1
    %v3287 = vadd.f32 %v3285, %v3286
    %v3288 = vsel %vm641, %v3242, 0.0
    %v3289 = vrot.slane %v3288, 4
    %v3290 = vadd.f32 %v3288, %v3289
    %v3291 = vrot.slane %v3290, 2
    %v3292 = vadd.f32 %v3290, %v3291
    %v3293 = vrot.slane %v3292, 1
    %v3294 = vadd.f32 %v3292, %v3293
    %v3295 = vsel %vm641, %v3245, 0.0
    %v3296 = vrot.slane %v3295, 4
    %v3297 = vadd.f32 %v3295, %v3296
    %v3298 = vrot.slane %v3297, 2
    %v3299 = vadd.f32 %v3297, %v3298
    %v3300 = vrot.slane %v3299, 1
    %v3301 = vadd.f32 %v3299, %v3300
    %v3302 = vsel %vm641, %v3248, 0.0
    %v3303 = vrot.slane %v3302, 4
    %v3304 = vadd.f32 %v3302, %v3303
    %v3305 = vrot.slane %v3304, 2
    %v3306 = vadd.f32 %v3304, %v3305
    %v3307 = vrot.slane %v3306, 1
    %v3308 = vadd.f32 %v3306, %v3307
    %v3309 = vsel %vm641, %v3251, 0.0
    %v3310 = vrot.slane %v3309, 4
    %v3311 = vadd.f32 %v3309, %v3310
    %v3312 = vrot.slane %v3311, 2
    %v3313 = vadd.f32 %v3311, %v3312
    %v3314 = vrot.slane %v3313, 1
    %v3315 = vadd.f32 %v3313, %v3314
    %vm3324 = vcmask 1041409
    %v3325 = vsel %vm3324, %v655, %v648
    %vm3326 = vcmask 1042434
    %v3327 = vsel %vm3326, %v662, %v3325
    %vm3328 = vcmask 1043459
    %v3329 = vsel %vm3328, %v669, %v3327
    %vm3330 = vcmask 1044484
    %v3331 = vsel %vm3330, %v676, %v3329
    %vm3332 = vcmask 1045509
    %v3333 = vsel %vm3332, %v683, %v3331
    %vm3334 = vcmask 1046534
    %v3335 = vsel %vm3334, %v690, %v3333
    %vm3336 = vcmask 1047559
    %v3337 = vsel %vm3336, %v697, %v3335
    %v3347 = vsel %vm3324, %v735, %v728
    %v3348 = vsel %vm3326, %v742, %v3347
    %v3349 = vsel %vm3328, %v749, %v3348
    %v3350 = vsel %vm3330, %v756, %v3349
    %v3351 = vsel %vm3332, %v763, %v3350
    %v3352 = vsel %vm3334, %v770, %v3351
    %v3353 = vsel %vm3336, %v777, %v3352
    %v3363 = vsel %vm3324, %v832, %v825
    %v3364 = vsel %vm3326, %v839, %v3363
    %v3365 = vsel %vm3328, %v846, %v3364
    %v3366 = vsel %vm3330, %v853, %v3365
    %v3367 = vsel %vm3332, %v860, %v3366
    %v3368 = vsel %vm3334, %v867, %v3367
    %v3369 = vsel %vm3336, %v874, %v3368
    %v3379 = vsel %vm3324, %v904, %v897
    %v3380 = vsel %vm3326, %v911, %v3379
    %v3381 = vsel %vm3328, %v918, %v3380
    %v3382 = vsel %vm3330, %v925, %v3381
    %v3383 = vsel %vm3332, %v932, %v3382
    %v3384 = vsel %vm3334, %v939, %v3383
    %v3385 = vsel %vm3336, %v946, %v3384
    %v3395 = vsel %vm3324, %v1001, %v994
    %v3396 = vsel %vm3326, %v1008, %v3395
    %v3397 = vsel %vm3328, %v1015, %v3396
    %v3398 = vsel %vm3330, %v1022, %v3397
    %v3399 = vsel %vm3332, %v1029, %v3398
    %v3400 = vsel %vm3334, %v1036, %v3399
    %v3401 = vsel %vm3336, %v1043, %v3400
    %v3411 = vsel %vm3324, %v1225, %v1218
    %v3412 = vsel %vm3326, %v1232, %v3411
    %v3413 = vsel %vm3328, %v1239, %v3412
    %v3414 = vsel %vm3330, %v1246, %v3413
    %v3415 = vsel %vm3332, %v1253, %v3414
    %v3416 = vsel %vm3334, %v1260, %v3415
    %v3417 = vsel %vm3336, %v1267, %v3416
    %v3427 = vsel %vm3324, %v1305, %v1298
    %v3428 = vsel %vm3326, %v1312, %v3427
    %v3429 = vsel %vm3328, %v1319, %v3428
    %v3430 = vsel %vm3330, %v1326, %v3429
    %v3431 = vsel %vm3332, %v1333, %v3430
    %v3432 = vsel %vm3334, %v1340, %v3431
    %v3433 = vsel %vm3336, %v1347, %v3432
    %v3443 = vsel %vm3324, %v1401, %v1394
    %v3444 = vsel %vm3326, %v1408, %v3443
    %v3445 = vsel %vm3328, %v1415, %v3444
    %v3446 = vsel %vm3330, %v1422, %v3445
    %v3447 = vsel %vm3332, %v1429, %v3446
    %v3448 = vsel %vm3334, %v1436, %v3447
    %v3449 = vsel %vm3336, %v1443, %v3448
    %v3459 = vsel %vm3324, %v1473, %v1466
    %v3460 = vsel %vm3326, %v1480, %v3459
    %v3461 = vsel %vm3328, %v1487, %v3460
    %v3462 = vsel %vm3330, %v1494, %v3461
    %v3463 = vsel %vm3332, %v1501, %v3462
    %v3464 = vsel %vm3334, %v1508, %v3463
    %v3465 = vsel %vm3336, %v1515, %v3464
    %v3475 = vsel %vm3324, %v1569, %v1562
    %v3476 = vsel %vm3326, %v1576, %v3475
    %v3477 = vsel %vm3328, %v1583, %v3476
    %v3478 = vsel %vm3330, %v1590, %v3477
    %v3479 = vsel %vm3332, %v1597, %v3478
    %v3480 = vsel %vm3334, %v1604, %v3479
    %v3481 = vsel %vm3336, %v1611, %v3480
    %v3491 = vsel %vm3324, %v1793, %v1786
    %v3492 = vsel %vm3326, %v1800, %v3491
    %v3493 = vsel %vm3328, %v1807, %v3492
    %v3494 = vsel %vm3330, %v1814, %v3493
    %v3495 = vsel %vm3332, %v1821, %v3494
    %v3496 = vsel %vm3334, %v1828, %v3495
    %v3497 = vsel %vm3336, %v1835, %v3496
    %v3507 = vsel %vm3324, %v1873, %v1866
    %v3508 = vsel %vm3326, %v1880, %v3507
    %v3509 = vsel %vm3328, %v1887, %v3508
    %v3510 = vsel %vm3330, %v1894, %v3509
    %v3511 = vsel %vm3332, %v1901, %v3510
    %v3512 = vsel %vm3334, %v1908, %v3511
    %v3513 = vsel %vm3336, %v1915, %v3512
    %v3523 = vsel %vm3324, %v1969, %v1962
    %v3524 = vsel %vm3326, %v1976, %v3523
    %v3525 = vsel %vm3328, %v1983, %v3524
    %v3526 = vsel %vm3330, %v1990, %v3525
    %v3527 = vsel %vm3332, %v1997, %v3526
    %v3528 = vsel %vm3334, %v2004, %v3527
    %v3529 = vsel %vm3336, %v2011, %v3528
    %v3539 = vsel %vm3324, %v2041, %v2034
    %v3540 = vsel %vm3326, %v2048, %v3539
    %v3541 = vsel %vm3328, %v2055, %v3540
    %v3542 = vsel %vm3330, %v2062, %v3541
    %v3543 = vsel %vm3332, %v2069, %v3542
    %v3544 = vsel %vm3334, %v2076, %v3543
    %v3545 = vsel %vm3336, %v2083, %v3544
    %v3555 = vsel %vm3324, %v2137, %v2130
    %v3556 = vsel %vm3326, %v2144, %v3555
    %v3557 = vsel %vm3328, %v2151, %v3556
    %v3558 = vsel %vm3330, %v2158, %v3557
    %v3559 = vsel %vm3332, %v2165, %v3558
    %v3560 = vsel %vm3334, %v2172, %v3559
    %v3561 = vsel %vm3336, %v2179, %v3560
    %v3571 = vsel %vm3324, %v2361, %v2354
    %v3572 = vsel %vm3326, %v2368, %v3571
    %v3573 = vsel %vm3328, %v2375, %v3572
    %v3574 = vsel %vm3330, %v2382, %v3573
    %v3575 = vsel %vm3332, %v2389, %v3574
    %v3576 = vsel %vm3334, %v2396, %v3575
    %v3577 = vsel %vm3336, %v2403, %v3576
    %v3587 = vsel %vm3324, %v2441, %v2434
    %v3588 = vsel %vm3326, %v2448, %v3587
    %v3589 = vsel %vm3328, %v2455, %v3588
    %v3590 = vsel %vm3330, %v2462, %v3589
    %v3591 = vsel %vm3332, %v2469, %v3590
    %v3592 = vsel %vm3334, %v2476, %v3591
    %v3593 = vsel %vm3336, %v2483, %v3592
    %v3603 = vsel %vm3324, %v2537, %v2530
    %v3604 = vsel %vm3326, %v2544, %v3603
    %v3605 = vsel %vm3328, %v2551, %v3604
    %v3606 = vsel %vm3330, %v2558, %v3605
    %v3607 = vsel %vm3332, %v2565, %v3606
    %v3608 = vsel %vm3334, %v2572, %v3607
    %v3609 = vsel %vm3336, %v2579, %v3608
    %v3619 = vsel %vm3324, %v2609, %v2602
    %v3620 = vsel %vm3326, %v2616, %v3619
    %v3621 = vsel %vm3328, %v2623, %v3620
    %v3622 = vsel %vm3330, %v2630, %v3621
    %v3623 = vsel %vm3332, %v2637, %v3622
    %v3624 = vsel %vm3334, %v2644, %v3623
    %v3625 = vsel %vm3336, %v2651, %v3624
    %v3635 = vsel %vm3324, %v2705, %v2698
    %v3636 = vsel %vm3326, %v2712, %v3635
    %v3637 = vsel %vm3328, %v2719, %v3636
    %v3638 = vsel %vm3330, %v2726, %v3637
    %v3639 = vsel %vm3332, %v2733, %v3638
    %v3640 = vsel %vm3334, %v2740, %v3639
    %v3641 = vsel %vm3336, %v2747, %v3640
    %v3651 = vsel %vm3324, %v2929, %v2922
    %v3652 = vsel %vm3326, %v2936, %v3651
    %v3653 = vsel %vm3328, %v2943, %v3652
    %v3654 = vsel %vm3330, %v2950, %v3653
    %v3655 = vsel %vm3332, %v2957, %v3654
    %v3656 = vsel %vm3334, %v2964, %v3655
    %v3657 = vsel %vm3336, %v2971, %v3656
    %v3667 = vsel %vm3324, %v3009, %v3002
    %v3668 = vsel %vm3326, %v3016, %v3667
    %v3669 = vsel %vm3328, %v3023, %v3668
    %v3670 = vsel %vm3330, %v3030, %v3669
    %v3671 = vsel %vm3332, %v3037, %v3670
    %v3672 = vsel %vm3334, %v3044, %v3671
    %v3673 = vsel %vm3336, %v3051, %v3672
    %v3683 = vsel %vm3324, %v3105, %v3098
    %v3684 = vsel %vm3326, %v3112, %v3683
    %v3685 = vsel %vm3328, %v3119, %v3684
    %v3686 = vsel %vm3330, %v3126, %v3685
    %v3687 = vsel %vm3332, %v3133, %v3686
    %v3688 = vsel %vm3334, %v3140, %v3687
    %v3689 = vsel %vm3336, %v3147, %v3688
    %v3699 = vsel %vm3324, %v3177, %v3170
    %v3700 = vsel %vm3326, %v3184, %v3699
    %v3701 = vsel %vm3328, %v3191, %v3700
    %v3702 = vsel %vm3330, %v3198, %v3701
    %v3703 = vsel %vm3332, %v3205, %v3702
    %v3704 = vsel %vm3334, %v3212, %v3703
    %v3705 = vsel %vm3336, %v3219, %v3704
    %v3715 = vsel %vm3324, %v3273, %v3266
    %v3716 = vsel %vm3326, %v3280, %v3715
    %v3717 = vsel %vm3328, %v3287, %v3716
    %v3718 = vsel %vm3330, %v3294, %v3717
    %v3719 = vsel %vm3332, %v3301, %v3718
    %v3720 = vsel %vm3334, %v3308, %v3719
    %v3721 = vsel %vm3336, %v3315, %v3720
    %v3723 = vmul.f32 %v3337, 0.04
    %v3724 = vmul.f32 %v3353, 0.04
    %v3725 = vmul.f32 %v3369, 0.04
    %v3726 = vmul.f32 %v3385, 0.04
    %v3727 = vmul.f32 %v3401, 0.04
    %v3728 = vmul.f32 %v3417, 0.04
    %v3729 = vmul.f32 %v3433, 0.04
    %v3730 = vmul.f32 %v3449, 0.04
    %v3731 = vmul.f32 %v3465, 0.04
    %v3732 = vmul.f32 %v3481, 0.04
    %v3733 = vmul.f32 %v3497, 0.04
    %v3734 = vmul.f32 %v3513, 0.04
    %v3735 = vmul.f32 %v3529, 0.04
    %v3736 = vmul.f32 %v3545, 0.04
    %v3737 = vmul.f32 %v3561, 0.04
    %v3738 = vmul.f32 %v3577, 0.04
    %v3739 = vmul.f32 %v3593, 0.04
    %v3740 = vmul.f32 %v3609, 0.04
    %v3741 = vmul.f32 %v3625, 0.04
    %v3742 = vmul.f32 %v3641, 0.04
    %v3743 = vmul.f32 %v3657, 0.04
    %v3744 = vmul.f32 %v3673, 0.04
    %v3745 = vmul.f32 %v3689, 0.04
    %v3746 = vmul.f32 %v3705, 0.04
    %v3747 = vmul.f32 %v3721, 0.04
    %v3748 = vld [vmem:[%s1] sm:$0xff]
    %v3749 = vld [vmem:[%s1 + $0x8] sm:$0xff]
    %v3750 = vld [vmem:[%s2] sm:$0x1]
    %v3752 = vlaneseq
    %v3753 = vshrl.u32 %v3752, 7
    %v3754 = vsub.s32 0, %v3753
    %v3755 = vrot.slane %v3750, %v3754
    %v3758 = vsel %vm423, %v3723, 0
    %v3761 = vsel %vm423, %v3724, 0
    %v3764 = vsel %vm423, %v3725, 0
    %v3767 = vsel %vm423, %v3726, 0
    %v3770 = vsel %vm423, %v3727, 0
    %v3773 = vsel %vm423, %v3728, 0
    %v3776 = vsel %vm423, %v3729, 0
    %v3779 = vsel %vm423, %v3730, 0
    %v3782 = vsel %vm423, %v3731, 0
    %v3785 = vsel %vm423, %v3732, 0
    %v3788 = vsel %vm423, %v3733, 0
    %v3791 = vsel %vm423, %v3734, 0
    %v3794 = vsel %vm423, %v3735, 0
    %v3797 = vsel %vm423, %v3736, 0
    %v3800 = vsel %vm423, %v3737, 0
    %v3803 = vsel %vm423, %v3738, 0
    %v3806 = vsel %vm423, %v3739, 0
    %v3809 = vsel %vm423, %v3740, 0
    %v3812 = vsel %vm423, %v3741, 0
    %v3815 = vsel %vm423, %v3742, 0
    %v3818 = vsel %vm423, %v3743, 0
    %v3821 = vsel %vm423, %v3744, 0
    %v3824 = vsel %vm423, %v3745, 0
    %v3827 = vsel %vm423, %v3746, 0
    %v3830 = vsel %vm423, %v3747, 0
    %3832 = vmatprep.subr.mxu0 0.0
    %3833 = vmatpush1.msra.mxu0 %v3748
    %3834 = vmatprep.subr.mxu0 0.0
    %3835 = vmatpush1.msra.mxu0 %v3749
    %3836 = vmatprep.subr.mxu0 0.0
    %3837 = vmatpush1.msra.mxu0 0.0
    %3838 = vmatprep.subr.mxu0 0.0
    %3839 = vmatpush1.msra.mxu0 0.0
    %3840 = vmatprep.subr.mxu0 0.0
    %3841 = vmatpush1.msra.mxu0 0.0
    %3842 = vmatprep.subr.mxu0 0.0
    %3843 = vmatpush1.msra.mxu0 0.0
    %3844 = vmatprep.subr.mxu0 0.0
    %3845 = vmatpush1.msra.mxu0 0.0
    %3846 = vmatprep.subr.mxu0 0.0
    %3847 = vmatpush1.msra.mxu0 0.0
    %3848 = vmatprep.subr.mxu0 0.0
    %3849 = vmatpush1.msra.mxu0 0.0
    %3850 = vmatprep.subr.mxu0 0.0
    %3851 = vmatpush1.msra.mxu0 0.0
    %3852 = vmatprep.subr.mxu0 0.0
    %3853 = vmatpush1.msra.mxu0 0.0
    %3854 = vmatprep.subr.mxu0 0.0
    %3855 = vmatpush1.msra.mxu0 0.0
    %3856 = vmatprep.subr.mxu0 0.0
    %3857 = vmatpush1.msra.mxu0 0.0
    %3858 = vmatprep.subr.mxu0 0.0
    %3859 = vmatpush1.msra.mxu0 0.0
    %3860 = vmatprep.subr.mxu0 0.0
    %3861 = vmatpush1.msra.mxu0 0.0
    %3862 = vmatprep.subr.mxu0 0.0
    %3863 = vmatpush1.msra.mxu0 0.0
    %3864 = vmatprep.subr.mxu0 0.0
    %3865 = vmatpush1.msra.mxu0 0.0
    %3866 = vmatprep.subr.mxu0 0.0
    %3867 = vmatpush1.msra.mxu0 0.0
    %3868 = vmatprep.subr.mxu0 0.0
    %3869 = vmatpush1.msra.mxu0 0.0
    %3870 = vmatprep.subr.mxu0 0.0
    %3871 = vmatpush1.msra.mxu0 0.0
    %3872 = vmatprep.subr.mxu0 0.0
    %3873 = vmatpush1.msra.mxu0 0.0
    %3874 = vmatprep.subr.mxu0 0.0
    %3875 = vmatpush1.msra.mxu0 0.0
    %3876 = vmatprep.subr.mxu0 0.0
    %3877 = vmatpush1.msra.mxu0 0.0
    %3878 = vmatprep.subr.mxu0 0.0
    %3879 = vmatpush1.msra.mxu0 0.0
    %3880 = vmatprep.subr.mxu0 0.0
    %3881 = vmatpush1.msra.mxu0 0.0
    %3882 = vmatprep.subr.mxu0 0.0
    %3883 = vmatpush1.msra.mxu0 0.0
    %3884 = vmatprep.subr.mxu0 0.0
    %3885 = vmatpush1.msra.mxu0 0.0
    %3886 = vmatprep.subr.mxu0 0.0
    %3887 = vmatpush1.msra.mxu0 0.0
    %3888 = vmatprep.subr.mxu0 0.0
    %3889 = vmatpush1.msra.mxu0 0.0
    %3890 = vmatprep.subr.mxu0 0.0
    %3891 = vmatpush1.msra.mxu0 0.0
    %3892 = vmatprep.subr.mxu0 0.0
    %3893 = vmatpush1.msra.mxu0 0.0
    %3894 = vmatprep.subr.mxu0 0.0
    %3895 = vmatpush1.msra.mxu0 0.0
    %3896 = vmatprep.mubr.f32.mxu0 0.0
    %3897 = vmatmul.mubr.f32.gmra.mrb[0].mxu0 %v3758
    %v3898 = vpop.f32.mrb[0].mxu0
    %v3899 = vadd.f32 %v3755, %v3898
    %v3900 = vpop.f32.mrb[0].mxu0
    %3901 = vmatprep.mubr.f32.mxu0 0.0
    %3902 = vmatmul.mubr.f32.gmra.mrb[0].mxu0 %v3761
    %v3903 = vpop.f32.mrb[0].mxu0
    %v3904 = vadd.f32 %v3755, %v3903
    %v3905 = vpop.f32.mrb[0].mxu0
    %3906 = vmatprep.mubr.f32.mxu0 0.0
    %3907 = vmatmul.mubr.f32.gmra.mrb[0].mxu0 %v3764
    %v3908 = vpop.f32.mrb[0].mxu0
    %v3909 = vadd.f32 %v3755, %v3908
    %v3910 = vpop.f32.mrb[0].mxu0
    %3911 = vmatprep.mubr.f32.mxu0 0.0
    %3912 = vmatmul.mubr.f32.gmra.mrb[0].mxu0 %v3767
    %v3913 = vpop.f32.mrb[0].mxu0
    %v3914 = vadd.f32 %v3755, %v3913
    %v3915 = vpop.f32.mrb[0].mxu0
    %3916 = vmatprep.mubr.f32.mxu0 0.0
    %3917 = vmatmul.mubr.f32.gmra.mrb[0].mxu0 %v3770
    %v3918 = vpop.f32.mrb[0].mxu0
    %v3919 = vadd.f32 %v3755, %v3918
    %v3920 = vpop.f32.mrb[0].mxu0
    %3921 = vmatprep.mubr.f32.mxu0 0.0
    %3922 = vmatmul.mubr.f32.gmra.mrb[0].mxu0 %v3773
    %v3923 = vpop.f32.mrb[0].mxu0
    %v3924 = vadd.f32 %v3755, %v3923
    %v3925 = vpop.f32.mrb[0].mxu0
    %3926 = vmatprep.mubr.f32.mxu0 0.0
    %3927 = vmatmul.mubr.f32.gmra.mrb[0].mxu0 %v3776
    %v3928 = vpop.f32.mrb[0].mxu0
    %v3929 = vadd.f32 %v3755, %v3928
    %v3930 = vpop.f32.mrb[0].mxu0
    %3931 = vmatprep.mubr.f32.mxu0 0.0
    %3932 = vmatmul.mubr.f32.gmra.mrb[0].mxu0 %v3779
    %v3933 = vpop.f32.mrb[0].mxu0
    %v3934 = vadd.f32 %v3755, %v3933
    %v3935 = vpop.f32.mrb[0].mxu0
    %3936 = vmatprep.mubr.f32.mxu0 0.0
    %3937 = vmatmul.mubr.f32.gmra.mrb[0].mxu0 %v3782
    %v3938 = vpop.f32.mrb[0].mxu0
    %v3939 = vadd.f32 %v3755, %v3938
    %v3940 = vpop.f32.mrb[0].mxu0
    %3941 = vmatprep.mubr.f32.mxu0 0.0
    %3942 = vmatmul.mubr.f32.gmra.mrb[0].mxu0 %v3785
    %v3943 = vpop.f32.mrb[0].mxu0
    %v3944 = vadd.f32 %v3755, %v3943
    %v3945 = vpop.f32.mrb[0].mxu0
    %3946 = vmatprep.mubr.f32.mxu0 0.0
    %3947 = vmatmul.mubr.f32.gmra.mrb[0].mxu0 %v3788
    %v3948 = vpop.f32.mrb[0].mxu0
    %v3949 = vadd.f32 %v3755, %v3948
    %v3950 = vpop.f32.mrb[0].mxu0
    %3951 = vmatprep.mubr.f32.mxu0 0.0
    %3952 = vmatmul.mubr.f32.gmra.mrb[0].mxu0 %v3791
    %v3953 = vpop.f32.mrb[0].mxu0
    %v3954 = vadd.f32 %v3755, %v3953
    %v3955 = vpop.f32.mrb[0].mxu0
    %3956 = vmatprep.mubr.f32.mxu0 0.0
    %3957 = vmatmul.mubr.f32.gmra.mrb[0].mxu0 %v3794
    %v3958 = vpop.f32.mrb[0].mxu0
    %v3959 = vadd.f32 %v3755, %v3958
    %v3960 = vpop.f32.mrb[0].mxu0
    %3961 = vmatprep.mubr.f32.mxu0 0.0
    %3962 = vmatmul.mubr.f32.gmra.mrb[0].mxu0 %v3797
    %v3963 = vpop.f32.mrb[0].mxu0
    %v3964 = vadd.f32 %v3755, %v3963
    %v3965 = vpop.f32.mrb[0].mxu0
    %3966 = vmatprep.mubr.f32.mxu0 0.0
    %3967 = vmatmul.mubr.f32.gmra.mrb[0].mxu0 %v3800
    %v3968 = vpop.f32.mrb[0].mxu0
    %v3969 = vadd.f32 %v3755, %v3968
    %v3970 = vpop.f32.mrb[0].mxu0
    %3971 = vmatprep.mubr.f32.mxu0 0.0
    %3972 = vmatmul.mubr.f32.gmra.mrb[0].mxu0 %v3803
    %v3973 = vpop.f32.mrb[0].mxu0
    %v3974 = vadd.f32 %v3755, %v3973
    %v3975 = vpop.f32.mrb[0].mxu0
    %3976 = vmatprep.mubr.f32.mxu0 0.0
    %3977 = vmatmul.mubr.f32.gmra.mrb[0].mxu0 %v3806
    %v3978 = vpop.f32.mrb[0].mxu0
    %v3979 = vadd.f32 %v3755, %v3978
    %v3980 = vpop.f32.mrb[0].mxu0
    %3981 = vmatprep.mubr.f32.mxu0 0.0
    %3982 = vmatmul.mubr.f32.gmra.mrb[0].mxu0 %v3809
    %v3983 = vpop.f32.mrb[0].mxu0
    %v3984 = vadd.f32 %v3755, %v3983
    %v3985 = vpop.f32.mrb[0].mxu0
    %3986 = vmatprep.mubr.f32.mxu0 0.0
    %3987 = vmatmul.mubr.f32.gmra.mrb[0].mxu0 %v3812
    %v3988 = vpop.f32.mrb[0].mxu0
    %v3989 = vadd.f32 %v3755, %v3988
    %v3990 = vpop.f32.mrb[0].mxu0
    %3991 = vmatprep.mubr.f32.mxu0 0.0
    %3992 = vmatmul.mubr.f32.gmra.mrb[0].mxu0 %v3815
    %v3993 = vpop.f32.mrb[0].mxu0
    %v3994 = vadd.f32 %v3755, %v3993
    %v3995 = vpop.f32.mrb[0].mxu0
    %3996 = vmatprep.mubr.f32.mxu0 0.0
    %3997 = vmatmul.mubr.f32.gmra.mrb[0].mxu0 %v3818
    %v3998 = vpop.f32.mrb[0].mxu0
    %v3999 = vadd.f32 %v3755, %v3998
    %v4000 = vpop.f32.mrb[0].mxu0
    %4001 = vmatprep.mubr.f32.mxu0 0.0
    %4002 = vmatmul.mubr.f32.gmra.mrb[0].mxu0 %v3821
    %v4003 = vpop.f32.mrb[0].mxu0
    %v4004 = vadd.f32 %v3755, %v4003
    %v4005 = vpop.f32.mrb[0].mxu0
    %4006 = vmatprep.mubr.f32.mxu0 0.0
    %4007 = vmatmul.mubr.f32.gmra.mrb[0].mxu0 %v3824
    %v4008 = vpop.f32.mrb[0].mxu0
    %v4009 = vadd.f32 %v3755, %v4008
    %v4010 = vpop.f32.mrb[0].mxu0
    %4011 = vmatprep.mubr.f32.mxu0 0.0
    %4012 = vmatmul.mubr.f32.gmra.mrb[0].mxu0 %v3827
    %v4013 = vpop.f32.mrb[0].mxu0
    %v4014 = vadd.f32 %v3755, %v4013
    %v4015 = vpop.f32.mrb[0].mxu0
    %4016 = vmatprep.mubr.f32.mxu0 0.0
    %4017 = vmatmul.mubr.f32.gmra.mrb[0].mxu0 %v3830
    %v4018 = vpop.f32.mrb[0].mxu0
    %v4019 = vadd.f32 %v3755, %v4018
    %v4020 = vpop.f32.mrb[0].mxu0
    %4021 = vdwg.mxu0
    %v4022 = vmax.f32 %v3899, 0.0
    %v4023 = vmax.f32 %v3904, 0.0
    %v4024 = vmax.f32 %v3909, 0.0
    %v4025 = vmax.f32 %v3914, 0.0
    %v4026 = vmax.f32 %v3919, 0.0
    %v4027 = vmax.f32 %v3924, 0.0
    %v4028 = vmax.f32 %v3929, 0.0
    %v4029 = vmax.f32 %v3934, 0.0
    %v4030 = vmax.f32 %v3939, 0.0
    %v4031 = vmax.f32 %v3944, 0.0
    %v4032 = vmax.f32 %v3949, 0.0
    %v4033 = vmax.f32 %v3954, 0.0
    %v4034 = vmax.f32 %v3959, 0.0
    %v4035 = vmax.f32 %v3964, 0.0
    %v4036 = vmax.f32 %v3969, 0.0
    %v4037 = vmax.f32 %v3974, 0.0
    %v4038 = vmax.f32 %v3979, 0.0
    %v4039 = vmax.f32 %v3984, 0.0
    %v4040 = vmax.f32 %v3989, 0.0
    %v4041 = vmax.f32 %v3994, 0.0
    %v4042 = vmax.f32 %v3999, 0.0
    %v4043 = vmax.f32 %v4004, 0.0
    %v4044 = vmax.f32 %v4009, 0.0
    %v4045 = vmax.f32 %v4014, 0.0
    %v4046 = vmax.f32 %v4019, 0.0
    %v4047 = vpack.c.bf16 %v4022, %v4022
    %v4048 = vpack.c.bf16 %v4023, %v4023
    %v4049 = vpack.c.bf16 %v4024, %v4024
    %v4050 = vpack.c.bf16 %v4025, %v4025
    %v4051 = vpack.c.bf16 %v4026, %v4026
    %v4052 = vpack.c.bf16 %v4027, %v4027
    %v4053 = vpack.c.bf16 %v4028, %v4028
    %v4054 = vpack.c.bf16 %v4029, %v4029
    %v4055 = vpack.c.bf16 %v4030, %v4030
    %v4056 = vpack.c.bf16 %v4031, %v4031
    %v4057 = vpack.c.bf16 %v4032, %v4032
    %v4058 = vpack.c.bf16 %v4033, %v4033
    %v4059 = vpack.c.bf16 %v4034, %v4034
    %v4060 = vpack.c.bf16 %v4035, %v4035
    %v4061 = vpack.c.bf16 %v4036, %v4036
    %v4062 = vpack.c.bf16 %v4037, %v4037
    %v4063 = vpack.c.bf16 %v4038, %v4038
    %v4064 = vpack.c.bf16 %v4039, %v4039
    %v4065 = vpack.c.bf16 %v4040, %v4040
    %v4066 = vpack.c.bf16 %v4041, %v4041
    %v4067 = vpack.c.bf16 %v4042, %v4042
    %v4068 = vpack.c.bf16 %v4043, %v4043
    %v4069 = vpack.c.bf16 %v4044, %v4044
    %v4070 = vpack.c.bf16 %v4045, %v4045
    %v4071 = vpack.c.bf16 %v4046, %v4046
    %v4097 = vunpack.c.l.b16 %v4047
    %v4098 = vunpack.c.l.b16 %v4048
    %v4099 = vunpack.c.l.b16 %v4049
    %v4100 = vunpack.c.l.b16 %v4050
    %v4101 = vunpack.c.l.b16 %v4051
    %v4102 = vunpack.c.l.b16 %v4052
    %v4103 = vunpack.c.l.b16 %v4053
    %v4104 = vunpack.c.l.b16 %v4054
    %v4105 = vunpack.c.l.b16 %v4055
    %v4106 = vunpack.c.l.b16 %v4056
    %v4107 = vunpack.c.l.b16 %v4057
    %v4108 = vunpack.c.l.b16 %v4058
    %v4109 = vunpack.c.l.b16 %v4059
    %v4110 = vunpack.c.l.b16 %v4060
    %v4111 = vunpack.c.l.b16 %v4061
    %v4112 = vunpack.c.l.b16 %v4062
    %v4113 = vunpack.c.l.b16 %v4063
    %v4114 = vunpack.c.l.b16 %v4064
    %v4115 = vunpack.c.l.b16 %v4065
    %v4116 = vunpack.c.l.b16 %v4066
    %v4117 = vunpack.c.l.b16 %v4067
    %v4118 = vunpack.c.l.b16 %v4068
    %v4119 = vunpack.c.l.b16 %v4069
    %v4120 = vunpack.c.l.b16 %v4070
    %v4121 = vunpack.c.l.b16 %v4071
    %v4122 = vpack.c.b16 %v4098, %v4097
    %v4123 = vpack.c.b16 %v4100, %v4099
    %v4124 = vpack.c.b16 %v4102, %v4101
    %v4125 = vpack.c.b16 %v4104, %v4103
    %v4126 = vpack.c.b16 %v4106, %v4105
    %v4127 = vpack.c.b16 %v4108, %v4107
    %v4128 = vpack.c.b16 %v4110, %v4109
    %v4129 = vpack.c.b16 %v4112, %v4111
    %v4130 = vpack.c.b16 %v4114, %v4113
    %v4131 = vpack.c.b16 %v4116, %v4115
    %v4132 = vpack.c.b16 %v4118, %v4117
    %v4133 = vpack.c.b16 %v4120, %v4119
    %v4134 = vpack.c.b16 %v4121, %v4121
    %4148 = vst [vmem:[#allocation2] sm:$0xff] %v4122
    %4149 = vst [vmem:[#allocation2 + $0x8] sm:$0xff] %v4123
    %4150 = vst [vmem:[#allocation2 + $0x10] sm:$0xff] %v4124
    %4151 = vst [vmem:[#allocation2 + $0x18] sm:$0xff] %v4125
    %4152 = vst [vmem:[#allocation2 + $0x20] sm:$0xff] %v4126
    %4153 = vst [vmem:[#allocation2 + $0x28] sm:$0xff] %v4127
    %4154 = vst [vmem:[#allocation2 + $0x30] sm:$0xff] %v4128
    %4155 = vst [vmem:[#allocation2 + $0x38] sm:$0xff] %v4129
    %4156 = vst [vmem:[#allocation2 + $0x40] sm:$0xff] %v4130
    %4157 = vst [vmem:[#allocation2 + $0x48] sm:$0xff] %v4131
    %4158 = vst [vmem:[#allocation2 + $0x50] sm:$0xff] %v4132
    %4159 = vst [vmem:[#allocation2 + $0x58] sm:$0xff] %v4133
    %4160 = vst [vmem:[#allocation2 + $0x60] sm:$0xf] %v4134
    // Predicated region
    $region14: #{tpu_custom_call.1} parent=1 // pred_check
      _
    $region15: #{tpu_custom_call.1} parent=1 // pred_check_branch
      %4162 = sbr.rel (0) target = $region17
    $region16: #{tpu_custom_call.1} parent=1 // pred_region
      %s4164 = ssub.s32 1600, 1600
      %4165 = vsyncadd [#allocation3], %s4164
      %s4167 = sshll.u32 [#allocation2], 4
      %s4168 = int_to_ptr.vmem [resolvable:$true] %s4167
      %4170 = dma.vmem_to_hbm [thread:$0]  %s4168, 1600, %s3, [#allocation3]
    $region17: #{tpu_custom_call.1} parent=1 // pred_fallthru
      _
    // Predicated region
    $region18: #{tpu_custom_call.1} parent=1 // pred_check
      _
    $region19: #{tpu_custom_call.1} parent=1 // pred_check_branch
      %4172 = sbr.rel (0) target = $region21
    $region20: #{tpu_custom_call.1} parent=1 // pred_region
      %4173 = dma.done [#allocation3], 1600
    $region21: #{tpu_custom_call.1} parent=1 // pred_fallthru
      _
    %4174 = vsyncpa [#allocation3], 1

</llo_original>
